<compile_context>
chip_gen: v7x
topology: tpu7x:2x2x1
jax: 0.10.0
libtpu: 0.0.40
codegen_flags: <defaults>
</compile_context>

<pallas_src>
import functools

import jax
import jax.numpy as jnp
from jax import lax
from jax.experimental import pallas as pl
from jax.experimental.pallas import tpu as pltpu


_LANE = 128                      # pad matmul output channels to a multiple of 128 lanes


def _round_up(x, m):
    return (x + m - 1) // m * m


def _chip_config():
    """Pick (max M-tile rows, vmem_limit_bytes) per TPU generation."""
    vmem_cap = None
    try:
        info = pltpu.get_tpu_info()
        vmem_cap = getattr(info, "vmem_capacity_bytes", None)
    except Exception:
        vmem_cap = None
    if vmem_cap is None:
        vmem_cap = 64 * 1024 * 1024                 # conservative: assume v7x
    if vmem_cap >= 96 * 1024 * 1024:                # v5e / v6e: 128 MiB physical VMEM
        return 1024, 80 * 1024 * 1024
    return 1024, 40 * 1024 * 1024                   # v7x: 64 MiB per TC (bf16 tiles fit)


_TM_MAX, _VMEM_LIMIT = _chip_config()
_VMEM_BUDGET = int(0.75 * _VMEM_LIMIT)              # headroom for pipeline/internal scratch


def _fit_tm(tm_max, k, cp, in_itemsize, out_itemsize):
    """Shrink the M-tile until double-buffered patch/weight/output tiles fit VMEM."""
    tm = tm_max
    while tm > 64:
        need = (2 * tm * k * in_itemsize          # patches (double buffered)
                + 2 * k * cp * in_itemsize        # weights (double buffered)
                + 2 * tm * cp * out_itemsize)     # output tile (double buffered)
        if need <= _VMEM_BUDGET:
            break
        tm //= 2
    return tm


def _tiling(m, tm_max):
    """M-tile size; guarantees >= 2 grid steps when possible (v7x megacore) and
    avoids a whole tile of zero-padded rows."""
    n_tiles = max(2, -(-m // tm_max))
    tm = min(tm_max, _round_up(-(-m // n_tiles), 8))
    mp = _round_up(m, tm)
    return tm, mp, mp // tm


def _apply_act(x, act):
    if act == "leaky":
        return jnp.where(x >= 0, x, 0.2 * x)
    if act == "relu":
        return jnp.maximum(x, 0.0)
    if act == "tanh":
        return jnp.tanh(x)
    return x


def _compiler_params():
    return pltpu.CompilerParams(
        dimension_semantics=("parallel",),
        vmem_limit_bytes=_VMEM_LIMIT)


# ----------------------------- Pallas kernels --------------------------------

def matmul_stats_kernel(p_ref, w_ref, y_ref, s_ref):
    """Per M-tile: y = patches @ W (bf16->f32 MXU); emit y plus per-tile (sum, sum_sq)."""
    y = jnp.dot(p_ref[...], w_ref[...], preferred_element_type=jnp.float32)
    y_ref[...] = y
    s_ref[0:1, :] = jnp.sum(y, axis=0, keepdims=True)        # XLU reductions: free slot
    s_ref[1:2, :] = jnp.sum(y * y, axis=0, keepdims=True)


def stats_only_kernel(p_ref, w_ref, s_ref):
    """Per M-tile: only the per-tile (sum, sum_sq) of patches @ W; no y writeback."""
    y = jnp.dot(p_ref[...], w_ref[...], preferred_element_type=jnp.float32)
    s_ref[0:1, :] = jnp.sum(y, axis=0, keepdims=True)
    s_ref[1:2, :] = jnp.sum(y * y, axis=0, keepdims=True)


def scale_act_kernel(y_ref, sc_ref, sh_ref, o_ref, *, act):
    """Per M-tile: out = act(y * scale + shift) in f32, cast at the store (bf16 out)."""
    o_ref[...] = _apply_act(y_ref[...] * sc_ref[...] + sh_ref[...], act).astype(o_ref.dtype)


def matmul_affine_act_kernel(p_ref, w_ref, sc_ref, sh_ref, o_ref, *, act):
    """Per M-tile, fully fused: out = act((patches @ W) * scale + shift)."""
    y = jnp.dot(p_ref[...], w_ref[...], preferred_element_type=jnp.float32)
    o_ref[...] = _apply_act(y * sc_ref[...] + sh_ref[...], act).astype(o_ref.dtype)


# --------------------------- pallas_call wrappers -----------------------------

def _pad2(a, rows, cols):
    return jnp.pad(a, ((0, rows - a.shape[0]), (0, cols - a.shape[1])))


def matmul_stats_y(patches, w_flat):
    """Two-pass path (K >= Cp): write f32 y + per-tile stats."""
    m, k = patches.shape
    c = w_flat.shape[1]
    cp = _round_up(c, _LANE)
    tm, mp, nt = _tiling(m, _fit_tm(_TM_MAX, k, cp, 2, 4))
    p = _pad2(patches, mp, k)                       # zero rows -> zero stats contribution
    w = _pad2(w_flat, k, cp)                        # zero cols -> lane-dense, sliced later
    y, stats = pl.pallas_call(
        matmul_stats_kernel,
        out_shape=(jax.ShapeDtypeStruct((mp, cp), jnp.float32),
                   jax.ShapeDtypeStruct((nt, 2, cp), jnp.float32)),
        grid=(nt,),
        in_specs=[pl.BlockSpec((tm, k), lambda i: (i, 0)),
                  pl.BlockSpec((k, cp), lambda i: (0, 0))],
        out_specs=(pl.BlockSpec((tm, cp), lambda i: (i, 0)),
                   pl.BlockSpec((None, 2, cp), lambda i: (i, 0, 0))),
        compiler_params=_compiler_params(),
        cost_estimate=pl.CostEstimate(
            flops=2 * mp * k * cp, transcendentals=0,
            bytes_accessed=2 * (mp * k + k * cp) + 4 * (mp * cp + nt * 2 * cp)),
    )(p, w)
    return y, stats, cp, tm, nt


def matmul_stats_only(patches, w_flat):
    """Fused path pass 1 (K < Cp): per-tile stats only; the matmul is recomputed in pass 2."""
    m, k = patches.shape
    c = w_flat.shape[1]
    cp = _round_up(c, _LANE)
    tm, mp, nt = _tiling(m, _fit_tm(_TM_MAX, k, cp, 2, 0))
    p = _pad2(patches, mp, k)
    w = _pad2(w_flat, k, cp)
    stats = pl.pallas_call(
        stats_only_kernel,
        out_shape=jax.ShapeDtypeStruct((nt, 2, cp), jnp.float32),
        grid=(nt,),
        in_specs=[pl.BlockSpec((tm, k), lambda i: (i, 0)),
                  pl.BlockSpec((k, cp), lambda i: (0, 0))],
        out_specs=pl.BlockSpec((None, 2, cp), lambda i: (i, 0, 0)),
        compiler_params=_compiler_params(),
        cost_estimate=pl.CostEstimate(
            flops=2 * mp * k * cp, transcendentals=0,
            bytes_accessed=2 * (mp * k + k * cp) + 4 * nt * 2 * cp),
    )(p, w)
    return stats, cp


def scale_act(y_pad, scale_row, shift_row, act, m, c, tm, nt):
    mp, cp = y_pad.shape
    out = pl.pallas_call(
        functools.partial(scale_act_kernel, act=act),
        out_shape=jax.ShapeDtypeStruct((mp, cp), jnp.bfloat16),
        grid=(nt,),
        in_specs=[pl.BlockSpec((tm, cp), lambda i: (i, 0)),
                  pl.BlockSpec((1, cp), lambda i: (0, 0)),
                  pl.BlockSpec((1, cp), lambda i: (0, 0))],
        out_specs=pl.BlockSpec((tm, cp), lambda i: (i, 0)),
        compiler_params=_compiler_params(),
        cost_estimate=pl.CostEstimate(
            flops=3 * mp * cp,
            transcendentals=mp * cp if act == "tanh" else 0,
            bytes_accessed=4 * (mp * cp + 2 * cp) + 2 * mp * cp),
    )(y_pad, scale_row.reshape(1, cp).astype(jnp.float32),
      shift_row.reshape(1, cp).astype(jnp.float32))
    return out[:m, :c]


def matmul_affine_act(patches, w_flat, scale_vec, shift_vec, act, out_dtype=jnp.bfloat16):
    m, k = patches.shape
    c = w_flat.shape[1]
    cp = _round_up(c, _LANE)
    out_bytes = jnp.dtype(out_dtype).itemsize
    tm, mp, nt = _tiling(m, _fit_tm(_TM_MAX, k, cp, 2, out_bytes))
    p = _pad2(patches, mp, k)
    w = _pad2(w_flat, k, cp)
    sc = jnp.pad(scale_vec, (0, cp - c), constant_values=1.0).reshape(1, cp).astype(jnp.float32)
    sh = jnp.pad(shift_vec, (0, cp - c)).reshape(1, cp).astype(jnp.float32)
    out = pl.pallas_call(
        functools.partial(matmul_affine_act_kernel, act=act),
        out_shape=jax.ShapeDtypeStruct((mp, cp), out_dtype),
        grid=(nt,),
        in_specs=[pl.BlockSpec((tm, k), lambda i: (i, 0)),
                  pl.BlockSpec((k, cp), lambda i: (0, 0)),
                  pl.BlockSpec((1, cp), lambda i: (0, 0)),
                  pl.BlockSpec((1, cp), lambda i: (0, 0))],
        out_specs=pl.BlockSpec((tm, cp), lambda i: (i, 0)),
        compiler_params=_compiler_params(),
        cost_estimate=pl.CostEstimate(
            flops=2 * mp * k * cp + 3 * mp * cp,
            transcendentals=mp * cp if act == "tanh" else 0,
            bytes_accessed=2 * (mp * k + k * cp) + 8 * cp + out_bytes * mp * cp),
    )(p, w, sc, sh)
    return out[:m, :c]


def conv_bn_act(patches, w_flat, gamma, beta, act, phases=1):
    """matmul + training-mode BatchNorm + activation.

    K < Cp  : stats-only pass + fused recompute (no f32 y round-trip through HBM).
    K >= Cp : two-pass path with an f32 y intermediate (stats and the values being
              normalized come from the exact same f32 accumulator).
    Columns of w_flat are phase-major: [phase, Cout]; BN statistics pool the
    `phases` column groups (plus all M rows).  The conv bias is intentionally
    omitted: it cancels exactly against the batch mean.
    """
    m, k = patches.shape
    c_mat = w_flat.shape[1]
    cout = c_mat // phases
    cp = _round_up(c_mat, _LANE)
    fuse = k < cp

    if fuse:
        stats, cp = matmul_stats_only(patches, w_flat)
    else:
        y, stats, cp, tm, nt = matmul_stats_y(patches, w_flat)

    s = jnp.sum(stats, axis=0)                                   # [2, cp]
    count = m * phases
    mean = jnp.sum(s[0, :c_mat].reshape(phases, cout), axis=0) / count
    ex2 = jnp.sum(s[1, :c_mat].reshape(phases, cout), axis=0) / count
    var = ex2 - mean * mean                                      # biased var (training BN)
    scale_c = gamma * lax.rsqrt(var + 1e-5)
    shift_c = beta - mean * scale_c
    scale = jnp.tile(scale_c, phases)
    shift = jnp.tile(shift_c, phases)

    if fuse:
        return matmul_affine_act(patches, w_flat, scale, shift, act, jnp.bfloat16)
    scale_p = jnp.pad(scale, (0, cp - c_mat), constant_values=1.0)
    shift_p = jnp.pad(shift, (0, cp - c_mat))
    return scale_act(y, scale_p, shift_p, act, m, c_mat, tm, nt)


# ------------------------------ JAX glue --------------------------------------

def im2col(x_nhwc, k, stride, pad):
    """Extract k x k patches; feature order is (kh, kw, Cin). Keeps input dtype (bf16)."""
    n, h, w, c = x_nhwc.shape
    xp = jnp.pad(x_nhwc, ((0, 0), (pad, pad), (pad, pad), (0, 0)))
    ho = (h + 2 * pad - k) // stride + 1
    wo = (w + 2 * pad - k) // stride + 1
    cols = []
    for di in range(k):
        for dj in range(k):
            cols.append(xp[:, di:di + stride * ho:stride, dj:dj + stride * wo:stride, :])
    patches = jnp.stack(cols, axis=3)                 # [N, Ho, Wo, k*k, C]
    return patches.reshape(n * ho * wo, k * k * c), n, ho, wo


def conv_w_to_flat(w_oihw):
    # Conv2d weight [Cout, Cin, kh, kw] -> [kh, kw, Cin, Cout] -> [kh*kw*Cin, Cout]
    w = jnp.transpose(w_oihw, (2, 3, 1, 0))
    return w.reshape(-1, w.shape[-1])


def tconv_subpixel_weight(w_iohw):
    """ConvTranspose2d(k=4, s=2, p=1) weight [Cin, Cout, 4, 4] -> sub-pixel weight
    [9*Cin, 4*Cout] for a shared 3x3 stride-1 im2col of the UNDILATED input.

    Output pixel (2m+r, 2n+s) = sum over a 2x2-tap subset of the 3x3 window:
      r=0 -> (row offset, kernel row) in {(0,1), (-1,3)};  r=1 -> {(+1,0), (0,2)}
    (same for columns with s/q).  Unused taps are zero.
    """
    cin, cout = w_iohw.shape[0], w_iohw.shape[1]
    wc = jnp.zeros((3, 3, cin, 4, cout), w_iohw.dtype)
    row_taps = {0: [(0, 1), (-1, 3)], 1: [(1, 0), (0, 2)]}
    for r in (0, 1):
        for s in (0, 1):
            ph = r * 2 + s
            for (dy, p) in row_taps[r]:
                for (dx, q) in row_taps[s]:
                    wc = wc.at[dy + 1, dx + 1, :, ph, :].set(w_iohw[:, :, p, q])
    return wc.reshape(9 * cin, 4 * cout)


def make_params(key, nc, ngf):
    """Deterministic synthetic parameters matching the nn.Module shapes."""
    chans = [
        (nc, ngf), (ngf, 2 * ngf), (2 * ngf, 4 * ngf),     # Conv2d layers 1..3
        (4 * ngf, 2 * ngf), (2 * ngf, ngf), (ngf, nc),     # ConvTranspose2d layers 4..6
    ]
    params = []
    for li, (cin, cout) in enumerate(chans):
        key, k1, k2 = jax.random.split(key, 3)
        if li < 3:   # Conv2d: [Cout, Cin, 4, 4]
            w = 0.05 * jax.random.normal(k1, (cout, cin, 4, 4), jnp.float32)
            w_flat = conv_w_to_flat(w)
        else:        # ConvTranspose2d: [Cin, Cout, 4, 4]
            w = 0.05 * jax.random.normal(k1, (cin, cout, 4, 4), jnp.float32)
            w_flat = tconv_subpixel_weight(w)
        w_flat = w_flat.astype(jnp.bfloat16)            # bf16 MXU feed
        b = 0.01 * jax.random.normal(k2, (cout,), jnp.float32)
        gamma = jnp.ones((cout,), jnp.float32)           # BN weight init
        beta = jnp.zeros((cout,), jnp.float32)           # BN bias init
        params.append((w, w_flat, b, gamma, beta))
    return params


def generator_forward(x_nchw, params):
    x = jnp.transpose(x_nchw, (0, 2, 3, 1)).astype(jnp.bfloat16)   # NCHW -> NHWC, bf16
    # Encoder: Conv2d(k=4, s=2, p=1) + BN + LeakyReLU(0.2). Bias dropped (cancels in BN).
    # TODO(synk): patches are still materialized in HBM by XLA-side im2col; a true
    # implicit-GEMM kernel (in-kernel halo'd DMA of the raw image) would remove this.
    for li in range(3):
        _, w_flat, _, g, be = params[li]
        patches, n, ho, wo = im2col(x, 4, 2, 1)
        out = conv_bn_act(patches, w_flat, g, be, "leaky", phases=1)
        x = out.reshape(n, ho, wo, -1)
    # Decoder: ConvTranspose2d(k=4, s=2, p=1) via 4-phase sub-pixel decomposition.
    for li in range(3, 6):
        w, w_flat, b, g, be = params[li]
        n, h, wdt, _ = x.shape
        cout = w.shape[1]
        patches, _, _, _ = im2col(x, 3, 1, 1)       # [N*H*W, 9*Cin] — no zero dilation
        if li < 5:
            out = conv_bn_act(patches, w_flat, g, be, "relu", phases=4)
        else:       # final layer: no BN -> fused matmul + bias + tanh, f32 output
            out = matmul_affine_act(patches, w_flat,
                                    jnp.ones((4 * cout,), jnp.float32),
                                    jnp.tile(b, 4), "tanh", jnp.float32)
        # interleave the 4 phases back into the 2x-upsampled image
        out = out.reshape(n, h, wdt, 2, 2, cout)
        out = jnp.transpose(out, (0, 1, 3, 2, 4, 5)).reshape(n, 2 * h, 2 * wdt, cout)
        x = out
    return jnp.transpose(x, (0, 3, 1, 2)).astype(jnp.float32)   # NHWC -> NCHW


# ------------------------------ reference (pure XLA) ---------------------------

def _ref_bn_act(y, g, be, act, use_bn):
    if use_bn:
        mean = jnp.mean(y, axis=(0, 1, 2), keepdims=True)
        var = jnp.mean((y - mean) ** 2, axis=(0, 1, 2), keepdims=True)
        y = (y - mean) * lax.rsqrt(var + 1e-5) * g.reshape(1, 1, 1, -1) \
            + be.reshape(1, 1, 1, -1)
    if act == "leaky":
        y = jnp.where(y >= 0, y, 0.2 * y)
    elif act == "relu":
        y = jnp.maximum(y, 0.0)
    elif act == "tanh":
        y = jnp.tanh(y)
    return y


def generator_reference(x_nchw, params):
    """Matches the kernel path's bf16 conv inputs / f32 accumulation & BN."""
    dn = ("NHWC", "HWIO", "NHWC")
    x = jnp.transpose(x_nchw, (0, 2, 3, 1)).astype(jnp.float32)
    for li in range(3):
        w, _, b, g, be = params[li]
        w_hwio = jnp.transpose(w, (2, 3, 1, 0)).astype(jnp.bfloat16)
        y = lax.conv_general_dilated(x.astype(jnp.bfloat16), w_hwio, (2, 2),
                                     [(1, 1), (1, 1)], dimension_numbers=dn,
                                     preferred_element_type=jnp.float32)
        y = y + b.reshape(1, 1, 1, -1)
        x = _ref_bn_act(y, g, be, "leaky", True)
    for li in range(3, 6):
        w, _, b, g, be = params[li]
        w_hwio = jnp.transpose(w[:, :, ::-1, ::-1], (2, 3, 0, 1)).astype(jnp.bfloat16)
        y = lax.conv_general_dilated(x.astype(jnp.bfloat16), w_hwio, (1, 1),
                                     [(2, 2), (2, 2)], lhs_dilation=(2, 2),
                                     dimension_numbers=dn,
                                     preferred_element_type=jnp.float32)
        y = y + b.reshape(1, 1, 1, -1)
        x = _ref_bn_act(y, g, be, "relu" if li < 5 else "tanh", li < 5)
    return jnp.transpose(x, (0, 3, 1, 2))


# --------------------------------- main ----------------------------------------

if __name__ == "__main__":
    nc, ngf = 1, 8            # small shapes (module uses ngf=64; scaled down)
    N, H, W = 2, 16, 16

    key = jax.random.PRNGKey(0)
    key, kx = jax.random.split(key)
    x = jax.random.normal(kx, (N, nc, H, W), jnp.float32)   # NCHW, like PyTorch

    params = make_params(key, nc, ngf)

    out = jax.block_until_ready(jax.jit(generator_forward)(x, params))
    assert out.shape == (N, nc, H, W), out.shape

    ref = jax.block_until_ready(jax.jit(generator_reference)(x, params))
    err = float(jnp.max(jnp.abs(out - ref)))
    assert jnp.allclose(out, ref, atol=1.5e-2, rtol=1.5e-2), err

    print("KERNEL_OK")
</pallas_src>

<mosaic_0001>
module attributes {stable_mosaic.version = 11 : i64} {
  func.func @stats_only_kernel(%arg0: i32, %arg1: memref<64x16xbf16, #tpu.memory_space<vmem>>, %arg2: memref<16x128xbf16, #tpu.memory_space<vmem>>, %arg3: memref<1x2x128xf32, #tpu.memory_space<vmem>>) attributes {dimension_semantics = [#tpu.dimension_semantics<parallel>], iteration_bounds = array<i64: 2>, scalar_prefetch = 0 : i64, scratch_operands = 0 : i64, tpu.core_type = #tpu.core_type<tc>, window_params = [{transform_indices = @transform_0, window_bounds = array<i64: 64, 16>}, {pipeline_mode = #tpu.pipeline_mode<synchronous>, transform_indices = @transform_1, window_bounds = array<i64: 16, 128>}, {transform_indices = @transform_2, window_bounds = array<i64: 1, 2, 128>}]} {
    %c0 = arith.constant 0 : index
    %c0_0 = arith.constant 0 : index
    %0 = vector.load %arg1[%c0, %c0_0] : memref<64x16xbf16, #tpu.memory_space<vmem>>, vector<64x16xbf16>
    %c0_1 = arith.constant 0 : index
    %c0_2 = arith.constant 0 : index
    %1 = vector.load %arg2[%c0_1, %c0_2] : memref<16x128xbf16, #tpu.memory_space<vmem>>, vector<16x128xbf16>
    %cst = arith.constant dense<0.000000e+00> : vector<64x128xf32>
    %2 = tpu.matmul %0, %1, %cst {dimension_numbers = #tpu.dot_dimension_numbers<[1], [0], [0], [1], [0, 0, 1, 1], [], []>} : vector<64x16xbf16>, vector<16x128xbf16>, vector<64x128xf32> -> vector<64x128xf32>
    %cst_3 = arith.constant dense<0.000000e+00> : vector<128xf32>
    %3 = vector.multi_reduction <add>, %2, %cst_3 [0] : vector<64x128xf32> to vector<128xf32>
    %4 = vector.shape_cast %3 : vector<128xf32> to vector<1x128xf32>
    %c0_4 = arith.constant 0 : index
    %c0_5 = arith.constant 0 : index
    %c0_6 = arith.constant 0 : index
    %5 = vector.load %arg3[%c0_4, %c0_5, %c0_6] : memref<1x2x128xf32, #tpu.memory_space<vmem>>, vector<1x1x128xf32>
    %6 = vector.shape_cast %5 : vector<1x1x128xf32> to vector<1x128xf32>
    %7 = vector.shape_cast %4 : vector<1x128xf32> to vector<1x1x128xf32>
    tpu.vector_store %arg3[%c0_4, %c0_5, %c0_6], %7 {strides = array<i32>} : memref<1x2x128xf32, #tpu.memory_space<vmem>>, vector<1x1x128xf32>,
    %8 = arith.mulf %2, %2 : vector<64x128xf32>
    %cst_7 = arith.constant dense<0.000000e+00> : vector<128xf32>
    %9 = vector.multi_reduction <add>, %8, %cst_7 [0] : vector<64x128xf32> to vector<128xf32>
    %10 = vector.shape_cast %9 : vector<128xf32> to vector<1x128xf32>
    %c0_8 = arith.constant 0 : index
    %c1 = arith.constant 1 : index
    %c0_9 = arith.constant 0 : index
    %11 = vector.load %arg3[%c0_8, %c1, %c0_9] : memref<1x2x128xf32, #tpu.memory_space<vmem>>, vector<1x1x128xf32>
    %12 = vector.shape_cast %11 : vector<1x1x128xf32> to vector<1x128xf32>
    %13 = vector.shape_cast %10 : vector<1x128xf32> to vector<1x1x128xf32>
    tpu.vector_store %arg3[%c0_8, %c1, %c0_9], %13 {strides = array<i32>} : memref<1x2x128xf32, #tpu.memory_space<vmem>>, vector<1x1x128xf32>,
    return
  }
  func.func @transform_0(%arg0: i32) -> (i32, i32) {
    %c0_i32 = arith.constant 0 : i32
    %c0_i32_0 = arith.constant 0 : i32
    return %arg0, %c0_i32 : i32, i32
  }
  func.func @transform_1(%arg0: i32) -> (i32, i32) {
    %c0_i32 = arith.constant 0 : i32
    %c0_i32_0 = arith.constant 0 : i32
    %c0_i32_1 = arith.constant 0 : i32
    return %c0_i32, %c0_i32_0 : i32, i32
  }
  func.func @transform_2(%arg0: i32) -> (i32, i32, i32) {
    %c0_i32 = arith.constant 0 : i32
    %c0_i32_0 = arith.constant 0 : i32
    %c0_i32_1 = arith.constant 0 : i32
    return %arg0, %c0_i32, %c0_i32_0 : i32, i32, i32
  }
}

module attributes {stable_mosaic.version = 11 : i64} {
  func.func @matmul_affine_act_kernel(%arg0: i32, %arg1: memref<64x16xbf16, #tpu.memory_space<vmem>>, %arg2: memref<16x128xbf16, #tpu.memory_space<vmem>>, %arg3: memref<1x128xf32, #tpu.memory_space<vmem>>, %arg4: memref<1x128xf32, #tpu.memory_space<vmem>>, %arg5: memref<64x128xbf16, #tpu.memory_space<vmem>>) attributes {dimension_semantics = [#tpu.dimension_semantics<parallel>], iteration_bounds = array<i64: 2>, scalar_prefetch = 0 : i64, scratch_operands = 0 : i64, tpu.core_type = #tpu.core_type<tc>, window_params = [{transform_indices = @transform_0, window_bounds = array<i64: 64, 16>}, {pipeline_mode = #tpu.pipeline_mode<synchronous>, transform_indices = @transform_1, window_bounds = array<i64: 16, 128>}, {pipeline_mode = #tpu.pipeline_mode<synchronous>, transform_indices = @transform_2, window_bounds = array<i64: 1, 128>}, {pipeline_mode = #tpu.pipeline_mode<synchronous>, transform_indices = @transform_3, window_bounds = array<i64: 1, 128>}, {transform_indices = @transform_4, window_bounds = array<i64: 64, 128>}]} {
    %c0 = arith.constant 0 : index
    %c0_0 = arith.constant 0 : index
    %0 = vector.load %arg1[%c0, %c0_0] : memref<64x16xbf16, #tpu.memory_space<vmem>>, vector<64x16xbf16>
    %c0_1 = arith.constant 0 : index
    %c0_2 = arith.constant 0 : index
    %1 = vector.load %arg2[%c0_1, %c0_2] : memref<16x128xbf16, #tpu.memory_space<vmem>>, vector<16x128xbf16>
    %cst = arith.constant dense<0.000000e+00> : vector<64x128xf32>
    %2 = tpu.matmul %0, %1, %cst {dimension_numbers = #tpu.dot_dimension_numbers<[1], [0], [0], [1], [0, 0, 1, 1], [], []>} : vector<64x16xbf16>, vector<16x128xbf16>, vector<64x128xf32> -> vector<64x128xf32>
    %c0_3 = arith.constant 0 : index
    %c0_4 = arith.constant 0 : index
    %3 = vector.load %arg3[%c0_3, %c0_4] : memref<1x128xf32, #tpu.memory_space<vmem>>, vector<1x128xf32>
    %4 = vector.broadcast %3 : vector<1x128xf32> to vector<64x128xf32>
    %5 = arith.mulf %2, %4 : vector<64x128xf32>
    %c0_5 = arith.constant 0 : index
    %c0_6 = arith.constant 0 : index
    %6 = vector.load %arg4[%c0_5, %c0_6] : memref<1x128xf32, #tpu.memory_space<vmem>>, vector<1x128xf32>
    %7 = vector.broadcast %6 : vector<1x128xf32> to vector<64x128xf32>
    %8 = arith.addf %5, %7 : vector<64x128xf32>
    %cst_7 = arith.constant 0.000000e+00 : f32
    %9 = vector.broadcast %cst_7 : f32 to vector<64x128xf32>
    %10 = arith.cmpf oge, %8, %9 : vector<64x128xf32>
    %cst_8 = arith.constant 2.000000e-01 : f32
    %11 = vector.broadcast %cst_8 : f32 to vector<64x128xf32>
    %12 = arith.mulf %11, %8 : vector<64x128xf32>
    %13 = arith.select %10, %8, %12 : vector<64x128xi1>, vector<64x128xf32>
    %14 = arith.truncf %13 : vector<64x128xf32> to vector<64x128xbf16>
    %c0_9 = arith.constant 0 : index
    %c0_10 = arith.constant 0 : index
    %15 = vector.load %arg5[%c0_9, %c0_10] : memref<64x128xbf16, #tpu.memory_space<vmem>>, vector<64x128xbf16>
    tpu.vector_store %arg5[%c0_9, %c0_10], %14 {strides = array<i32>} : memref<64x128xbf16, #tpu.memory_space<vmem>>, vector<64x128xbf16>,
    return
  }
  func.func @transform_0(%arg0: i32) -> (i32, i32) {
    %c0_i32 = arith.constant 0 : i32
    %c0_i32_0 = arith.constant 0 : i32
    return %arg0, %c0_i32 : i32, i32
  }
  func.func @transform_1(%arg0: i32) -> (i32, i32) {
    %c0_i32 = arith.constant 0 : i32
    %c0_i32_0 = arith.constant 0 : i32
    %c0_i32_1 = arith.constant 0 : i32
    return %c0_i32, %c0_i32_0 : i32, i32
  }
  func.func @transform_2(%arg0: i32) -> (i32, i32) {
    %c0_i32 = arith.constant 0 : i32
    %c0_i32_0 = arith.constant 0 : i32
    %c0_i32_1 = arith.constant 0 : i32
    return %c0_i32, %c0_i32_0 : i32, i32
  }
  func.func @transform_3(%arg0: i32) -> (i32, i32) {
    %c0_i32 = arith.constant 0 : i32
    %c0_i32_0 = arith.constant 0 : i32
    %c0_i32_1 = arith.constant 0 : i32
    return %c0_i32, %c0_i32_0 : i32, i32
  }
  func.func @transform_4(%arg0: i32) -> (i32, i32) {
    %c0_i32 = arith.constant 0 : i32
    %c0_i32_0 = arith.constant 0 : i32
    return %arg0, %c0_i32 : i32, i32
  }
}

module attributes {stable_mosaic.version = 11 : i64} {
  func.func @matmul_stats_kernel(%arg0: i32, %arg1: memref<16x128xbf16, #tpu.memory_space<vmem>>, %arg2: memref<128x128xbf16, #tpu.memory_space<vmem>>, %arg3: memref<16x128xf32, #tpu.memory_space<vmem>>, %arg4: memref<1x2x128xf32, #tpu.memory_space<vmem>>) attributes {dimension_semantics = [#tpu.dimension_semantics<parallel>], iteration_bounds = array<i64: 2>, scalar_prefetch = 0 : i64, scratch_operands = 0 : i64, tpu.core_type = #tpu.core_type<tc>, window_params = [{transform_indices = @transform_0, window_bounds = array<i64: 16, 128>}, {pipeline_mode = #tpu.pipeline_mode<synchronous>, transform_indices = @transform_1, window_bounds = array<i64: 128, 128>}, {transform_indices = @transform_2, window_bounds = array<i64: 16, 128>}, {transform_indices = @transform_3, window_bounds = array<i64: 1, 2, 128>}]} {
    %c0 = arith.constant 0 : index
    %c0_0 = arith.constant 0 : index
    %0 = vector.load %arg1[%c0, %c0_0] : memref<16x128xbf16, #tpu.memory_space<vmem>>, vector<16x128xbf16>
    %c0_1 = arith.constant 0 : index
    %c0_2 = arith.constant 0 : index
    %1 = vector.load %arg2[%c0_1, %c0_2] : memref<128x128xbf16, #tpu.memory_space<vmem>>, vector<128x128xbf16>
    %cst = arith.constant dense<0.000000e+00> : vector<16x128xf32>
    %2 = tpu.matmul %0, %1, %cst {dimension_numbers = #tpu.dot_dimension_numbers<[1], [0], [0], [1], [0, 0, 1, 1], [], []>} : vector<16x128xbf16>, vector<128x128xbf16>, vector<16x128xf32> -> vector<16x128xf32>
    %c0_3 = arith.constant 0 : index
    %c0_4 = arith.constant 0 : index
    %3 = vector.load %arg3[%c0_3, %c0_4] : memref<16x128xf32, #tpu.memory_space<vmem>>, vector<16x128xf32>
    tpu.vector_store %arg3[%c0_3, %c0_4], %2 {strides = array<i32>} : memref<16x128xf32, #tpu.memory_space<vmem>>, vector<16x128xf32>,
    %cst_5 = arith.constant dense<0.000000e+00> : vector<128xf32>
    %4 = vector.multi_reduction <add>, %2, %cst_5 [0] : vector<16x128xf32> to vector<128xf32>
    %5 = vector.shape_cast %4 : vector<128xf32> to vector<1x128xf32>
    %c0_6 = arith.constant 0 : index
    %c0_7 = arith.constant 0 : index
    %c0_8 = arith.constant 0 : index
    %6 = vector.load %arg4[%c0_6, %c0_7, %c0_8] : memref<1x2x128xf32, #tpu.memory_space<vmem>>, vector<1x1x128xf32>
    %7 = vector.shape_cast %6 : vector<1x1x128xf32> to vector<1x128xf32>
    %8 = vector.shape_cast %5 : vector<1x128xf32> to vector<1x1x128xf32>
    tpu.vector_store %arg4[%c0_6, %c0_7, %c0_8], %8 {strides = array<i32>} : memref<1x2x128xf32, #tpu.memory_space<vmem>>, vector<1x1x128xf32>,
    %9 = arith.mulf %2, %2 : vector<16x128xf32>
    %cst_9 = arith.constant dense<0.000000e+00> : vector<128xf32>
    %10 = vector.multi_reduction <add>, %9, %cst_9 [0] : vector<16x128xf32> to vector<128xf32>
    %11 = vector.shape_cast %10 : vector<128xf32> to vector<1x128xf32>
    %c0_10 = arith.constant 0 : index
    %c1 = arith.constant 1 : index
    %c0_11 = arith.constant 0 : index
    %12 = vector.load %arg4[%c0_10, %c1, %c0_11] : memref<1x2x128xf32, #tpu.memory_space<vmem>>, vector<1x1x128xf32>
    %13 = vector.shape_cast %12 : vector<1x1x128xf32> to vector<1x128xf32>
    %14 = vector.shape_cast %11 : vector<1x128xf32> to vector<1x1x128xf32>
    tpu.vector_store %arg4[%c0_10, %c1, %c0_11], %14 {strides = array<i32>} : memref<1x2x128xf32, #tpu.memory_space<vmem>>, vector<1x1x128xf32>,
    return
  }
  func.func @transform_0(%arg0: i32) -> (i32, i32) {
    %c0_i32 = arith.constant 0 : i32
    %c0_i32_0 = arith.constant 0 : i32
    return %arg0, %c0_i32 : i32, i32
  }
  func.func @transform_1(%arg0: i32) -> (i32, i32) {
    %c0_i32 = arith.constant 0 : i32
    %c0_i32_0 = arith.constant 0 : i32
    %c0_i32_1 = arith.constant 0 : i32
    return %c0_i32, %c0_i32_0 : i32, i32
  }
  func.func @transform_2(%arg0: i32) -> (i32, i32) {
    %c0_i32 = arith.constant 0 : i32
    %c0_i32_0 = arith.constant 0 : i32
    return %arg0, %c0_i32 : i32, i32
  }
  func.func @transform_3(%arg0: i32) -> (i32, i32, i32) {
    %c0_i32 = arith.constant 0 : i32
    %c0_i32_0 = arith.constant 0 : i32
    %c0_i32_1 = arith.constant 0 : i32
    return %arg0, %c0_i32, %c0_i32_0 : i32, i32, i32
  }
}

module attributes {stable_mosaic.version = 11 : i64} {
  func.func @scale_act_kernel(%arg0: i32, %arg1: memref<16x128xf32, #tpu.memory_space<vmem>>, %arg2: memref<1x128xf32, #tpu.memory_space<vmem>>, %arg3: memref<1x128xf32, #tpu.memory_space<vmem>>, %arg4: memref<16x128xbf16, #tpu.memory_space<vmem>>) attributes {dimension_semantics = [#tpu.dimension_semantics<parallel>], iteration_bounds = array<i64: 2>, scalar_prefetch = 0 : i64, scratch_operands = 0 : i64, tpu.core_type = #tpu.core_type<tc>, window_params = [{transform_indices = @transform_0, window_bounds = array<i64: 16, 128>}, {pipeline_mode = #tpu.pipeline_mode<synchronous>, transform_indices = @transform_1, window_bounds = array<i64: 1, 128>}, {pipeline_mode = #tpu.pipeline_mode<synchronous>, transform_indices = @transform_2, window_bounds = array<i64: 1, 128>}, {transform_indices = @transform_3, window_bounds = array<i64: 16, 128>}]} {
    %c0 = arith.constant 0 : index
    %c0_0 = arith.constant 0 : index
    %0 = vector.load %arg1[%c0, %c0_0] : memref<16x128xf32, #tpu.memory_space<vmem>>, vector<16x128xf32>
    %c0_1 = arith.constant 0 : index
    %c0_2 = arith.constant 0 : index
    %1 = vector.load %arg2[%c0_1, %c0_2] : memref<1x128xf32, #tpu.memory_space<vmem>>, vector<1x128xf32>
    %2 = vector.broadcast %1 : vector<1x128xf32> to vector<16x128xf32>
    %3 = arith.mulf %0, %2 : vector<16x128xf32>
    %c0_3 = arith.constant 0 : index
    %c0_4 = arith.constant 0 : index
    %4 = vector.load %arg3[%c0_3, %c0_4] : memref<1x128xf32, #tpu.memory_space<vmem>>, vector<1x128xf32>
    %5 = vector.broadcast %4 : vector<1x128xf32> to vector<16x128xf32>
    %6 = arith.addf %3, %5 : vector<16x128xf32>
    %cst = arith.constant 0.000000e+00 : f32
    %7 = vector.broadcast %cst : f32 to vector<16x128xf32>
    %8 = arith.cmpf oge, %6, %7 : vector<16x128xf32>
    %cst_5 = arith.constant 2.000000e-01 : f32
    %9 = vector.broadcast %cst_5 : f32 to vector<16x128xf32>
    %10 = arith.mulf %9, %6 : vector<16x128xf32>
    %11 = arith.select %8, %6, %10 : vector<16x128xi1>, vector<16x128xf32>
    %12 = arith.truncf %11 : vector<16x128xf32> to vector<16x128xbf16>
    %c0_6 = arith.constant 0 : index
    %c0_7 = arith.constant 0 : index
    %13 = vector.load %arg4[%c0_6, %c0_7] : memref<16x128xbf16, #tpu.memory_space<vmem>>, vector<16x128xbf16>
    tpu.vector_store %arg4[%c0_6, %c0_7], %12 {strides = array<i32>} : memref<16x128xbf16, #tpu.memory_space<vmem>>, vector<16x128xbf16>,
    return
  }
  func.func @transform_0(%arg0: i32) -> (i32, i32) {
    %c0_i32 = arith.constant 0 : i32
    %c0_i32_0 = arith.constant 0 : i32
    return %arg0, %c0_i32 : i32, i32
  }
  func.func @transform_1(%arg0: i32) -> (i32, i32) {
    %c0_i32 = arith.constant 0 : i32
    %c0_i32_0 = arith.constant 0 : i32
    %c0_i32_1 = arith.constant 0 : i32
    return %c0_i32, %c0_i32_0 : i32, i32
  }
  func.func @transform_2(%arg0: i32) -> (i32, i32) {
    %c0_i32 = arith.constant 0 : i32
    %c0_i32_0 = arith.constant 0 : i32
    %c0_i32_1 = arith.constant 0 : i32
    return %c0_i32, %c0_i32_0 : i32, i32
  }
  func.func @transform_3(%arg0: i32) -> (i32, i32) {
    %c0_i32 = arith.constant 0 : i32
    %c0_i32_0 = arith.constant 0 : i32
    return %arg0, %c0_i32 : i32, i32
  }
}

module attributes {stable_mosaic.version = 11 : i64} {
  func.func @matmul_stats_kernel(%arg0: i32, %arg1: memref<8x256xbf16, #tpu.memory_space<vmem>>, %arg2: memref<256x128xbf16, #tpu.memory_space<vmem>>, %arg3: memref<8x128xf32, #tpu.memory_space<vmem>>, %arg4: memref<1x2x128xf32, #tpu.memory_space<vmem>>) attributes {dimension_semantics = [#tpu.dimension_semantics<parallel>], iteration_bounds = array<i64: 1>, scalar_prefetch = 0 : i64, scratch_operands = 0 : i64, tpu.core_type = #tpu.core_type<tc>, window_params = [{transform_indices = @transform_0, window_bounds = array<i64: 8, 256>}, {pipeline_mode = #tpu.pipeline_mode<synchronous>, transform_indices = @transform_1, window_bounds = array<i64: 256, 128>}, {transform_indices = @transform_2, window_bounds = array<i64: 8, 128>}, {transform_indices = @transform_3, window_bounds = array<i64: 1, 2, 128>}]} {
    %c0 = arith.constant 0 : index
    %c0_0 = arith.constant 0 : index
    %0 = vector.load %arg1[%c0, %c0_0] : memref<8x256xbf16, #tpu.memory_space<vmem>>, vector<8x256xbf16>
    %c0_1 = arith.constant 0 : index
    %c0_2 = arith.constant 0 : index
    %1 = vector.load %arg2[%c0_1, %c0_2] : memref<256x128xbf16, #tpu.memory_space<vmem>>, vector<256x128xbf16>
    %cst = arith.constant dense<0.000000e+00> : vector<8x128xf32>
    %2 = tpu.matmul %0, %1, %cst {dimension_numbers = #tpu.dot_dimension_numbers<[1], [0], [0], [1], [0, 0, 1, 1], [], []>} : vector<8x256xbf16>, vector<256x128xbf16>, vector<8x128xf32> -> vector<8x128xf32>
    %c0_3 = arith.constant 0 : index
    %c0_4 = arith.constant 0 : index
    %3 = vector.load %arg3[%c0_3, %c0_4] : memref<8x128xf32, #tpu.memory_space<vmem>>, vector<8x128xf32>
    tpu.vector_store %arg3[%c0_3, %c0_4], %2 {strides = array<i32>} : memref<8x128xf32, #tpu.memory_space<vmem>>, vector<8x128xf32>,
    %cst_5 = arith.constant dense<0.000000e+00> : vector<128xf32>
    %4 = vector.multi_reduction <add>, %2, %cst_5 [0] : vector<8x128xf32> to vector<128xf32>
    %5 = vector.shape_cast %4 : vector<128xf32> to vector<1x128xf32>
    %c0_6 = arith.constant 0 : index
    %c0_7 = arith.constant 0 : index
    %c0_8 = arith.constant 0 : index
    %6 = vector.load %arg4[%c0_6, %c0_7, %c0_8] : memref<1x2x128xf32, #tpu.memory_space<vmem>>, vector<1x1x128xf32>
    %7 = vector.shape_cast %6 : vector<1x1x128xf32> to vector<1x128xf32>
    %8 = vector.shape_cast %5 : vector<1x128xf32> to vector<1x1x128xf32>
    tpu.vector_store %arg4[%c0_6, %c0_7, %c0_8], %8 {strides = array<i32>} : memref<1x2x128xf32, #tpu.memory_space<vmem>>, vector<1x1x128xf32>,
    %9 = arith.mulf %2, %2 : vector<8x128xf32>
    %cst_9 = arith.constant dense<0.000000e+00> : vector<128xf32>
    %10 = vector.multi_reduction <add>, %9, %cst_9 [0] : vector<8x128xf32> to vector<128xf32>
    %11 = vector.shape_cast %10 : vector<128xf32> to vector<1x128xf32>
    %c0_10 = arith.constant 0 : index
    %c1 = arith.constant 1 : index
    %c0_11 = arith.constant 0 : index
    %12 = vector.load %arg4[%c0_10, %c1, %c0_11] : memref<1x2x128xf32, #tpu.memory_space<vmem>>, vector<1x1x128xf32>
    %13 = vector.shape_cast %12 : vector<1x1x128xf32> to vector<1x128xf32>
    %14 = vector.shape_cast %11 : vector<1x128xf32> to vector<1x1x128xf32>
    tpu.vector_store %arg4[%c0_10, %c1, %c0_11], %14 {strides = array<i32>} : memref<1x2x128xf32, #tpu.memory_space<vmem>>, vector<1x1x128xf32>,
    return
  }
  func.func @transform_0(%arg0: i32) -> (i32, i32) {
    %c0_i32 = arith.constant 0 : i32
    %c0_i32_0 = arith.constant 0 : i32
    return %arg0, %c0_i32 : i32, i32
  }
  func.func @transform_1(%arg0: i32) -> (i32, i32) {
    %c0_i32 = arith.constant 0 : i32
    %c0_i32_0 = arith.constant 0 : i32
    %c0_i32_1 = arith.constant 0 : i32
    return %c0_i32, %c0_i32_0 : i32, i32
  }
  func.func @transform_2(%arg0: i32) -> (i32, i32) {
    %c0_i32 = arith.constant 0 : i32
    %c0_i32_0 = arith.constant 0 : i32
    return %arg0, %c0_i32 : i32, i32
  }
  func.func @transform_3(%arg0: i32) -> (i32, i32, i32) {
    %c0_i32 = arith.constant 0 : i32
    %c0_i32_0 = arith.constant 0 : i32
    %c0_i32_1 = arith.constant 0 : i32
    return %arg0, %c0_i32, %c0_i32_0 : i32, i32, i32
  }
}

module attributes {stable_mosaic.version = 11 : i64} {
  func.func @scale_act_kernel(%arg0: i32, %arg1: memref<8x128xf32, #tpu.memory_space<vmem>>, %arg2: memref<1x128xf32, #tpu.memory_space<vmem>>, %arg3: memref<1x128xf32, #tpu.memory_space<vmem>>, %arg4: memref<8x128xbf16, #tpu.memory_space<vmem>>) attributes {dimension_semantics = [#tpu.dimension_semantics<parallel>], iteration_bounds = array<i64: 1>, scalar_prefetch = 0 : i64, scratch_operands = 0 : i64, tpu.core_type = #tpu.core_type<tc>, window_params = [{transform_indices = @transform_0, window_bounds = array<i64: 8, 128>}, {pipeline_mode = #tpu.pipeline_mode<synchronous>, transform_indices = @transform_1, window_bounds = array<i64: 1, 128>}, {pipeline_mode = #tpu.pipeline_mode<synchronous>, transform_indices = @transform_2, window_bounds = array<i64: 1, 128>}, {transform_indices = @transform_3, window_bounds = array<i64: 8, 128>}]} {
    %c0 = arith.constant 0 : index
    %c0_0 = arith.constant 0 : index
    %0 = vector.load %arg1[%c0, %c0_0] : memref<8x128xf32, #tpu.memory_space<vmem>>, vector<8x128xf32>
    %c0_1 = arith.constant 0 : index
    %c0_2 = arith.constant 0 : index
    %1 = vector.load %arg2[%c0_1, %c0_2] : memref<1x128xf32, #tpu.memory_space<vmem>>, vector<1x128xf32>
    %2 = vector.broadcast %1 : vector<1x128xf32> to vector<8x128xf32>
    %3 = arith.mulf %0, %2 : vector<8x128xf32>
    %c0_3 = arith.constant 0 : index
    %c0_4 = arith.constant 0 : index
    %4 = vector.load %arg3[%c0_3, %c0_4] : memref<1x128xf32, #tpu.memory_space<vmem>>, vector<1x128xf32>
    %5 = vector.broadcast %4 : vector<1x128xf32> to vector<8x128xf32>
    %6 = arith.addf %3, %5 : vector<8x128xf32>
    %cst = arith.constant 0.000000e+00 : f32
    %7 = vector.broadcast %cst : f32 to vector<8x128xf32>
    %8 = arith.cmpf oge, %6, %7 : vector<8x128xf32>
    %cst_5 = arith.constant 2.000000e-01 : f32
    %9 = vector.broadcast %cst_5 : f32 to vector<8x128xf32>
    %10 = arith.mulf %9, %6 : vector<8x128xf32>
    %11 = arith.select %8, %6, %10 : vector<8x128xi1>, vector<8x128xf32>
    %12 = arith.truncf %11 : vector<8x128xf32> to vector<8x128xbf16>
    %c0_6 = arith.constant 0 : index
    %c0_7 = arith.constant 0 : index
    %13 = vector.load %arg4[%c0_6, %c0_7] : memref<8x128xbf16, #tpu.memory_space<vmem>>, vector<8x128xbf16>
    tpu.vector_store %arg4[%c0_6, %c0_7], %12 {strides = array<i32>} : memref<8x128xbf16, #tpu.memory_space<vmem>>, vector<8x128xbf16>,
    return
  }
  func.func @transform_0(%arg0: i32) -> (i32, i32) {
    %c0_i32 = arith.constant 0 : i32
    %c0_i32_0 = arith.constant 0 : i32
    return %arg0, %c0_i32 : i32, i32
  }
  func.func @transform_1(%arg0: i32) -> (i32, i32) {
    %c0_i32 = arith.constant 0 : i32
    %c0_i32_0 = arith.constant 0 : i32
    %c0_i32_1 = arith.constant 0 : i32
    return %c0_i32, %c0_i32_0 : i32, i32
  }
  func.func @transform_2(%arg0: i32) -> (i32, i32) {
    %c0_i32 = arith.constant 0 : i32
    %c0_i32_0 = arith.constant 0 : i32
    %c0_i32_1 = arith.constant 0 : i32
    return %c0_i32, %c0_i32_0 : i32, i32
  }
  func.func @transform_3(%arg0: i32) -> (i32, i32) {
    %c0_i32 = arith.constant 0 : i32
    %c0_i32_0 = arith.constant 0 : i32
    return %arg0, %c0_i32 : i32, i32
  }
}

module attributes {stable_mosaic.version = 11 : i64} {
  func.func @matmul_stats_kernel(%arg0: i32, %arg1: memref<8x288xbf16, #tpu.memory_space<vmem>>, %arg2: memref<288x128xbf16, #tpu.memory_space<vmem>>, %arg3: memref<8x128xf32, #tpu.memory_space<vmem>>, %arg4: memref<1x2x128xf32, #tpu.memory_space<vmem>>) attributes {dimension_semantics = [#tpu.dimension_semantics<parallel>], iteration_bounds = array<i64: 1>, scalar_prefetch = 0 : i64, scratch_operands = 0 : i64, tpu.core_type = #tpu.core_type<tc>, window_params = [{transform_indices = @transform_0, window_bounds = array<i64: 8, 288>}, {pipeline_mode = #tpu.pipeline_mode<synchronous>, transform_indices = @transform_1, window_bounds = array<i64: 288, 128>}, {transform_indices = @transform_2, window_bounds = array<i64: 8, 128>}, {transform_indices = @transform_3, window_bounds = array<i64: 1, 2, 128>}]} {
    %c0 = arith.constant 0 : index
    %c0_0 = arith.constant 0 : index
    %0 = vector.load %arg1[%c0, %c0_0] : memref<8x288xbf16, #tpu.memory_space<vmem>>, vector<8x288xbf16>
    %c0_1 = arith.constant 0 : index
    %c0_2 = arith.constant 0 : index
    %1 = vector.load %arg2[%c0_1, %c0_2] : memref<288x128xbf16, #tpu.memory_space<vmem>>, vector<288x128xbf16>
    %cst = arith.constant dense<0.000000e+00> : vector<8x128xf32>
    %2 = tpu.matmul %0, %1, %cst {dimension_numbers = #tpu.dot_dimension_numbers<[1], [0], [0], [1], [0, 0, 1, 1], [], []>} : vector<8x288xbf16>, vector<288x128xbf16>, vector<8x128xf32> -> vector<8x128xf32>
    %c0_3 = arith.constant 0 : index
    %c0_4 = arith.constant 0 : index
    %3 = vector.load %arg3[%c0_3, %c0_4] : memref<8x128xf32, #tpu.memory_space<vmem>>, vector<8x128xf32>
    tpu.vector_store %arg3[%c0_3, %c0_4], %2 {strides = array<i32>} : memref<8x128xf32, #tpu.memory_space<vmem>>, vector<8x128xf32>,
    %cst_5 = arith.constant dense<0.000000e+00> : vector<128xf32>
    %4 = vector.multi_reduction <add>, %2, %cst_5 [0] : vector<8x128xf32> to vector<128xf32>
    %5 = vector.shape_cast %4 : vector<128xf32> to vector<1x128xf32>
    %c0_6 = arith.constant 0 : index
    %c0_7 = arith.constant 0 : index
    %c0_8 = arith.constant 0 : index
    %6 = vector.load %arg4[%c0_6, %c0_7, %c0_8] : memref<1x2x128xf32, #tpu.memory_space<vmem>>, vector<1x1x128xf32>
    %7 = vector.shape_cast %6 : vector<1x1x128xf32> to vector<1x128xf32>
    %8 = vector.shape_cast %5 : vector<1x128xf32> to vector<1x1x128xf32>
    tpu.vector_store %arg4[%c0_6, %c0_7, %c0_8], %8 {strides = array<i32>} : memref<1x2x128xf32, #tpu.memory_space<vmem>>, vector<1x1x128xf32>,
    %9 = arith.mulf %2, %2 : vector<8x128xf32>
    %cst_9 = arith.constant dense<0.000000e+00> : vector<128xf32>
    %10 = vector.multi_reduction <add>, %9, %cst_9 [0] : vector<8x128xf32> to vector<128xf32>
    %11 = vector.shape_cast %10 : vector<128xf32> to vector<1x128xf32>
    %c0_10 = arith.constant 0 : index
    %c1 = arith.constant 1 : index
    %c0_11 = arith.constant 0 : index
    %12 = vector.load %arg4[%c0_10, %c1, %c0_11] : memref<1x2x128xf32, #tpu.memory_space<vmem>>, vector<1x1x128xf32>
    %13 = vector.shape_cast %12 : vector<1x1x128xf32> to vector<1x128xf32>
    %14 = vector.shape_cast %11 : vector<1x128xf32> to vector<1x1x128xf32>
    tpu.vector_store %arg4[%c0_10, %c1, %c0_11], %14 {strides = array<i32>} : memref<1x2x128xf32, #tpu.memory_space<vmem>>, vector<1x1x128xf32>,
    return
  }
  func.func @transform_0(%arg0: i32) -> (i32, i32) {
    %c0_i32 = arith.constant 0 : i32
    %c0_i32_0 = arith.constant 0 : i32
    return %arg0, %c0_i32 : i32, i32
  }
  func.func @transform_1(%arg0: i32) -> (i32, i32) {
    %c0_i32 = arith.constant 0 : i32
    %c0_i32_0 = arith.constant 0 : i32
    %c0_i32_1 = arith.constant 0 : i32
    return %c0_i32, %c0_i32_0 : i32, i32
  }
  func.func @transform_2(%arg0: i32) -> (i32, i32) {
    %c0_i32 = arith.constant 0 : i32
    %c0_i32_0 = arith.constant 0 : i32
    return %arg0, %c0_i32 : i32, i32
  }
  func.func @transform_3(%arg0: i32) -> (i32, i32, i32) {
    %c0_i32 = arith.constant 0 : i32
    %c0_i32_0 = arith.constant 0 : i32
    %c0_i32_1 = arith.constant 0 : i32
    return %arg0, %c0_i32, %c0_i32_0 : i32, i32, i32
  }
}

module attributes {stable_mosaic.version = 11 : i64} {
  func.func @scale_act_kernel(%arg0: i32, %arg1: memref<8x128xf32, #tpu.memory_space<vmem>>, %arg2: memref<1x128xf32, #tpu.memory_space<vmem>>, %arg3: memref<1x128xf32, #tpu.memory_space<vmem>>, %arg4: memref<8x128xbf16, #tpu.memory_space<vmem>>) attributes {dimension_semantics = [#tpu.dimension_semantics<parallel>], iteration_bounds = array<i64: 1>, scalar_prefetch = 0 : i64, scratch_operands = 0 : i64, tpu.core_type = #tpu.core_type<tc>, window_params = [{transform_indices = @transform_0, window_bounds = array<i64: 8, 128>}, {pipeline_mode = #tpu.pipeline_mode<synchronous>, transform_indices = @transform_1, window_bounds = array<i64: 1, 128>}, {pipeline_mode = #tpu.pipeline_mode<synchronous>, transform_indices = @transform_2, window_bounds = array<i64: 1, 128>}, {transform_indices = @transform_3, window_bounds = array<i64: 8, 128>}]} {
    %c0 = arith.constant 0 : index
    %c0_0 = arith.constant 0 : index
    %0 = vector.load %arg1[%c0, %c0_0] : memref<8x128xf32, #tpu.memory_space<vmem>>, vector<8x128xf32>
    %c0_1 = arith.constant 0 : index
    %c0_2 = arith.constant 0 : index
    %1 = vector.load %arg2[%c0_1, %c0_2] : memref<1x128xf32, #tpu.memory_space<vmem>>, vector<1x128xf32>
    %2 = vector.broadcast %1 : vector<1x128xf32> to vector<8x128xf32>
    %3 = arith.mulf %0, %2 : vector<8x128xf32>
    %c0_3 = arith.constant 0 : index
    %c0_4 = arith.constant 0 : index
    %4 = vector.load %arg3[%c0_3, %c0_4] : memref<1x128xf32, #tpu.memory_space<vmem>>, vector<1x128xf32>
    %5 = vector.broadcast %4 : vector<1x128xf32> to vector<8x128xf32>
    %6 = arith.addf %3, %5 : vector<8x128xf32>
    %cst = arith.constant 0.000000e+00 : f32
    %7 = vector.broadcast %cst : f32 to vector<8x128xf32>
    %8 = arith.maximumf %6, %7 : vector<8x128xf32>
    %9 = arith.truncf %8 : vector<8x128xf32> to vector<8x128xbf16>
    %c0_5 = arith.constant 0 : index
    %c0_6 = arith.constant 0 : index
    %10 = vector.load %arg4[%c0_5, %c0_6] : memref<8x128xbf16, #tpu.memory_space<vmem>>, vector<8x128xbf16>
    tpu.vector_store %arg4[%c0_5, %c0_6], %9 {strides = array<i32>} : memref<8x128xbf16, #tpu.memory_space<vmem>>, vector<8x128xbf16>,
    return
  }
  func.func @transform_0(%arg0: i32) -> (i32, i32) {
    %c0_i32 = arith.constant 0 : i32
    %c0_i32_0 = arith.constant 0 : i32
    return %arg0, %c0_i32 : i32, i32
  }
  func.func @transform_1(%arg0: i32) -> (i32, i32) {
    %c0_i32 = arith.constant 0 : i32
    %c0_i32_0 = arith.constant 0 : i32
    %c0_i32_1 = arith.constant 0 : i32
    return %c0_i32, %c0_i32_0 : i32, i32
  }
  func.func @transform_2(%arg0: i32) -> (i32, i32) {
    %c0_i32 = arith.constant 0 : i32
    %c0_i32_0 = arith.constant 0 : i32
    %c0_i32_1 = arith.constant 0 : i32
    return %c0_i32, %c0_i32_0 : i32, i32
  }
  func.func @transform_3(%arg0: i32) -> (i32, i32) {
    %c0_i32 = arith.constant 0 : i32
    %c0_i32_0 = arith.constant 0 : i32
    return %arg0, %c0_i32 : i32, i32
  }
}

module attributes {stable_mosaic.version = 11 : i64} {
  func.func @matmul_stats_kernel(%arg0: i32, %arg1: memref<16x144xbf16, #tpu.memory_space<vmem>>, %arg2: memref<144x128xbf16, #tpu.memory_space<vmem>>, %arg3: memref<16x128xf32, #tpu.memory_space<vmem>>, %arg4: memref<1x2x128xf32, #tpu.memory_space<vmem>>) attributes {dimension_semantics = [#tpu.dimension_semantics<parallel>], iteration_bounds = array<i64: 2>, scalar_prefetch = 0 : i64, scratch_operands = 0 : i64, tpu.core_type = #tpu.core_type<tc>, window_params = [{transform_indices = @transform_0, window_bounds = array<i64: 16, 144>}, {pipeline_mode = #tpu.pipeline_mode<synchronous>, transform_indices = @transform_1, window_bounds = array<i64: 144, 128>}, {transform_indices = @transform_2, window_bounds = array<i64: 16, 128>}, {transform_indices = @transform_3, window_bounds = array<i64: 1, 2, 128>}]} {
    %c0 = arith.constant 0 : index
    %c0_0 = arith.constant 0 : index
    %0 = vector.load %arg1[%c0, %c0_0] : memref<16x144xbf16, #tpu.memory_space<vmem>>, vector<16x144xbf16>
    %c0_1 = arith.constant 0 : index
    %c0_2 = arith.constant 0 : index
    %1 = vector.load %arg2[%c0_1, %c0_2] : memref<144x128xbf16, #tpu.memory_space<vmem>>, vector<144x128xbf16>
    %cst = arith.constant dense<0.000000e+00> : vector<16x128xf32>
    %2 = tpu.matmul %0, %1, %cst {dimension_numbers = #tpu.dot_dimension_numbers<[1], [0], [0], [1], [0, 0, 1, 1], [], []>} : vector<16x144xbf16>, vector<144x128xbf16>, vector<16x128xf32> -> vector<16x128xf32>
    %c0_3 = arith.constant 0 : index
    %c0_4 = arith.constant 0 : index
    %3 = vector.load %arg3[%c0_3, %c0_4] : memref<16x128xf32, #tpu.memory_space<vmem>>, vector<16x128xf32>
    tpu.vector_store %arg3[%c0_3, %c0_4], %2 {strides = array<i32>} : memref<16x128xf32, #tpu.memory_space<vmem>>, vector<16x128xf32>,
    %cst_5 = arith.constant dense<0.000000e+00> : vector<128xf32>
    %4 = vector.multi_reduction <add>, %2, %cst_5 [0] : vector<16x128xf32> to vector<128xf32>
    %5 = vector.shape_cast %4 : vector<128xf32> to vector<1x128xf32>
    %c0_6 = arith.constant 0 : index
    %c0_7 = arith.constant 0 : index
    %c0_8 = arith.constant 0 : index
    %6 = vector.load %arg4[%c0_6, %c0_7, %c0_8] : memref<1x2x128xf32, #tpu.memory_space<vmem>>, vector<1x1x128xf32>
    %7 = vector.shape_cast %6 : vector<1x1x128xf32> to vector<1x128xf32>
    %8 = vector.shape_cast %5 : vector<1x128xf32> to vector<1x1x128xf32>
    tpu.vector_store %arg4[%c0_6, %c0_7, %c0_8], %8 {strides = array<i32>} : memref<1x2x128xf32, #tpu.memory_space<vmem>>, vector<1x1x128xf32>,
    %9 = arith.mulf %2, %2 : vector<16x128xf32>
    %cst_9 = arith.constant dense<0.000000e+00> : vector<128xf32>
    %10 = vector.multi_reduction <add>, %9, %cst_9 [0] : vector<16x128xf32> to vector<128xf32>
    %11 = vector.shape_cast %10 : vector<128xf32> to vector<1x128xf32>
    %c0_10 = arith.constant 0 : index
    %c1 = arith.constant 1 : index
    %c0_11 = arith.constant 0 : index
    %12 = vector.load %arg4[%c0_10, %c1, %c0_11] : memref<1x2x128xf32, #tpu.memory_space<vmem>>, vector<1x1x128xf32>
    %13 = vector.shape_cast %12 : vector<1x1x128xf32> to vector<1x128xf32>
    %14 = vector.shape_cast %11 : vector<1x128xf32> to vector<1x1x128xf32>
    tpu.vector_store %arg4[%c0_10, %c1, %c0_11], %14 {strides = array<i32>} : memref<1x2x128xf32, #tpu.memory_space<vmem>>, vector<1x1x128xf32>,
    return
  }
  func.func @transform_0(%arg0: i32) -> (i32, i32) {
    %c0_i32 = arith.constant 0 : i32
    %c0_i32_0 = arith.constant 0 : i32
    return %arg0, %c0_i32 : i32, i32
  }
  func.func @transform_1(%arg0: i32) -> (i32, i32) {
    %c0_i32 = arith.constant 0 : i32
    %c0_i32_0 = arith.constant 0 : i32
    %c0_i32_1 = arith.constant 0 : i32
    return %c0_i32, %c0_i32_0 : i32, i32
  }
  func.func @transform_2(%arg0: i32) -> (i32, i32) {
    %c0_i32 = arith.constant 0 : i32
    %c0_i32_0 = arith.constant 0 : i32
    return %arg0, %c0_i32 : i32, i32
  }
  func.func @transform_3(%arg0: i32) -> (i32, i32, i32) {
    %c0_i32 = arith.constant 0 : i32
    %c0_i32_0 = arith.constant 0 : i32
    %c0_i32_1 = arith.constant 0 : i32
    return %arg0, %c0_i32, %c0_i32_0 : i32, i32, i32
  }
}

module attributes {stable_mosaic.version = 11 : i64} {
  func.func @scale_act_kernel(%arg0: i32, %arg1: memref<16x128xf32, #tpu.memory_space<vmem>>, %arg2: memref<1x128xf32, #tpu.memory_space<vmem>>, %arg3: memref<1x128xf32, #tpu.memory_space<vmem>>, %arg4: memref<16x128xbf16, #tpu.memory_space<vmem>>) attributes {dimension_semantics = [#tpu.dimension_semantics<parallel>], iteration_bounds = array<i64: 2>, scalar_prefetch = 0 : i64, scratch_operands = 0 : i64, tpu.core_type = #tpu.core_type<tc>, window_params = [{transform_indices = @transform_0, window_bounds = array<i64: 16, 128>}, {pipeline_mode = #tpu.pipeline_mode<synchronous>, transform_indices = @transform_1, window_bounds = array<i64: 1, 128>}, {pipeline_mode = #tpu.pipeline_mode<synchronous>, transform_indices = @transform_2, window_bounds = array<i64: 1, 128>}, {transform_indices = @transform_3, window_bounds = array<i64: 16, 128>}]} {
    %c0 = arith.constant 0 : index
    %c0_0 = arith.constant 0 : index
    %0 = vector.load %arg1[%c0, %c0_0] : memref<16x128xf32, #tpu.memory_space<vmem>>, vector<16x128xf32>
    %c0_1 = arith.constant 0 : index
    %c0_2 = arith.constant 0 : index
    %1 = vector.load %arg2[%c0_1, %c0_2] : memref<1x128xf32, #tpu.memory_space<vmem>>, vector<1x128xf32>
    %2 = vector.broadcast %1 : vector<1x128xf32> to vector<16x128xf32>
    %3 = arith.mulf %0, %2 : vector<16x128xf32>
    %c0_3 = arith.constant 0 : index
    %c0_4 = arith.constant 0 : index
    %4 = vector.load %arg3[%c0_3, %c0_4] : memref<1x128xf32, #tpu.memory_space<vmem>>, vector<1x128xf32>
    %5 = vector.broadcast %4 : vector<1x128xf32> to vector<16x128xf32>
    %6 = arith.addf %3, %5 : vector<16x128xf32>
    %cst = arith.constant 0.000000e+00 : f32
    %7 = vector.broadcast %cst : f32 to vector<16x128xf32>
    %8 = arith.maximumf %6, %7 : vector<16x128xf32>
    %9 = arith.truncf %8 : vector<16x128xf32> to vector<16x128xbf16>
    %c0_5 = arith.constant 0 : index
    %c0_6 = arith.constant 0 : index
    %10 = vector.load %arg4[%c0_5, %c0_6] : memref<16x128xbf16, #tpu.memory_space<vmem>>, vector<16x128xbf16>
    tpu.vector_store %arg4[%c0_5, %c0_6], %9 {strides = array<i32>} : memref<16x128xbf16, #tpu.memory_space<vmem>>, vector<16x128xbf16>,
    return
  }
  func.func @transform_0(%arg0: i32) -> (i32, i32) {
    %c0_i32 = arith.constant 0 : i32
    %c0_i32_0 = arith.constant 0 : i32
    return %arg0, %c0_i32 : i32, i32
  }
  func.func @transform_1(%arg0: i32) -> (i32, i32) {
    %c0_i32 = arith.constant 0 : i32
    %c0_i32_0 = arith.constant 0 : i32
    %c0_i32_1 = arith.constant 0 : i32
    return %c0_i32, %c0_i32_0 : i32, i32
  }
  func.func @transform_2(%arg0: i32) -> (i32, i32) {
    %c0_i32 = arith.constant 0 : i32
    %c0_i32_0 = arith.constant 0 : i32
    %c0_i32_1 = arith.constant 0 : i32
    return %c0_i32, %c0_i32_0 : i32, i32
  }
  func.func @transform_3(%arg0: i32) -> (i32, i32) {
    %c0_i32 = arith.constant 0 : i32
    %c0_i32_0 = arith.constant 0 : i32
    return %arg0, %c0_i32 : i32, i32
  }
}

module attributes {stable_mosaic.version = 11 : i64} {
  func.func @matmul_affine_act_kernel(%arg0: i32, %arg1: memref<64x72xbf16, #tpu.memory_space<vmem>>, %arg2: memref<72x128xbf16, #tpu.memory_space<vmem>>, %arg3: memref<1x128xf32, #tpu.memory_space<vmem>>, %arg4: memref<1x128xf32, #tpu.memory_space<vmem>>, %arg5: memref<64x128xf32, #tpu.memory_space<vmem>>) attributes {dimension_semantics = [#tpu.dimension_semantics<parallel>], iteration_bounds = array<i64: 2>, scalar_prefetch = 0 : i64, scratch_operands = 0 : i64, tpu.core_type = #tpu.core_type<tc>, window_params = [{transform_indices = @transform_0, window_bounds = array<i64: 64, 72>}, {pipeline_mode = #tpu.pipeline_mode<synchronous>, transform_indices = @transform_1, window_bounds = array<i64: 72, 128>}, {pipeline_mode = #tpu.pipeline_mode<synchronous>, transform_indices = @transform_2, window_bounds = array<i64: 1, 128>}, {pipeline_mode = #tpu.pipeline_mode<synchronous>, transform_indices = @transform_3, window_bounds = array<i64: 1, 128>}, {transform_indices = @transform_4, window_bounds = array<i64: 64, 128>}]} {
    %c0 = arith.constant 0 : index
    %c0_0 = arith.constant 0 : index
    %0 = vector.load %arg1[%c0, %c0_0] : memref<64x72xbf16, #tpu.memory_space<vmem>>, vector<64x72xbf16>
    %c0_1 = arith.constant 0 : index
    %c0_2 = arith.constant 0 : index
    %1 = vector.load %arg2[%c0_1, %c0_2] : memref<72x128xbf16, #tpu.memory_space<vmem>>, vector<72x128xbf16>
    %cst = arith.constant dense<0.000000e+00> : vector<64x128xf32>
    %2 = tpu.matmul %0, %1, %cst {dimension_numbers = #tpu.dot_dimension_numbers<[1], [0], [0], [1], [0, 0, 1, 1], [], []>} : vector<64x72xbf16>, vector<72x128xbf16>, vector<64x128xf32> -> vector<64x128xf32>
    %c0_3 = arith.constant 0 : index
    %c0_4 = arith.constant 0 : index
    %3 = vector.load %arg3[%c0_3, %c0_4] : memref<1x128xf32, #tpu.memory_space<vmem>>, vector<1x128xf32>
    %4 = vector.broadcast %3 : vector<1x128xf32> to vector<64x128xf32>
    %5 = arith.mulf %2, %4 : vector<64x128xf32>
    %c0_5 = arith.constant 0 : index
    %c0_6 = arith.constant 0 : index
    %6 = vector.load %arg4[%c0_5, %c0_6] : memref<1x128xf32, #tpu.memory_space<vmem>>, vector<1x128xf32>
    %7 = vector.broadcast %6 : vector<1x128xf32> to vector<64x128xf32>
    %8 = arith.addf %5, %7 : vector<64x128xf32>
    %9 = math.tanh %8 : vector<64x128xf32>
    %c0_7 = arith.constant 0 : index
    %c0_8 = arith.constant 0 : index
    %10 = vector.load %arg5[%c0_7, %c0_8] : memref<64x128xf32, #tpu.memory_space<vmem>>, vector<64x128xf32>
    tpu.vector_store %arg5[%c0_7, %c0_8], %9 {strides = array<i32>} : memref<64x128xf32, #tpu.memory_space<vmem>>, vector<64x128xf32>,
    return
  }
  func.func @transform_0(%arg0: i32) -> (i32, i32) {
    %c0_i32 = arith.constant 0 : i32
    %c0_i32_0 = arith.constant 0 : i32
    return %arg0, %c0_i32 : i32, i32
  }
  func.func @transform_1(%arg0: i32) -> (i32, i32) {
    %c0_i32 = arith.constant 0 : i32
    %c0_i32_0 = arith.constant 0 : i32
    %c0_i32_1 = arith.constant 0 : i32
    return %c0_i32, %c0_i32_0 : i32, i32
  }
  func.func @transform_2(%arg0: i32) -> (i32, i32) {
    %c0_i32 = arith.constant 0 : i32
    %c0_i32_0 = arith.constant 0 : i32
    %c0_i32_1 = arith.constant 0 : i32
    return %c0_i32, %c0_i32_0 : i32, i32
  }
  func.func @transform_3(%arg0: i32) -> (i32, i32) {
    %c0_i32 = arith.constant 0 : i32
    %c0_i32_0 = arith.constant 0 : i32
    %c0_i32_1 = arith.constant 0 : i32
    return %c0_i32, %c0_i32_0 : i32, i32
  }
  func.func @transform_4(%arg0: i32) -> (i32, i32) {
    %c0_i32 = arith.constant 0 : i32
    %c0_i32_0 = arith.constant 0 : i32
    return %arg0, %c0_i32 : i32, i32
  }
}

</mosaic_0001>

<llo_original>
// kernel: generator_forward.11
$region0: #{generator_forward.11}
  #allocation0 [shape = 'u32[]', space=smem, size = 0x4, offset = 0x4, fixed_abs, tag = 'smem constant byte address 0x4 - core index']
  #allocation1 [shape = 'u32[144,128]{1,0:T(1,128)}', space=vmem, size = 0x12000, scoped, tag = 'internal scratch']
  %s0 = inlined_call_operand.vmem [shape: bf16[128,16], index: 0, kind: input, shape index: {}]
  %s1 = inlined_call_operand.vmem [shape: bf16[16,128], index: 1, kind: input, shape index: {}]
  %s2 = inlined_call_operand.vmem [shape: f32[2,2,128], index: 2, kind: output, shape index: {}]
  %s3 = sld [smem:[#allocation0]]
  $region41: #{generator_forward.11} parent=0
    _
  %s5 = ssub.s32 1, %s3
  %s6 = scalar_select 0, %s5, %s3
  loop: start=0, step=1, limit=4
  $region2: #{generator_forward.11} parent=0 // loop_pre_header
    _
  $region3: #{generator_forward.11} parent=0 // loop_header
    %s8 = sphi 0, %s12
    %p9 = scmp.ge.s32.totalorder %s8, 4
    %s18 = sphi 0, %s20
    %s21 = sphi 0, %s18
    %s22 = sphi 0, %s21
    %s38 = sphi 0, %s22
    %s42 = sphi 0, %s42
    %s44 = sphi 0, %s42
    %s45 = sphi 0, %s44
    %s59 = sphi 0, %s45
    %s65 = sphi 0, %s67
    %s68 = sphi 0, %s65
    %s69 = sphi 0, %s68
    %s85 = sphi 0, %s69
  $region4: #{generator_forward.11} parent=0 // loop_header_branch
    %11 = sbr.rel (%p9) target = $region8
  $region5: #{generator_forward.11} parent=0 // loop_body
    %s13 = ssub.s32 %s8, 1
    %s14 = ssub.s32 %s8, 2
    %s15 = sadd.s32 %s8, 1
    %s16 = ssub.s32 %s8, %s15
    %p17 = scmp.eq.s32.totalorder %s16, 0
    %s19 = sadd.s32 %s18, 1
    %s20 = scalar_select %p17, %s18, %s19
    %p23 = pneg %p17
    %p24 = scmp.eq.s32.totalorder %s8, 1
    %p25 = por %p23, %p24
    %p26 = scmp.ne.s32.totalorder %s18, %s21
    %p27 = scmp.eq.s32.totalorder %s8, 0
    %p28 = por %p26, %p27
    %p29 = scmp.ne.s32.totalorder %s18, %s21
    %p30 = scmp.eq.s32.totalorder %s13, 1
    %p31 = por %p29, %p30
    %p32 = scmp.ne.s32.totalorder %s21, %s22
    %p33 = scmp.eq.s32.totalorder %s13, 0
    %p34 = por %p32, %p33
    %p35 = scmp.ne.s32.totalorder %s21, %s22
    %p36 = scmp.eq.s32.totalorder %s14, 1
    %p37 = por %p35, %p36
    %p39 = scmp.ne.s32.totalorder %s22, %s38
    %p40 = scmp.eq.s32.totalorder %s14, 0
    %p41 = por %p39, %p40
    %s43 = sadd.s32 %s42, 1
    %p46 = scmp.eq.s32.totalorder %s8, 1
    %p47 = scmp.ne.s32.totalorder %s42, %s44
    %p48 = scmp.eq.s32.totalorder %s8, 0
    %p49 = por %p47, %p48
    %p50 = scmp.ne.s32.totalorder %s42, %s44
    %p51 = scmp.eq.s32.totalorder %s13, 1
    %p52 = por %p50, %p51
    %p53 = scmp.ne.s32.totalorder %s44, %s45
    %p54 = scmp.eq.s32.totalorder %s13, 0
    %p55 = por %p53, %p54
    %p56 = scmp.ne.s32.totalorder %s44, %s45
    %p57 = scmp.eq.s32.totalorder %s14, 1
    %p58 = por %p56, %p57
    %p60 = scmp.ne.s32.totalorder %s45, %s59
    %p61 = scmp.eq.s32.totalorder %s14, 0
    %p62 = por %p60, %p61
    %s63 = ssub.s32 %s8, %s15
    %p64 = scmp.eq.s32.totalorder %s63, 0
    %s66 = sadd.s32 %s65, 1
    %s67 = scalar_select %p64, %s65, %s66
    %p70 = pneg %p64
    %p71 = scmp.eq.s32.totalorder %s8, 1
    %p72 = por %p70, %p71
    %p73 = scmp.ne.s32.totalorder %s65, %s68
    %p74 = scmp.eq.s32.totalorder %s8, 0
    %p75 = por %p73, %p74
    %p76 = scmp.ne.s32.totalorder %s65, %s68
    %p77 = scmp.eq.s32.totalorder %s13, 1
    %p78 = por %p76, %p77
    %p79 = scmp.ne.s32.totalorder %s68, %s69
    %p80 = scmp.eq.s32.totalorder %s13, 0
    %p81 = por %p79, %p80
    %p82 = scmp.ne.s32.totalorder %s68, %s69
    %p83 = scmp.eq.s32.totalorder %s14, 1
    %p84 = por %p82, %p83
    %p86 = scmp.ne.s32.totalorder %s69, %s85
    %p87 = scmp.eq.s32.totalorder %s14, 0
    %p88 = por %p86, %p87
    %p89 = scmp.le.s32.totalorder 1, %s8
    %p90 = scmp.lt.s32.totalorder %s8, 3
    %p91 = pnand %p89, %p90
    %p92 = pneg %p91
    // Predicated region
    $region9: #{generator_forward.11} parent=5 // pred_check
      _
    $region10: #{generator_forward.11} parent=5 // pred_check_branch
      %94 = sbr.rel (%p91) target = $region12
    $region11: #{generator_forward.11} parent=5 // pred_region
      %s95 = ssub.s32 %s8, 1
      // Predicated region
      $region13: #{generator_forward.11} parent=11 // pred_check
        %p96 = pneg %p55
      $region14: #{generator_forward.11} parent=11 // pred_check_branch
        %98 = sbr.rel (%p96) target = $region16
      $region15: #{generator_forward.11} parent=11 // pred_region
        _
      $region16: #{generator_forward.11} parent=11 // pred_fallthru
        _
    $region12: #{generator_forward.11} parent=5 // pred_fallthru
      _
    %p99 = scmp.lt.s32.totalorder %s8, 2
    // Predicated region
    $region17: #{generator_forward.11} parent=5 // pred_check
      %p100 = pneg %p99
    $region18: #{generator_forward.11} parent=5 // pred_check_branch
      %102 = sbr.rel (%p100) target = $region20
    $region19: #{generator_forward.11} parent=5 // pred_region
      // Predicated region
      $region21: #{generator_forward.11} parent=19 // pred_check
        %p103 = pneg %p28
      $region22: #{generator_forward.11} parent=19 // pred_check_branch
        %105 = sbr.rel (%p103) target = $region24
      $region23: #{generator_forward.11} parent=19 // pred_region
        %s106 = smul.u32 8, %s8
        %p107 = scmp.lt.s32.totalorder %s106, 15
        %s108 = scalar_select %p107, %s106, 15
        %s109 = smul.addr %s108, 4
        %s110 = scalar_lea.vmem %s0, %s109
        %s111 = smul.u32 8, %s8
      $region24: #{generator_forward.11} parent=19 // pred_fallthru
        _
    $region20: #{generator_forward.11} parent=5 // pred_fallthru
      _
    %p112 = scmp.le.s32.totalorder 1, %s8
    %p113 = scmp.lt.s32.totalorder %s8, 3
    %p114 = pnand %p112, %p113
    %p115 = pneg %p114
    // Predicated region
    $region25: #{generator_forward.11} parent=5 // pred_check
      _
    $region26: #{generator_forward.11} parent=5 // pred_check_branch
      %117 = sbr.rel (%p114) target = $region28
    $region27: #{generator_forward.11} parent=5 // pred_region
      %s118 = ssub.s32 %s8, 1
      %s119 = smul.u32 8, %s13
      %p120 = scmp.lt.s32.totalorder %s119, 15
      %s121 = scalar_select %p120, %s119, 15
      %s122 = smul.addr %s121, 4
      %s123 = scalar_lea.vmem %s0, %s122
      %p124 = pneg %p34
      %p125 = pneg %p31
      %p126 = pneg %p55
      %p127 = pneg %p52
      %p128 = pneg %p81
      %p129 = pneg %p78
      %p130 = scmp.lt.s32.totalorder %s13, 1
      %s131 = scalar_select %p130, %s13, 1
      %s132 = smul.addr %s131, 2
      %s133 = scalar_lea.vmem %s2, %s132
      %s134 = smul.u32 8, %s13
      %p135 = scmp.lt.s32.totalorder %s134, 15
      %s136 = scalar_select %p135, %s134, 15
      %s137 = smul.addr %s136, 4
      %s138 = scalar_lea.vmem %s0, %s137
      %s139 = smul.u32 8, %s13
      %p140 = scmp.lt.s32.totalorder %s13, 1
      %s141 = scalar_select %p140, %s13, 1
      %s142 = smul.addr %s141, 2
      %s143 = scalar_lea.vmem %s2, %s142
      %v145 = vld [vmem:[%s138] sm:$0xf]
      %v146 = vld [vmem:[%s138 + $0x4] sm:$0xf]
      %v147 = vld [vmem:[%s138 + $0x8] sm:$0xf]
      %v148 = vld [vmem:[%s138 + $0xc] sm:$0xf]
      %v149 = vld [vmem:[%s138 + $0x10] sm:$0xf]
      %v150 = vld [vmem:[%s138 + $0x14] sm:$0xf]
      %v151 = vld [vmem:[%s138 + $0x18] sm:$0xf]
      %v152 = vld [vmem:[%s138 + $0x1c] sm:$0xf]
      %v153 = vld [vmem:[%s1] sm:$0xf]
      %v154 = vld [vmem:[%s1 + $0x4] sm:$0xf]
      %v163 = vunpack.c.l.b16 %v145
      %v164 = vunpack.c.l.b16 %v146
      %v165 = vunpack.c.l.b16 %v147
      %v166 = vunpack.c.l.b16 %v148
      %v167 = vunpack.c.l.b16 %v149
      %v168 = vunpack.c.l.b16 %v150
      %v169 = vunpack.c.l.b16 %v151
      %v170 = vunpack.c.l.b16 %v152
      %v171 = vpack.c.b16 %v164, %v163
      %v172 = vpack.c.b16 %v166, %v165
      %v173 = vpack.c.b16 %v168, %v167
      %v174 = vpack.c.b16 %v170, %v169
      %v177 = vunpack.c.l.b16 %v153
      %v178 = vunpack.c.l.b16 %v154
      %v179 = vpack.c.b16 %v178, %v177
      %vm181 = vcmask 130048
      %v183 = vsel %vm181, %v171, 0
      %v186 = vsel %vm181, %v172, 0
      %v189 = vsel %vm181, %v173, 0
      %v192 = vsel %vm181, %v174, 0
      %194 = vmatprep.subr.bf16.mxu0 0
      %195 = vmatpush1.bf16.msra.mxu0 %v179
      %196 = vmatprep.subr.bf16.mxu0 0
      %197 = vmatpush1.bf16.msra.mxu0 0
      %198 = vmatprep.subr.bf16.mxu0 0
      %199 = vmatpush1.bf16.msra.mxu0 0
      %200 = vmatprep.subr.bf16.mxu0 0
      %201 = vmatpush1.bf16.msra.mxu0 0
      %202 = vmatprep.subr.bf16.mxu0 0
      %203 = vmatpush1.bf16.msra.mxu0 0
      %204 = vmatprep.subr.bf16.mxu0 0
      %205 = vmatpush1.bf16.msra.mxu0 0
      %206 = vmatprep.subr.bf16.mxu0 0
      %207 = vmatpush1.bf16.msra.mxu0 0
      %208 = vmatprep.subr.bf16.mxu0 0
      %209 = vmatpush1.bf16.msra.mxu0 0
      %210 = vmatprep.subr.bf16.mxu0 0
      %211 = vmatpush1.bf16.msra.mxu0 0
      %212 = vmatprep.subr.bf16.mxu0 0
      %213 = vmatpush1.bf16.msra.mxu0 0
      %214 = vmatprep.subr.bf16.mxu0 0
      %215 = vmatpush1.bf16.msra.mxu0 0
      %216 = vmatprep.subr.bf16.mxu0 0
      %217 = vmatpush1.bf16.msra.mxu0 0
      %218 = vmatprep.subr.bf16.mxu0 0
      %219 = vmatpush1.bf16.msra.mxu0 0
      %220 = vmatprep.subr.bf16.mxu0 0
      %221 = vmatpush1.bf16.msra.mxu0 0
      %222 = vmatprep.subr.bf16.mxu0 0
      %223 = vmatpush1.bf16.msra.mxu0 0
      %224 = vmatprep.subr.bf16.mxu0 0
      %225 = vmatpush1.bf16.msra.mxu0 0
      %226 = vmatprep.mubr.bf16.mxu0 0
      %227 = vmatmul.mubr.bf16.gmra.mrb[0].mxu0 %v183
      %v228 = vpop.f32.mrb[0].mxu0
      %v229 = vadd.f32 0.0, %v228
      %v230 = vpop.f32.mrb[0].mxu0
      %v231 = vpop.f32.mrb[0].mxu0
      %v232 = vadd.f32 0.0, %v231
      %v233 = vpop.f32.mrb[0].mxu0
      %234 = vmatprep.mubr.bf16.mxu0 0
      %235 = vmatmul.mubr.bf16.gmra.mrb[0].mxu0 %v186
      %v236 = vpop.f32.mrb[0].mxu0
      %v237 = vadd.f32 0.0, %v236
      %v238 = vpop.f32.mrb[0].mxu0
      %v239 = vpop.f32.mrb[0].mxu0
      %v240 = vadd.f32 0.0, %v239
      %v241 = vpop.f32.mrb[0].mxu0
      %242 = vmatprep.mubr.bf16.mxu0 0
      %243 = vmatmul.mubr.bf16.gmra.mrb[0].mxu0 %v189
      %v244 = vpop.f32.mrb[0].mxu0
      %v245 = vadd.f32 0.0, %v244
      %v246 = vpop.f32.mrb[0].mxu0
      %v247 = vpop.f32.mrb[0].mxu0
      %v248 = vadd.f32 0.0, %v247
      %v249 = vpop.f32.mrb[0].mxu0
      %250 = vmatprep.mubr.bf16.mxu0 0
      %251 = vmatmul.mubr.bf16.gmra.mrb[0].mxu0 %v192
      %v252 = vpop.f32.mrb[0].mxu0
      %v253 = vadd.f32 0.0, %v252
      %v254 = vpop.f32.mrb[0].mxu0
      %v255 = vpop.f32.mrb[0].mxu0
      %v256 = vadd.f32 0.0, %v255
      %v257 = vpop.f32.mrb[0].mxu0
      %258 = vdwg.mxu0
      %v259 = vadd.f32 %v229, %v232
      %v260 = vadd.f32 %v259, %v237
      %v261 = vadd.f32 %v260, %v240
      %v262 = vadd.f32 %v261, %v245
      %v263 = vadd.f32 %v262, %v248
      %v264 = vadd.f32 %v263, %v253
      %v265 = vadd.f32 %v264, %v256
      %v266 = vrot.slane %v265, 4
      %v267 = vadd.f32 %v265, %v266
      %v268 = vrot.slane %v267, 2
      %v269 = vadd.f32 %v267, %v268
      %v270 = vrot.slane %v269, 1
      %v271 = vadd.f32 %v269, %v270
      %272 = vst [vmem:[%s143] sm:$0x1] %v271
      %v273 = vmul.f32 %v229, %v229
      %v274 = vmul.f32 %v232, %v232
      %v275 = vmul.f32 %v237, %v237
      %v276 = vmul.f32 %v240, %v240
      %v277 = vmul.f32 %v245, %v245
      %v278 = vmul.f32 %v248, %v248
      %v279 = vmul.f32 %v253, %v253
      %v280 = vmul.f32 %v256, %v256
      %v281 = vadd.f32 %v273, %v274
      %v282 = vadd.f32 %v281, %v275
      %v283 = vadd.f32 %v282, %v276
      %v284 = vadd.f32 %v283, %v277
      %v285 = vadd.f32 %v284, %v278
      %v286 = vadd.f32 %v285, %v279
      %v287 = vadd.f32 %v286, %v280
      %v288 = vrot.slane %v287, 4
      %v289 = vadd.f32 %v287, %v288
      %v290 = vrot.slane %v289, 2
      %v291 = vadd.f32 %v289, %v290
      %v292 = vrot.slane %v291, 1
      %v293 = vadd.f32 %v291, %v292
      %294 = vst [vmem:[%s143 + $0x1] sm:$0x1] %v293
      %p295 = scmp.lt.s32.totalorder %s13, 1
      %s296 = scalar_select %p295, %s13, 1
      %s297 = smul.addr %s296, 2
      %s298 = scalar_lea.vmem %s2, %s297
      // Predicated region
      $region29: #{generator_forward.11} parent=27 // pred_check
        %p299 = pneg %p78
      $region30: #{generator_forward.11} parent=27 // pred_check_branch
        %301 = sbr.rel (%p299) target = $region32
      $region31: #{generator_forward.11} parent=27 // pred_region
        _
      $region32: #{generator_forward.11} parent=27 // pred_fallthru
        _
    $region28: #{generator_forward.11} parent=5 // pred_fallthru
      _
    %p302 = scmp.le.s32.totalorder 2, %s8
    // Predicated region
    $region33: #{generator_forward.11} parent=5 // pred_check
      %p303 = pneg %p302
    $region34: #{generator_forward.11} parent=5 // pred_check_branch
      %305 = sbr.rel (%p303) target = $region36
    $region35: #{generator_forward.11} parent=5 // pred_region
      %s306 = ssub.s32 %s8, 2
      // Predicated region
      $region37: #{generator_forward.11} parent=35 // pred_check
        %p307 = pneg %p84
      $region38: #{generator_forward.11} parent=35 // pred_check_branch
        %309 = sbr.rel (%p307) target = $region40
      $region39: #{generator_forward.11} parent=35 // pred_region
        %p310 = scmp.lt.s32.totalorder %s14, 1
        %s311 = scalar_select %p310, %s14, 1
        %s312 = smul.addr %s311, 2
        %s313 = scalar_lea.vmem %s2, %s312
      $region40: #{generator_forward.11} parent=35 // pred_fallthru
        _
    $region36: #{generator_forward.11} parent=5 // pred_fallthru
      _
  $region6: #{generator_forward.11} parent=0 // loop_footer
    %s12 = sadd.s32 1, %s8
  $region7: #{generator_forward.11} parent=0 // loop_footer_branch
    %7 = sbr.rel target = $region3
  $region8: #{generator_forward.11} parent=0 // loop_exit
    _

// kernel: generator_forward.12
$region0: #{generator_forward.12}
  #allocation0 [shape = 'u32[]', space=smem, size = 0x4, offset = 0x4, fixed_abs, tag = 'smem constant byte address 0x4 - core index']
  #allocation1 [shape = 'u32[144,128]{1,0:T(1,128)}', space=vmem, size = 0x12000, scoped, tag = 'internal scratch']
  %s0 = inlined_call_operand.vmem [shape: bf16[128,16], index: 0, kind: input, shape index: {}]
  %s1 = inlined_call_operand.vmem [shape: bf16[16,128], index: 1, kind: input, shape index: {}]
  %s2 = inlined_call_operand.vmem [shape: f32[1,128], index: 2, kind: input, shape index: {}]
  %s3 = inlined_call_operand.vmem [shape: f32[1,128], index: 3, kind: input, shape index: {}]
  %s4 = inlined_call_operand.vmem [shape: bf16[128,128], index: 4, kind: output, shape index: {}]
  %s5 = sld [smem:[#allocation0]]
  $region49: #{generator_forward.12} parent=0
    _
  %s7 = ssub.s32 1, %s5
  %s8 = scalar_select 0, %s7, %s5
  loop: start=0, step=1, limit=4
  $region2: #{generator_forward.12} parent=0 // loop_pre_header
    _
  $region3: #{generator_forward.12} parent=0 // loop_header
    %s10 = sphi 0, %s14
    %p11 = scmp.ge.s32.totalorder %s10, 4
    %s20 = sphi 0, %s22
    %s23 = sphi 0, %s20
    %s24 = sphi 0, %s23
    %s40 = sphi 0, %s24
    %s44 = sphi 0, %s44
    %s46 = sphi 0, %s44
    %s47 = sphi 0, %s46
    %s61 = sphi 0, %s47
    %s65 = sphi 0, %s65
    %s67 = sphi 0, %s65
    %s68 = sphi 0, %s67
    %s82 = sphi 0, %s68
    %s86 = sphi 0, %s86
    %s88 = sphi 0, %s86
    %s89 = sphi 0, %s88
    %s103 = sphi 0, %s89
    %s109 = sphi 0, %s111
    %s112 = sphi 0, %s109
    %s113 = sphi 0, %s112
    %s129 = sphi 0, %s113
  $region4: #{generator_forward.12} parent=0 // loop_header_branch
    %13 = sbr.rel (%p11) target = $region8
  $region5: #{generator_forward.12} parent=0 // loop_body
    %s15 = ssub.s32 %s10, 1
    %s16 = ssub.s32 %s10, 2
    %s17 = sadd.s32 %s10, 1
    %s18 = ssub.s32 %s10, %s17
    %p19 = scmp.eq.s32.totalorder %s18, 0
    %s21 = sadd.s32 %s20, 1
    %s22 = scalar_select %p19, %s20, %s21
    %p25 = pneg %p19
    %p26 = scmp.eq.s32.totalorder %s10, 1
    %p27 = por %p25, %p26
    %p28 = scmp.ne.s32.totalorder %s20, %s23
    %p29 = scmp.eq.s32.totalorder %s10, 0
    %p30 = por %p28, %p29
    %p31 = scmp.ne.s32.totalorder %s20, %s23
    %p32 = scmp.eq.s32.totalorder %s15, 1
    %p33 = por %p31, %p32
    %p34 = scmp.ne.s32.totalorder %s23, %s24
    %p35 = scmp.eq.s32.totalorder %s15, 0
    %p36 = por %p34, %p35
    %p37 = scmp.ne.s32.totalorder %s23, %s24
    %p38 = scmp.eq.s32.totalorder %s16, 1
    %p39 = por %p37, %p38
    %p41 = scmp.ne.s32.totalorder %s24, %s40
    %p42 = scmp.eq.s32.totalorder %s16, 0
    %p43 = por %p41, %p42
    %s45 = sadd.s32 %s44, 1
    %p48 = scmp.eq.s32.totalorder %s10, 1
    %p49 = scmp.ne.s32.totalorder %s44, %s46
    %p50 = scmp.eq.s32.totalorder %s10, 0
    %p51 = por %p49, %p50
    %p52 = scmp.ne.s32.totalorder %s44, %s46
    %p53 = scmp.eq.s32.totalorder %s15, 1
    %p54 = por %p52, %p53
    %p55 = scmp.ne.s32.totalorder %s46, %s47
    %p56 = scmp.eq.s32.totalorder %s15, 0
    %p57 = por %p55, %p56
    %p58 = scmp.ne.s32.totalorder %s46, %s47
    %p59 = scmp.eq.s32.totalorder %s16, 1
    %p60 = por %p58, %p59
    %p62 = scmp.ne.s32.totalorder %s47, %s61
    %p63 = scmp.eq.s32.totalorder %s16, 0
    %p64 = por %p62, %p63
    %s66 = sadd.s32 %s65, 1
    %p69 = scmp.eq.s32.totalorder %s10, 1
    %p70 = scmp.ne.s32.totalorder %s65, %s67
    %p71 = scmp.eq.s32.totalorder %s10, 0
    %p72 = por %p70, %p71
    %p73 = scmp.ne.s32.totalorder %s65, %s67
    %p74 = scmp.eq.s32.totalorder %s15, 1
    %p75 = por %p73, %p74
    %p76 = scmp.ne.s32.totalorder %s67, %s68
    %p77 = scmp.eq.s32.totalorder %s15, 0
    %p78 = por %p76, %p77
    %p79 = scmp.ne.s32.totalorder %s67, %s68
    %p80 = scmp.eq.s32.totalorder %s16, 1
    %p81 = por %p79, %p80
    %p83 = scmp.ne.s32.totalorder %s68, %s82
    %p84 = scmp.eq.s32.totalorder %s16, 0
    %p85 = por %p83, %p84
    %s87 = sadd.s32 %s86, 1
    %p90 = scmp.eq.s32.totalorder %s10, 1
    %p91 = scmp.ne.s32.totalorder %s86, %s88
    %p92 = scmp.eq.s32.totalorder %s10, 0
    %p93 = por %p91, %p92
    %p94 = scmp.ne.s32.totalorder %s86, %s88
    %p95 = scmp.eq.s32.totalorder %s15, 1
    %p96 = por %p94, %p95
    %p97 = scmp.ne.s32.totalorder %s88, %s89
    %p98 = scmp.eq.s32.totalorder %s15, 0
    %p99 = por %p97, %p98
    %p100 = scmp.ne.s32.totalorder %s88, %s89
    %p101 = scmp.eq.s32.totalorder %s16, 1
    %p102 = por %p100, %p101
    %p104 = scmp.ne.s32.totalorder %s89, %s103
    %p105 = scmp.eq.s32.totalorder %s16, 0
    %p106 = por %p104, %p105
    %s107 = ssub.s32 %s10, %s17
    %p108 = scmp.eq.s32.totalorder %s107, 0
    %s110 = sadd.s32 %s109, 1
    %s111 = scalar_select %p108, %s109, %s110
    %p114 = pneg %p108
    %p115 = scmp.eq.s32.totalorder %s10, 1
    %p116 = por %p114, %p115
    %p117 = scmp.ne.s32.totalorder %s109, %s112
    %p118 = scmp.eq.s32.totalorder %s10, 0
    %p119 = por %p117, %p118
    %p120 = scmp.ne.s32.totalorder %s109, %s112
    %p121 = scmp.eq.s32.totalorder %s15, 1
    %p122 = por %p120, %p121
    %p123 = scmp.ne.s32.totalorder %s112, %s113
    %p124 = scmp.eq.s32.totalorder %s15, 0
    %p125 = por %p123, %p124
    %p126 = scmp.ne.s32.totalorder %s112, %s113
    %p127 = scmp.eq.s32.totalorder %s16, 1
    %p128 = por %p126, %p127
    %p130 = scmp.ne.s32.totalorder %s113, %s129
    %p131 = scmp.eq.s32.totalorder %s16, 0
    %p132 = por %p130, %p131
    %p133 = scmp.le.s32.totalorder 1, %s10
    %p134 = scmp.lt.s32.totalorder %s10, 3
    %p135 = pnand %p133, %p134
    %p136 = pneg %p135
    // Predicated region
    $region9: #{generator_forward.12} parent=5 // pred_check
      _
    $region10: #{generator_forward.12} parent=5 // pred_check_branch
      %138 = sbr.rel (%p135) target = $region12
    $region11: #{generator_forward.12} parent=5 // pred_region
      %s139 = ssub.s32 %s10, 1
      // Predicated region
      $region13: #{generator_forward.12} parent=11 // pred_check
        %p140 = pneg %p57
      $region14: #{generator_forward.12} parent=11 // pred_check_branch
        %142 = sbr.rel (%p140) target = $region16
      $region15: #{generator_forward.12} parent=11 // pred_region
        _
      $region16: #{generator_forward.12} parent=11 // pred_fallthru
        _
      // Predicated region
      $region17: #{generator_forward.12} parent=11 // pred_check
        %p143 = pneg %p78
      $region18: #{generator_forward.12} parent=11 // pred_check_branch
        %145 = sbr.rel (%p143) target = $region20
      $region19: #{generator_forward.12} parent=11 // pred_region
        _
      $region20: #{generator_forward.12} parent=11 // pred_fallthru
        _
      // Predicated region
      $region21: #{generator_forward.12} parent=11 // pred_check
        %p146 = pneg %p99
      $region22: #{generator_forward.12} parent=11 // pred_check_branch
        %148 = sbr.rel (%p146) target = $region24
      $region23: #{generator_forward.12} parent=11 // pred_region
        _
      $region24: #{generator_forward.12} parent=11 // pred_fallthru
        _
    $region12: #{generator_forward.12} parent=5 // pred_fallthru
      _
    %p149 = scmp.lt.s32.totalorder %s10, 2
    // Predicated region
    $region25: #{generator_forward.12} parent=5 // pred_check
      %p150 = pneg %p149
    $region26: #{generator_forward.12} parent=5 // pred_check_branch
      %152 = sbr.rel (%p150) target = $region28
    $region27: #{generator_forward.12} parent=5 // pred_region
      // Predicated region
      $region29: #{generator_forward.12} parent=27 // pred_check
        %p153 = pneg %p30
      $region30: #{generator_forward.12} parent=27 // pred_check_branch
        %155 = sbr.rel (%p153) target = $region32
      $region31: #{generator_forward.12} parent=27 // pred_region
        %s156 = smul.u32 8, %s10
        %p157 = scmp.lt.s32.totalorder %s156, 15
        %s158 = scalar_select %p157, %s156, 15
        %s159 = smul.addr %s158, 4
        %s160 = scalar_lea.vmem %s0, %s159
        %s161 = smul.u32 8, %s10
      $region32: #{generator_forward.12} parent=27 // pred_fallthru
        _
    $region28: #{generator_forward.12} parent=5 // pred_fallthru
      _
    %p162 = scmp.le.s32.totalorder 1, %s10
    %p163 = scmp.lt.s32.totalorder %s10, 3
    %p164 = pnand %p162, %p163
    %p165 = pneg %p164
    // Predicated region
    $region33: #{generator_forward.12} parent=5 // pred_check
      _
    $region34: #{generator_forward.12} parent=5 // pred_check_branch
      %167 = sbr.rel (%p164) target = $region36
    $region35: #{generator_forward.12} parent=5 // pred_region
      %s168 = ssub.s32 %s10, 1
      %s169 = smul.u32 8, %s15
      %p170 = scmp.lt.s32.totalorder %s169, 15
      %s171 = scalar_select %p170, %s169, 15
      %s172 = smul.addr %s171, 4
      %s173 = scalar_lea.vmem %s0, %s172
      %p174 = pneg %p36
      %p175 = pneg %p33
      %p176 = pneg %p57
      %p177 = pneg %p54
      %p178 = pneg %p78
      %p179 = pneg %p75
      %p180 = pneg %p99
      %p181 = pneg %p96
      %p182 = pneg %p125
      %p183 = pneg %p122
      %s184 = smul.u32 8, %s15
      %p185 = scmp.lt.s32.totalorder %s184, 15
      %s186 = scalar_select %p185, %s184, 15
      %s187 = smul.addr %s186, 4
      %s188 = scalar_lea.vmem %s4, %s187
      %s189 = smul.u32 8, %s15
      %p190 = scmp.lt.s32.totalorder %s189, 15
      %s191 = scalar_select %p190, %s189, 15
      %s192 = smul.addr %s191, 4
      %s193 = scalar_lea.vmem %s0, %s192
      %s194 = smul.u32 8, %s15
      %s195 = smul.u32 8, %s15
      %p196 = scmp.lt.s32.totalorder %s195, 15
      %s197 = scalar_select %p196, %s195, 15
      %s198 = smul.addr %s197, 4
      %s199 = scalar_lea.vmem %s4, %s198
      %s200 = smul.u32 8, %s15
      %v202 = vld [vmem:[%s193] sm:$0xf]
      %v203 = vld [vmem:[%s193 + $0x4] sm:$0xf]
      %v204 = vld [vmem:[%s193 + $0x8] sm:$0xf]
      %v205 = vld [vmem:[%s193 + $0xc] sm:$0xf]
      %v206 = vld [vmem:[%s193 + $0x10] sm:$0xf]
      %v207 = vld [vmem:[%s193 + $0x14] sm:$0xf]
      %v208 = vld [vmem:[%s193 + $0x18] sm:$0xf]
      %v209 = vld [vmem:[%s193 + $0x1c] sm:$0xf]
      %v210 = vld [vmem:[%s1] sm:$0xf]
      %v211 = vld [vmem:[%s1 + $0x4] sm:$0xf]
      %v220 = vunpack.c.l.b16 %v202
      %v221 = vunpack.c.l.b16 %v203
      %v222 = vunpack.c.l.b16 %v204
      %v223 = vunpack.c.l.b16 %v205
      %v224 = vunpack.c.l.b16 %v206
      %v225 = vunpack.c.l.b16 %v207
      %v226 = vunpack.c.l.b16 %v208
      %v227 = vunpack.c.l.b16 %v209
      %v228 = vpack.c.b16 %v221, %v220
      %v229 = vpack.c.b16 %v223, %v222
      %v230 = vpack.c.b16 %v225, %v224
      %v231 = vpack.c.b16 %v227, %v226
      %v234 = vunpack.c.l.b16 %v210
      %v235 = vunpack.c.l.b16 %v211
      %v236 = vpack.c.b16 %v235, %v234
      %vm238 = vcmask 130048
      %v240 = vsel %vm238, %v228, 0
      %v243 = vsel %vm238, %v229, 0
      %v246 = vsel %vm238, %v230, 0
      %v249 = vsel %vm238, %v231, 0
      %251 = vmatprep.subr.bf16.mxu0 0
      %252 = vmatpush1.bf16.msra.mxu0 %v236
      %253 = vmatprep.subr.bf16.mxu0 0
      %254 = vmatpush1.bf16.msra.mxu0 0
      %255 = vmatprep.subr.bf16.mxu0 0
      %256 = vmatpush1.bf16.msra.mxu0 0
      %257 = vmatprep.subr.bf16.mxu0 0
      %258 = vmatpush1.bf16.msra.mxu0 0
      %259 = vmatprep.subr.bf16.mxu0 0
      %260 = vmatpush1.bf16.msra.mxu0 0
      %261 = vmatprep.subr.bf16.mxu0 0
      %262 = vmatpush1.bf16.msra.mxu0 0
      %263 = vmatprep.subr.bf16.mxu0 0
      %264 = vmatpush1.bf16.msra.mxu0 0
      %265 = vmatprep.subr.bf16.mxu0 0
      %266 = vmatpush1.bf16.msra.mxu0 0
      %267 = vmatprep.subr.bf16.mxu0 0
      %268 = vmatpush1.bf16.msra.mxu0 0
      %269 = vmatprep.subr.bf16.mxu0 0
      %270 = vmatpush1.bf16.msra.mxu0 0
      %271 = vmatprep.subr.bf16.mxu0 0
      %272 = vmatpush1.bf16.msra.mxu0 0
      %273 = vmatprep.subr.bf16.mxu0 0
      %274 = vmatpush1.bf16.msra.mxu0 0
      %275 = vmatprep.subr.bf16.mxu0 0
      %276 = vmatpush1.bf16.msra.mxu0 0
      %277 = vmatprep.subr.bf16.mxu0 0
      %278 = vmatpush1.bf16.msra.mxu0 0
      %279 = vmatprep.subr.bf16.mxu0 0
      %280 = vmatpush1.bf16.msra.mxu0 0
      %281 = vmatprep.subr.bf16.mxu0 0
      %282 = vmatpush1.bf16.msra.mxu0 0
      %283 = vmatprep.mubr.bf16.mxu0 0
      %284 = vmatmul.mubr.bf16.gmra.mrb[0].mxu0 %v240
      %v285 = vpop.f32.mrb[0].mxu0
      %v286 = vadd.f32 0.0, %v285
      %v287 = vpop.f32.mrb[0].mxu0
      %v288 = vpop.f32.mrb[0].mxu0
      %v289 = vadd.f32 0.0, %v288
      %v290 = vpop.f32.mrb[0].mxu0
      %291 = vmatprep.mubr.bf16.mxu0 0
      %292 = vmatmul.mubr.bf16.gmra.mrb[0].mxu0 %v243
      %v293 = vpop.f32.mrb[0].mxu0
      %v294 = vadd.f32 0.0, %v293
      %v295 = vpop.f32.mrb[0].mxu0
      %v296 = vpop.f32.mrb[0].mxu0
      %v297 = vadd.f32 0.0, %v296
      %v298 = vpop.f32.mrb[0].mxu0
      %299 = vmatprep.mubr.bf16.mxu0 0
      %300 = vmatmul.mubr.bf16.gmra.mrb[0].mxu0 %v246
      %v301 = vpop.f32.mrb[0].mxu0
      %v302 = vadd.f32 0.0, %v301
      %v303 = vpop.f32.mrb[0].mxu0
      %v304 = vpop.f32.mrb[0].mxu0
      %v305 = vadd.f32 0.0, %v304
      %v306 = vpop.f32.mrb[0].mxu0
      %307 = vmatprep.mubr.bf16.mxu0 0
      %308 = vmatmul.mubr.bf16.gmra.mrb[0].mxu0 %v249
      %v309 = vpop.f32.mrb[0].mxu0
      %v310 = vadd.f32 0.0, %v309
      %v311 = vpop.f32.mrb[0].mxu0
      %v312 = vpop.f32.mrb[0].mxu0
      %v313 = vadd.f32 0.0, %v312
      %v314 = vpop.f32.mrb[0].mxu0
      %315 = vdwg.mxu0
      %v316 = vld [vmem:[%s2] sm:$0x1]
      %v318 = vlaneseq
      %v319 = vshrl.u32 %v318, 7
      %v320 = vsub.s32 0, %v319
      %v321 = vrot.slane %v316, %v320
      %v323 = vmul.f32 %v286, %v321
      %v324 = vmul.f32 %v289, %v321
      %v325 = vmul.f32 %v294, %v321
      %v326 = vmul.f32 %v297, %v321
      %v327 = vmul.f32 %v302, %v321
      %v328 = vmul.f32 %v305, %v321
      %v329 = vmul.f32 %v310, %v321
      %v330 = vmul.f32 %v313, %v321
      %v331 = vld [vmem:[%s3] sm:$0x1]
      %v333 = vlaneseq
      %v334 = vshrl.u32 %v333, 7
      %v335 = vsub.s32 0, %v334
      %v336 = vrot.slane %v331, %v335
      %v338 = vadd.f32 %v323, %v336
      %v339 = vadd.f32 %v324, %v336
      %v340 = vadd.f32 %v325, %v336
      %v341 = vadd.f32 %v326, %v336
      %v342 = vadd.f32 %v327, %v336
      %v343 = vadd.f32 %v328, %v336
      %v344 = vadd.f32 %v329, %v336
      %v345 = vadd.f32 %v330, %v336
      %vm346 = vcmp.ge.f32.partialorder %v338, 0.0
      %vm347 = vcmp.ge.f32.partialorder %v339, 0.0
      %vm348 = vcmp.ge.f32.partialorder %v340, 0.0
      %vm349 = vcmp.ge.f32.partialorder %v341, 0.0
      %vm350 = vcmp.ge.f32.partialorder %v342, 0.0
      %vm351 = vcmp.ge.f32.partialorder %v343, 0.0
      %vm352 = vcmp.ge.f32.partialorder %v344, 0.0
      %vm353 = vcmp.ge.f32.partialorder %v345, 0.0
      %v354 = vmul.f32 %v338, 0.2
      %v355 = vmul.f32 %v339, 0.2
      %v356 = vmul.f32 %v340, 0.2
      %v357 = vmul.f32 %v341, 0.2
      %v358 = vmul.f32 %v342, 0.2
      %v359 = vmul.f32 %v343, 0.2
      %v360 = vmul.f32 %v344, 0.2
      %v361 = vmul.f32 %v345, 0.2
      %v362 = vsel %vm346, %v338, %v354
      %v363 = vsel %vm347, %v339, %v355
      %v364 = vsel %vm348, %v340, %v356
      %v365 = vsel %vm349, %v341, %v357
      %v366 = vsel %vm350, %v342, %v358
      %v367 = vsel %vm351, %v343, %v359
      %v368 = vsel %vm352, %v344, %v360
      %v369 = vsel %vm353, %v345, %v361
      %v370 = vpack.c.bf16 %v363, %v362
      %v371 = vpack.c.bf16 %v365, %v364
      %v372 = vpack.c.bf16 %v367, %v366
      %v373 = vpack.c.bf16 %v369, %v368
      %v378 = vunpack.c.l.b16 %v370
      %v379 = vunpack.c.h.b16 %v370
      %v380 = vunpack.c.l.b16 %v371
      %v381 = vunpack.c.h.b16 %v371
      %v382 = vunpack.c.l.b16 %v372
      %v383 = vunpack.c.h.b16 %v372
      %v384 = vunpack.c.l.b16 %v373
      %v385 = vunpack.c.h.b16 %v373
      %v386 = vpack.c.b16 %v378, %v378
      %v387 = vpack.c.b16 %v379, %v379
      %v388 = vpack.c.b16 %v380, %v380
      %v389 = vpack.c.b16 %v381, %v381
      %v390 = vpack.c.b16 %v382, %v382
      %v391 = vpack.c.b16 %v383, %v383
      %v392 = vpack.c.b16 %v384, %v384
      %v393 = vpack.c.b16 %v385, %v385
      %402 = vst [vmem:[%s199] sm:$0xf] %v386
      %403 = vst [vmem:[%s199 + $0x4] sm:$0xf] %v387
      %404 = vst [vmem:[%s199 + $0x8] sm:$0xf] %v388
      %405 = vst [vmem:[%s199 + $0xc] sm:$0xf] %v389
      %406 = vst [vmem:[%s199 + $0x10] sm:$0xf] %v390
      %407 = vst [vmem:[%s199 + $0x14] sm:$0xf] %v391
      %408 = vst [vmem:[%s199 + $0x18] sm:$0xf] %v392
      %409 = vst [vmem:[%s199 + $0x1c] sm:$0xf] %v393
      %s410 = smul.u32 8, %s15
      %p411 = scmp.lt.s32.totalorder %s410, 15
      %s412 = scalar_select %p411, %s410, 15
      %s413 = smul.addr %s412, 4
      %s414 = scalar_lea.vmem %s4, %s413
      // Predicated region
      $region37: #{generator_forward.12} parent=35 // pred_check
        %p415 = pneg %p122
      $region38: #{generator_forward.12} parent=35 // pred_check_branch
        %417 = sbr.rel (%p415) target = $region40
      $region39: #{generator_forward.12} parent=35 // pred_region
        %s418 = smul.u32 8, %s15
      $region40: #{generator_forward.12} parent=35 // pred_fallthru
        _
    $region36: #{generator_forward.12} parent=5 // pred_fallthru
      _
    %p419 = scmp.le.s32.totalorder 2, %s10
    // Predicated region
    $region41: #{generator_forward.12} parent=5 // pred_check
      %p420 = pneg %p419
    $region42: #{generator_forward.12} parent=5 // pred_check_branch
      %422 = sbr.rel (%p420) target = $region44
    $region43: #{generator_forward.12} parent=5 // pred_region
      %s423 = ssub.s32 %s10, 2
      // Predicated region
      $region45: #{generator_forward.12} parent=43 // pred_check
        %p424 = pneg %p128
      $region46: #{generator_forward.12} parent=43 // pred_check_branch
        %426 = sbr.rel (%p424) target = $region48
      $region47: #{generator_forward.12} parent=43 // pred_region
        %s427 = smul.u32 8, %s16
        %p428 = scmp.lt.s32.totalorder %s427, 15
        %s429 = scalar_select %p428, %s427, 15
        %s430 = smul.addr %s429, 4
        %s431 = scalar_lea.vmem %s4, %s430
      $region48: #{generator_forward.12} parent=43 // pred_fallthru
        _
    $region44: #{generator_forward.12} parent=5 // pred_fallthru
      _
  $region6: #{generator_forward.12} parent=0 // loop_footer
    %s14 = sadd.s32 1, %s10
  $region7: #{generator_forward.12} parent=0 // loop_footer_branch
    %9 = sbr.rel target = $region3
  $region8: #{generator_forward.12} parent=0 // loop_exit
    _

// kernel: generator_forward.13
$region0: #{generator_forward.13}
  #allocation0 [shape = 'u32[]', space=smem, size = 0x4, offset = 0x4, fixed_abs, tag = 'smem constant byte address 0x4 - core index']
  #allocation1 [shape = 'u32[144,128]{1,0:T(1,128)}', space=vmem, size = 0x12000, scoped, tag = 'internal scratch']
  %s0 = inlined_call_operand.vmem [shape: bf16[32,128], index: 0, kind: input, shape index: {}]
  %s1 = inlined_call_operand.vmem [shape: bf16[128,128], index: 1, kind: input, shape index: {}]
  %s2 = inlined_call_operand.vmem [shape: f32[32,128], index: 2, kind: output, shape index: {0}]
  %s3 = inlined_call_operand.vmem [shape: f32[2,2,128], index: 3, kind: output, shape index: {1}]
  %4 = xla_tuple %s2, %s3
  %s5 = sld [smem:[#allocation0]]
  $region49: #{generator_forward.13} parent=0
    _
  %s7 = ssub.s32 1, %s5
  %s8 = scalar_select 0, %s7, %s5
  loop: start=0, step=1, limit=4
  $region2: #{generator_forward.13} parent=0 // loop_pre_header
    _
  $region3: #{generator_forward.13} parent=0 // loop_header
    %s10 = sphi 0, %s14
    %p11 = scmp.ge.s32.totalorder %s10, 4
    %s20 = sphi 0, %s22
    %s23 = sphi 0, %s20
    %s24 = sphi 0, %s23
    %s40 = sphi 0, %s24
    %s44 = sphi 0, %s44
    %s46 = sphi 0, %s44
    %s47 = sphi 0, %s46
    %s61 = sphi 0, %s47
    %s67 = sphi 0, %s69
    %s70 = sphi 0, %s67
    %s71 = sphi 0, %s70
    %s87 = sphi 0, %s71
    %s93 = sphi 0, %s95
    %s96 = sphi 0, %s93
    %s97 = sphi 0, %s96
    %s113 = sphi 0, %s97
  $region4: #{generator_forward.13} parent=0 // loop_header_branch
    %13 = sbr.rel (%p11) target = $region8
  $region5: #{generator_forward.13} parent=0 // loop_body
    %s15 = ssub.s32 %s10, 1
    %s16 = ssub.s32 %s10, 2
    %s17 = sadd.s32 %s10, 1
    %s18 = ssub.s32 %s10, %s17
    %p19 = scmp.eq.s32.totalorder %s18, 0
    %s21 = sadd.s32 %s20, 1
    %s22 = scalar_select %p19, %s20, %s21
    %p25 = pneg %p19
    %p26 = scmp.eq.s32.totalorder %s10, 1
    %p27 = por %p25, %p26
    %p28 = scmp.ne.s32.totalorder %s20, %s23
    %p29 = scmp.eq.s32.totalorder %s10, 0
    %p30 = por %p28, %p29
    %p31 = scmp.ne.s32.totalorder %s20, %s23
    %p32 = scmp.eq.s32.totalorder %s15, 1
    %p33 = por %p31, %p32
    %p34 = scmp.ne.s32.totalorder %s23, %s24
    %p35 = scmp.eq.s32.totalorder %s15, 0
    %p36 = por %p34, %p35
    %p37 = scmp.ne.s32.totalorder %s23, %s24
    %p38 = scmp.eq.s32.totalorder %s16, 1
    %p39 = por %p37, %p38
    %p41 = scmp.ne.s32.totalorder %s24, %s40
    %p42 = scmp.eq.s32.totalorder %s16, 0
    %p43 = por %p41, %p42
    %s45 = sadd.s32 %s44, 1
    %p48 = scmp.eq.s32.totalorder %s10, 1
    %p49 = scmp.ne.s32.totalorder %s44, %s46
    %p50 = scmp.eq.s32.totalorder %s10, 0
    %p51 = por %p49, %p50
    %p52 = scmp.ne.s32.totalorder %s44, %s46
    %p53 = scmp.eq.s32.totalorder %s15, 1
    %p54 = por %p52, %p53
    %p55 = scmp.ne.s32.totalorder %s46, %s47
    %p56 = scmp.eq.s32.totalorder %s15, 0
    %p57 = por %p55, %p56
    %p58 = scmp.ne.s32.totalorder %s46, %s47
    %p59 = scmp.eq.s32.totalorder %s16, 1
    %p60 = por %p58, %p59
    %p62 = scmp.ne.s32.totalorder %s47, %s61
    %p63 = scmp.eq.s32.totalorder %s16, 0
    %p64 = por %p62, %p63
    %s65 = ssub.s32 %s10, %s17
    %p66 = scmp.eq.s32.totalorder %s65, 0
    %s68 = sadd.s32 %s67, 1
    %s69 = scalar_select %p66, %s67, %s68
    %p72 = pneg %p66
    %p73 = scmp.eq.s32.totalorder %s10, 1
    %p74 = por %p72, %p73
    %p75 = scmp.ne.s32.totalorder %s67, %s70
    %p76 = scmp.eq.s32.totalorder %s10, 0
    %p77 = por %p75, %p76
    %p78 = scmp.ne.s32.totalorder %s67, %s70
    %p79 = scmp.eq.s32.totalorder %s15, 1
    %p80 = por %p78, %p79
    %p81 = scmp.ne.s32.totalorder %s70, %s71
    %p82 = scmp.eq.s32.totalorder %s15, 0
    %p83 = por %p81, %p82
    %p84 = scmp.ne.s32.totalorder %s70, %s71
    %p85 = scmp.eq.s32.totalorder %s16, 1
    %p86 = por %p84, %p85
    %p88 = scmp.ne.s32.totalorder %s71, %s87
    %p89 = scmp.eq.s32.totalorder %s16, 0
    %p90 = por %p88, %p89
    %s91 = ssub.s32 %s10, %s17
    %p92 = scmp.eq.s32.totalorder %s91, 0
    %s94 = sadd.s32 %s93, 1
    %s95 = scalar_select %p92, %s93, %s94
    %p98 = pneg %p92
    %p99 = scmp.eq.s32.totalorder %s10, 1
    %p100 = por %p98, %p99
    %p101 = scmp.ne.s32.totalorder %s93, %s96
    %p102 = scmp.eq.s32.totalorder %s10, 0
    %p103 = por %p101, %p102
    %p104 = scmp.ne.s32.totalorder %s93, %s96
    %p105 = scmp.eq.s32.totalorder %s15, 1
    %p106 = por %p104, %p105
    %p107 = scmp.ne.s32.totalorder %s96, %s97
    %p108 = scmp.eq.s32.totalorder %s15, 0
    %p109 = por %p107, %p108
    %p110 = scmp.ne.s32.totalorder %s96, %s97
    %p111 = scmp.eq.s32.totalorder %s16, 1
    %p112 = por %p110, %p111
    %p114 = scmp.ne.s32.totalorder %s97, %s113
    %p115 = scmp.eq.s32.totalorder %s16, 0
    %p116 = por %p114, %p115
    %p117 = scmp.le.s32.totalorder 1, %s10
    %p118 = scmp.lt.s32.totalorder %s10, 3
    %p119 = pnand %p117, %p118
    %p120 = pneg %p119
    // Predicated region
    $region9: #{generator_forward.13} parent=5 // pred_check
      _
    $region10: #{generator_forward.13} parent=5 // pred_check_branch
      %122 = sbr.rel (%p119) target = $region12
    $region11: #{generator_forward.13} parent=5 // pred_region
      %s123 = ssub.s32 %s10, 1
      // Predicated region
      $region13: #{generator_forward.13} parent=11 // pred_check
        %p124 = pneg %p57
      $region14: #{generator_forward.13} parent=11 // pred_check_branch
        %126 = sbr.rel (%p124) target = $region16
      $region15: #{generator_forward.13} parent=11 // pred_region
        _
      $region16: #{generator_forward.13} parent=11 // pred_fallthru
        _
    $region12: #{generator_forward.13} parent=5 // pred_fallthru
      _
    %p127 = scmp.lt.s32.totalorder %s10, 2
    // Predicated region
    $region17: #{generator_forward.13} parent=5 // pred_check
      %p128 = pneg %p127
    $region18: #{generator_forward.13} parent=5 // pred_check_branch
      %130 = sbr.rel (%p128) target = $region20
    $region19: #{generator_forward.13} parent=5 // pred_region
      // Predicated region
      $region21: #{generator_forward.13} parent=19 // pred_check
        %p131 = pneg %p30
      $region22: #{generator_forward.13} parent=19 // pred_check_branch
        %133 = sbr.rel (%p131) target = $region24
      $region23: #{generator_forward.13} parent=19 // pred_region
        %s134 = smul.u32 2, %s10
        %p135 = scmp.lt.s32.totalorder %s134, 3
        %s136 = scalar_select %p135, %s134, 3
        %s137 = smul.addr %s136, 4
        %s138 = scalar_lea.vmem %s0, %s137
        %s139 = smul.u32 2, %s10
      $region24: #{generator_forward.13} parent=19 // pred_fallthru
        _
    $region20: #{generator_forward.13} parent=5 // pred_fallthru
      _
    %p140 = scmp.le.s32.totalorder 1, %s10
    %p141 = scmp.lt.s32.totalorder %s10, 3
    %p142 = pnand %p140, %p141
    %p143 = pneg %p142
    // Predicated region
    $region25: #{generator_forward.13} parent=5 // pred_check
      _
    $region26: #{generator_forward.13} parent=5 // pred_check_branch
      %145 = sbr.rel (%p142) target = $region28
    $region27: #{generator_forward.13} parent=5 // pred_region
      %s146 = ssub.s32 %s10, 1
      %s147 = smul.u32 2, %s15
      %p148 = scmp.lt.s32.totalorder %s147, 3
      %s149 = scalar_select %p148, %s147, 3
      %s150 = smul.addr %s149, 4
      %s151 = scalar_lea.vmem %s0, %s150
      %p152 = pneg %p36
      %p153 = pneg %p33
      %p154 = pneg %p57
      %p155 = pneg %p54
      %p156 = pneg %p83
      %p157 = pneg %p80
      %s158 = smul.u32 2, %s15
      %p159 = scmp.lt.s32.totalorder %s158, 3
      %s160 = scalar_select %p159, %s158, 3
      %s161 = smul.addr %s160, 8
      %s162 = scalar_lea.vmem %s2, %s161
      %p163 = pneg %p109
      %p164 = pneg %p106
      %p165 = scmp.lt.s32.totalorder %s15, 1
      %s166 = scalar_select %p165, %s15, 1
      %s167 = smul.addr %s166, 2
      %s168 = scalar_lea.vmem %s3, %s167
      %s169 = smul.u32 2, %s15
      %p170 = scmp.lt.s32.totalorder %s169, 3
      %s171 = scalar_select %p170, %s169, 3
      %s172 = smul.addr %s171, 4
      %s173 = scalar_lea.vmem %s0, %s172
      %s174 = smul.u32 2, %s15
      %s175 = smul.u32 2, %s15
      %p176 = scmp.lt.s32.totalorder %s175, 3
      %s177 = scalar_select %p176, %s175, 3
      %s178 = smul.addr %s177, 8
      %s179 = scalar_lea.vmem %s2, %s178
      %s180 = smul.u32 2, %s15
      %p181 = scmp.lt.s32.totalorder %s15, 1
      %s182 = scalar_select %p181, %s15, 1
      %s183 = smul.addr %s182, 2
      %s184 = scalar_lea.vmem %s3, %s183
      %v186 = vld [vmem:[%s173] sm:$0xf]
      %v187 = vld [vmem:[%s173 + $0x4] sm:$0xf]
      %v188 = vld [vmem:[%s1] sm:$0xf]
      %v189 = vld [vmem:[%s1 + $0x4] sm:$0xf]
      %v190 = vld [vmem:[%s1 + $0x8] sm:$0xf]
      %v191 = vld [vmem:[%s1 + $0xc] sm:$0xf]
      %v192 = vld [vmem:[%s1 + $0x10] sm:$0xf]
      %v193 = vld [vmem:[%s1 + $0x14] sm:$0xf]
      %v194 = vld [vmem:[%s1 + $0x18] sm:$0xf]
      %v195 = vld [vmem:[%s1 + $0x1c] sm:$0xf]
      %v196 = vld [vmem:[%s1 + $0x20] sm:$0xf]
      %v197 = vld [vmem:[%s1 + $0x24] sm:$0xf]
      %v198 = vld [vmem:[%s1 + $0x28] sm:$0xf]
      %v199 = vld [vmem:[%s1 + $0x2c] sm:$0xf]
      %v200 = vld [vmem:[%s1 + $0x30] sm:$0xf]
      %v201 = vld [vmem:[%s1 + $0x34] sm:$0xf]
      %v202 = vld [vmem:[%s1 + $0x38] sm:$0xf]
      %v203 = vld [vmem:[%s1 + $0x3c] sm:$0xf]
      %v206 = vunpack.c.l.b16 %v186
      %v207 = vunpack.c.l.b16 %v187
      %v208 = vpack.c.b16 %v207, %v206
      %v226 = vunpack.c.l.b16 %v188
      %v227 = vunpack.c.l.b16 %v189
      %v228 = vunpack.c.l.b16 %v190
      %v229 = vunpack.c.l.b16 %v191
      %v230 = vunpack.c.l.b16 %v192
      %v231 = vunpack.c.l.b16 %v193
      %v232 = vunpack.c.l.b16 %v194
      %v233 = vunpack.c.l.b16 %v195
      %v234 = vunpack.c.l.b16 %v196
      %v235 = vunpack.c.l.b16 %v197
      %v236 = vunpack.c.l.b16 %v198
      %v237 = vunpack.c.l.b16 %v199
      %v238 = vunpack.c.l.b16 %v200
      %v239 = vunpack.c.l.b16 %v201
      %v240 = vunpack.c.l.b16 %v202
      %v241 = vunpack.c.l.b16 %v203
      %v242 = vpack.c.b16 %v227, %v226
      %v243 = vpack.c.b16 %v229, %v228
      %v244 = vpack.c.b16 %v231, %v230
      %v245 = vpack.c.b16 %v233, %v232
      %v246 = vpack.c.b16 %v235, %v234
      %v247 = vpack.c.b16 %v237, %v236
      %v248 = vpack.c.b16 %v239, %v238
      %v249 = vpack.c.b16 %v241, %v240
      %258 = vmatprep.subr.bf16.mxu0 0
      %259 = vmatpush1.bf16.msra.mxu0 %v242
      %260 = vmatprep.subr.bf16.mxu0 0
      %261 = vmatpush1.bf16.msra.mxu0 %v243
      %262 = vmatprep.subr.bf16.mxu0 0
      %263 = vmatpush1.bf16.msra.mxu0 %v244
      %264 = vmatprep.subr.bf16.mxu0 0
      %265 = vmatpush1.bf16.msra.mxu0 %v245
      %266 = vmatprep.subr.bf16.mxu0 0
      %267 = vmatpush1.bf16.msra.mxu0 %v246
      %268 = vmatprep.subr.bf16.mxu0 0
      %269 = vmatpush1.bf16.msra.mxu0 %v247
      %270 = vmatprep.subr.bf16.mxu0 0
      %271 = vmatpush1.bf16.msra.mxu0 %v248
      %272 = vmatprep.subr.bf16.mxu0 0
      %273 = vmatpush1.bf16.msra.mxu0 %v249
      %274 = vmatprep.subr.bf16.mxu0 0
      %275 = vmatpush1.bf16.msra.mxu0 0
      %276 = vmatprep.subr.bf16.mxu0 0
      %277 = vmatpush1.bf16.msra.mxu0 0
      %278 = vmatprep.subr.bf16.mxu0 0
      %279 = vmatpush1.bf16.msra.mxu0 0
      %280 = vmatprep.subr.bf16.mxu0 0
      %281 = vmatpush1.bf16.msra.mxu0 0
      %282 = vmatprep.subr.bf16.mxu0 0
      %283 = vmatpush1.bf16.msra.mxu0 0
      %284 = vmatprep.subr.bf16.mxu0 0
      %285 = vmatpush1.bf16.msra.mxu0 0
      %286 = vmatprep.subr.bf16.mxu0 0
      %287 = vmatpush1.bf16.msra.mxu0 0
      %288 = vmatprep.subr.bf16.mxu0 0
      %289 = vmatpush1.bf16.msra.mxu0 0
      %290 = vmatprep.mubr.bf16.mxu0 0
      %291 = vmatmul.mubr.bf16.gmra.mrb[0].mxu0 %v208
      %v292 = vpop.f32.mrb[0].mxu0
      %v293 = vadd.f32 0.0, %v292
      %v294 = vpop.f32.mrb[0].mxu0
      %v295 = vpop.f32.mrb[0].mxu0
      %v296 = vadd.f32 0.0, %v295
      %v297 = vpop.f32.mrb[0].mxu0
      %298 = vdwg.mxu0
      %299 = vst [vmem:[%s179] sm:$0xff] %v293
      %300 = vst [vmem:[%s179 + $0x8] sm:$0xff] %v296
      %v301 = vadd.f32 %v293, %v296
      %v302 = vrot.slane %v301, 4
      %v303 = vadd.f32 %v301, %v302
      %v304 = vrot.slane %v303, 2
      %v305 = vadd.f32 %v303, %v304
      %v306 = vrot.slane %v305, 1
      %v307 = vadd.f32 %v305, %v306
      %308 = vst [vmem:[%s184] sm:$0x1] %v307
      %v309 = vmul.f32 %v293, %v293
      %v310 = vmul.f32 %v296, %v296
      %v311 = vadd.f32 %v309, %v310
      %v312 = vrot.slane %v311, 4
      %v313 = vadd.f32 %v311, %v312
      %v314 = vrot.slane %v313, 2
      %v315 = vadd.f32 %v313, %v314
      %v316 = vrot.slane %v315, 1
      %v317 = vadd.f32 %v315, %v316
      %318 = vst [vmem:[%s184 + $0x1] sm:$0x1] %v317
      %s319 = smul.u32 2, %s15
      %p320 = scmp.lt.s32.totalorder %s319, 3
      %s321 = scalar_select %p320, %s319, 3
      %s322 = smul.addr %s321, 8
      %s323 = scalar_lea.vmem %s2, %s322
      %p324 = scmp.lt.s32.totalorder %s15, 1
      %s325 = scalar_select %p324, %s15, 1
      %s326 = smul.addr %s325, 2
      %s327 = scalar_lea.vmem %s3, %s326
      // Predicated region
      $region29: #{generator_forward.13} parent=27 // pred_check
        %p328 = pneg %p80
      $region30: #{generator_forward.13} parent=27 // pred_check_branch
        %330 = sbr.rel (%p328) target = $region32
      $region31: #{generator_forward.13} parent=27 // pred_region
        %s331 = smul.u32 2, %s15
      $region32: #{generator_forward.13} parent=27 // pred_fallthru
        _
      // Predicated region
      $region33: #{generator_forward.13} parent=27 // pred_check
        %p332 = pneg %p106
      $region34: #{generator_forward.13} parent=27 // pred_check_branch
        %334 = sbr.rel (%p332) target = $region36
      $region35: #{generator_forward.13} parent=27 // pred_region
        _
      $region36: #{generator_forward.13} parent=27 // pred_fallthru
        _
    $region28: #{generator_forward.13} parent=5 // pred_fallthru
      _
    %p335 = scmp.le.s32.totalorder 2, %s10
    // Predicated region
    $region37: #{generator_forward.13} parent=5 // pred_check
      %p336 = pneg %p335
    $region38: #{generator_forward.13} parent=5 // pred_check_branch
      %338 = sbr.rel (%p336) target = $region40
    $region39: #{generator_forward.13} parent=5 // pred_region
      %s339 = ssub.s32 %s10, 2
      // Predicated region
      $region41: #{generator_forward.13} parent=39 // pred_check
        %p340 = pneg %p86
      $region42: #{generator_forward.13} parent=39 // pred_check_branch
        %342 = sbr.rel (%p340) target = $region44
      $region43: #{generator_forward.13} parent=39 // pred_region
        %s343 = smul.u32 2, %s16
        %p344 = scmp.lt.s32.totalorder %s343, 3
        %s345 = scalar_select %p344, %s343, 3
        %s346 = smul.addr %s345, 8
        %s347 = scalar_lea.vmem %s2, %s346
      $region44: #{generator_forward.13} parent=39 // pred_fallthru
        _
      // Predicated region
      $region45: #{generator_forward.13} parent=39 // pred_check
        %p348 = pneg %p112
      $region46: #{generator_forward.13} parent=39 // pred_check_branch
        %350 = sbr.rel (%p348) target = $region48
      $region47: #{generator_forward.13} parent=39 // pred_region
        %p351 = scmp.lt.s32.totalorder %s16, 1
        %s352 = scalar_select %p351, %s16, 1
        %s353 = smul.addr %s352, 2
        %s354 = scalar_lea.vmem %s3, %s353
      $region48: #{generator_forward.13} parent=39 // pred_fallthru
        _
    $region40: #{generator_forward.13} parent=5 // pred_fallthru
      _
  $region6: #{generator_forward.13} parent=0 // loop_footer
    %s14 = sadd.s32 1, %s10
  $region7: #{generator_forward.13} parent=0 // loop_footer_branch
    %9 = sbr.rel target = $region3
  $region8: #{generator_forward.13} parent=0 // loop_exit
    _

// kernel: generator_forward.14
$region0: #{generator_forward.14}
  #allocation0 [shape = 'u32[]', space=smem, size = 0x4, offset = 0x4, fixed_abs, tag = 'smem constant byte address 0x4 - core index']
  #allocation1 [shape = 'u32[144,128]{1,0:T(1,128)}', space=vmem, size = 0x12000, scoped, tag = 'internal scratch']
  %s0 = inlined_call_operand.vmem [shape: f32[32,128], index: 0, kind: input, shape index: {}]
  %s1 = inlined_call_operand.vmem [shape: f32[1,128], index: 1, kind: input, shape index: {}]
  %s2 = inlined_call_operand.vmem [shape: f32[1,128], index: 2, kind: input, shape index: {}]
  %s3 = inlined_call_operand.vmem [shape: bf16[32,128], index: 3, kind: output, shape index: {}]
  %s4 = sld [smem:[#allocation0]]
  $region45: #{generator_forward.14} parent=0
    _
  %s6 = ssub.s32 1, %s4
  %s7 = scalar_select 0, %s6, %s4
  loop: start=0, step=1, limit=4
  $region2: #{generator_forward.14} parent=0 // loop_pre_header
    _
  $region3: #{generator_forward.14} parent=0 // loop_header
    %s9 = sphi 0, %s13
    %p10 = scmp.ge.s32.totalorder %s9, 4
    %s19 = sphi 0, %s21
    %s22 = sphi 0, %s19
    %s23 = sphi 0, %s22
    %s39 = sphi 0, %s23
    %s43 = sphi 0, %s43
    %s45 = sphi 0, %s43
    %s46 = sphi 0, %s45
    %s60 = sphi 0, %s46
    %s64 = sphi 0, %s64
    %s66 = sphi 0, %s64
    %s67 = sphi 0, %s66
    %s81 = sphi 0, %s67
    %s87 = sphi 0, %s89
    %s90 = sphi 0, %s87
    %s91 = sphi 0, %s90
    %s107 = sphi 0, %s91
  $region4: #{generator_forward.14} parent=0 // loop_header_branch
    %12 = sbr.rel (%p10) target = $region8
  $region5: #{generator_forward.14} parent=0 // loop_body
    %s14 = ssub.s32 %s9, 1
    %s15 = ssub.s32 %s9, 2
    %s16 = sadd.s32 %s9, 1
    %s17 = ssub.s32 %s9, %s16
    %p18 = scmp.eq.s32.totalorder %s17, 0
    %s20 = sadd.s32 %s19, 1
    %s21 = scalar_select %p18, %s19, %s20
    %p24 = pneg %p18
    %p25 = scmp.eq.s32.totalorder %s9, 1
    %p26 = por %p24, %p25
    %p27 = scmp.ne.s32.totalorder %s19, %s22
    %p28 = scmp.eq.s32.totalorder %s9, 0
    %p29 = por %p27, %p28
    %p30 = scmp.ne.s32.totalorder %s19, %s22
    %p31 = scmp.eq.s32.totalorder %s14, 1
    %p32 = por %p30, %p31
    %p33 = scmp.ne.s32.totalorder %s22, %s23
    %p34 = scmp.eq.s32.totalorder %s14, 0
    %p35 = por %p33, %p34
    %p36 = scmp.ne.s32.totalorder %s22, %s23
    %p37 = scmp.eq.s32.totalorder %s15, 1
    %p38 = por %p36, %p37
    %p40 = scmp.ne.s32.totalorder %s23, %s39
    %p41 = scmp.eq.s32.totalorder %s15, 0
    %p42 = por %p40, %p41
    %s44 = sadd.s32 %s43, 1
    %p47 = scmp.eq.s32.totalorder %s9, 1
    %p48 = scmp.ne.s32.totalorder %s43, %s45
    %p49 = scmp.eq.s32.totalorder %s9, 0
    %p50 = por %p48, %p49
    %p51 = scmp.ne.s32.totalorder %s43, %s45
    %p52 = scmp.eq.s32.totalorder %s14, 1
    %p53 = por %p51, %p52
    %p54 = scmp.ne.s32.totalorder %s45, %s46
    %p55 = scmp.eq.s32.totalorder %s14, 0
    %p56 = por %p54, %p55
    %p57 = scmp.ne.s32.totalorder %s45, %s46
    %p58 = scmp.eq.s32.totalorder %s15, 1
    %p59 = por %p57, %p58
    %p61 = scmp.ne.s32.totalorder %s46, %s60
    %p62 = scmp.eq.s32.totalorder %s15, 0
    %p63 = por %p61, %p62
    %s65 = sadd.s32 %s64, 1
    %p68 = scmp.eq.s32.totalorder %s9, 1
    %p69 = scmp.ne.s32.totalorder %s64, %s66
    %p70 = scmp.eq.s32.totalorder %s9, 0
    %p71 = por %p69, %p70
    %p72 = scmp.ne.s32.totalorder %s64, %s66
    %p73 = scmp.eq.s32.totalorder %s14, 1
    %p74 = por %p72, %p73
    %p75 = scmp.ne.s32.totalorder %s66, %s67
    %p76 = scmp.eq.s32.totalorder %s14, 0
    %p77 = por %p75, %p76
    %p78 = scmp.ne.s32.totalorder %s66, %s67
    %p79 = scmp.eq.s32.totalorder %s15, 1
    %p80 = por %p78, %p79
    %p82 = scmp.ne.s32.totalorder %s67, %s81
    %p83 = scmp.eq.s32.totalorder %s15, 0
    %p84 = por %p82, %p83
    %s85 = ssub.s32 %s9, %s16
    %p86 = scmp.eq.s32.totalorder %s85, 0
    %s88 = sadd.s32 %s87, 1
    %s89 = scalar_select %p86, %s87, %s88
    %p92 = pneg %p86
    %p93 = scmp.eq.s32.totalorder %s9, 1
    %p94 = por %p92, %p93
    %p95 = scmp.ne.s32.totalorder %s87, %s90
    %p96 = scmp.eq.s32.totalorder %s9, 0
    %p97 = por %p95, %p96
    %p98 = scmp.ne.s32.totalorder %s87, %s90
    %p99 = scmp.eq.s32.totalorder %s14, 1
    %p100 = por %p98, %p99
    %p101 = scmp.ne.s32.totalorder %s90, %s91
    %p102 = scmp.eq.s32.totalorder %s14, 0
    %p103 = por %p101, %p102
    %p104 = scmp.ne.s32.totalorder %s90, %s91
    %p105 = scmp.eq.s32.totalorder %s15, 1
    %p106 = por %p104, %p105
    %p108 = scmp.ne.s32.totalorder %s91, %s107
    %p109 = scmp.eq.s32.totalorder %s15, 0
    %p110 = por %p108, %p109
    %p111 = scmp.le.s32.totalorder 1, %s9
    %p112 = scmp.lt.s32.totalorder %s9, 3
    %p113 = pnand %p111, %p112
    %p114 = pneg %p113
    // Predicated region
    $region9: #{generator_forward.14} parent=5 // pred_check
      _
    $region10: #{generator_forward.14} parent=5 // pred_check_branch
      %116 = sbr.rel (%p113) target = $region12
    $region11: #{generator_forward.14} parent=5 // pred_region
      %s117 = ssub.s32 %s9, 1
      // Predicated region
      $region13: #{generator_forward.14} parent=11 // pred_check
        %p118 = pneg %p56
      $region14: #{generator_forward.14} parent=11 // pred_check_branch
        %120 = sbr.rel (%p118) target = $region16
      $region15: #{generator_forward.14} parent=11 // pred_region
        _
      $region16: #{generator_forward.14} parent=11 // pred_fallthru
        _
      // Predicated region
      $region17: #{generator_forward.14} parent=11 // pred_check
        %p121 = pneg %p77
      $region18: #{generator_forward.14} parent=11 // pred_check_branch
        %123 = sbr.rel (%p121) target = $region20
      $region19: #{generator_forward.14} parent=11 // pred_region
        _
      $region20: #{generator_forward.14} parent=11 // pred_fallthru
        _
    $region12: #{generator_forward.14} parent=5 // pred_fallthru
      _
    %p124 = scmp.lt.s32.totalorder %s9, 2
    // Predicated region
    $region21: #{generator_forward.14} parent=5 // pred_check
      %p125 = pneg %p124
    $region22: #{generator_forward.14} parent=5 // pred_check_branch
      %127 = sbr.rel (%p125) target = $region24
    $region23: #{generator_forward.14} parent=5 // pred_region
      // Predicated region
      $region25: #{generator_forward.14} parent=23 // pred_check
        %p128 = pneg %p29
      $region26: #{generator_forward.14} parent=23 // pred_check_branch
        %130 = sbr.rel (%p128) target = $region28
      $region27: #{generator_forward.14} parent=23 // pred_region
        %s131 = smul.u32 2, %s9
        %p132 = scmp.lt.s32.totalorder %s131, 3
        %s133 = scalar_select %p132, %s131, 3
        %s134 = smul.addr %s133, 8
        %s135 = scalar_lea.vmem %s0, %s134
        %s136 = smul.u32 2, %s9
      $region28: #{generator_forward.14} parent=23 // pred_fallthru
        _
    $region24: #{generator_forward.14} parent=5 // pred_fallthru
      _
    %p137 = scmp.le.s32.totalorder 1, %s9
    %p138 = scmp.lt.s32.totalorder %s9, 3
    %p139 = pnand %p137, %p138
    %p140 = pneg %p139
    // Predicated region
    $region29: #{generator_forward.14} parent=5 // pred_check
      _
    $region30: #{generator_forward.14} parent=5 // pred_check_branch
      %142 = sbr.rel (%p139) target = $region32
    $region31: #{generator_forward.14} parent=5 // pred_region
      %s143 = ssub.s32 %s9, 1
      %s144 = smul.u32 2, %s14
      %p145 = scmp.lt.s32.totalorder %s144, 3
      %s146 = scalar_select %p145, %s144, 3
      %s147 = smul.addr %s146, 8
      %s148 = scalar_lea.vmem %s0, %s147
      %p149 = pneg %p35
      %p150 = pneg %p32
      %p151 = pneg %p56
      %p152 = pneg %p53
      %p153 = pneg %p77
      %p154 = pneg %p74
      %p155 = pneg %p103
      %p156 = pneg %p100
      %s157 = smul.u32 2, %s14
      %p158 = scmp.lt.s32.totalorder %s157, 3
      %s159 = scalar_select %p158, %s157, 3
      %s160 = smul.addr %s159, 4
      %s161 = scalar_lea.vmem %s3, %s160
      %s162 = smul.u32 2, %s14
      %p163 = scmp.lt.s32.totalorder %s162, 3
      %s164 = scalar_select %p163, %s162, 3
      %s165 = smul.addr %s164, 8
      %s166 = scalar_lea.vmem %s0, %s165
      %s167 = smul.u32 2, %s14
      %s168 = smul.u32 2, %s14
      %p169 = scmp.lt.s32.totalorder %s168, 3
      %s170 = scalar_select %p169, %s168, 3
      %s171 = smul.addr %s170, 4
      %s172 = scalar_lea.vmem %s3, %s171
      %s173 = smul.u32 2, %s14
      %v174 = vld [vmem:[%s166] sm:$0xff]
      %v175 = vld [vmem:[%s166 + $0x8] sm:$0xff]
      %v176 = vld [vmem:[%s1] sm:$0x1]
      %v178 = vlaneseq
      %v179 = vshrl.u32 %v178, 7
      %v180 = vsub.s32 0, %v179
      %v181 = vrot.slane %v176, %v180
      %v183 = vmul.f32 %v174, %v181
      %v184 = vmul.f32 %v175, %v181
      %v185 = vld [vmem:[%s2] sm:$0x1]
      %v187 = vlaneseq
      %v188 = vshrl.u32 %v187, 7
      %v189 = vsub.s32 0, %v188
      %v190 = vrot.slane %v185, %v189
      %v192 = vadd.f32 %v183, %v190
      %v193 = vadd.f32 %v184, %v190
      %vm194 = vcmp.ge.f32.partialorder %v192, 0.0
      %vm195 = vcmp.ge.f32.partialorder %v193, 0.0
      %v196 = vmul.f32 %v192, 0.2
      %v197 = vmul.f32 %v193, 0.2
      %v198 = vsel %vm194, %v192, %v196
      %v199 = vsel %vm195, %v193, %v197
      %v200 = vpack.c.bf16 %v199, %v198
      %v202 = vunpack.c.l.b16 %v200
      %v203 = vunpack.c.h.b16 %v200
      %v204 = vpack.c.b16 %v202, %v202
      %v205 = vpack.c.b16 %v203, %v203
      %208 = vst [vmem:[%s172] sm:$0xf] %v204
      %209 = vst [vmem:[%s172 + $0x4] sm:$0xf] %v205
      %s210 = smul.u32 2, %s14
      %p211 = scmp.lt.s32.totalorder %s210, 3
      %s212 = scalar_select %p211, %s210, 3
      %s213 = smul.addr %s212, 4
      %s214 = scalar_lea.vmem %s3, %s213
      // Predicated region
      $region33: #{generator_forward.14} parent=31 // pred_check
        %p215 = pneg %p100
      $region34: #{generator_forward.14} parent=31 // pred_check_branch
        %217 = sbr.rel (%p215) target = $region36
      $region35: #{generator_forward.14} parent=31 // pred_region
        %s218 = smul.u32 2, %s14
      $region36: #{generator_forward.14} parent=31 // pred_fallthru
        _
    $region32: #{generator_forward.14} parent=5 // pred_fallthru
      _
    %p219 = scmp.le.s32.totalorder 2, %s9
    // Predicated region
    $region37: #{generator_forward.14} parent=5 // pred_check
      %p220 = pneg %p219
    $region38: #{generator_forward.14} parent=5 // pred_check_branch
      %222 = sbr.rel (%p220) target = $region40
    $region39: #{generator_forward.14} parent=5 // pred_region
      %s223 = ssub.s32 %s9, 2
      // Predicated region
      $region41: #{generator_forward.14} parent=39 // pred_check
        %p224 = pneg %p106
      $region42: #{generator_forward.14} parent=39 // pred_check_branch
        %226 = sbr.rel (%p224) target = $region44
      $region43: #{generator_forward.14} parent=39 // pred_region
        %s227 = smul.u32 2, %s15
        %p228 = scmp.lt.s32.totalorder %s227, 3
        %s229 = scalar_select %p228, %s227, 3
        %s230 = smul.addr %s229, 4
        %s231 = scalar_lea.vmem %s3, %s230
      $region44: #{generator_forward.14} parent=39 // pred_fallthru
        _
    $region40: #{generator_forward.14} parent=5 // pred_fallthru
      _
  $region6: #{generator_forward.14} parent=0 // loop_footer
    %s13 = sadd.s32 1, %s9
  $region7: #{generator_forward.14} parent=0 // loop_footer_branch
    %8 = sbr.rel target = $region3
  $region8: #{generator_forward.14} parent=0 // loop_exit
    _

// kernel: generator_forward.15
$region0: #{generator_forward.15}
  #allocation0 [shape = 'u32[]', space=smem, size = 0x4, offset = 0x4, fixed_abs, tag = 'smem constant byte address 0x4 - core index']
  #allocation1 [shape = 'u32[144,128]{1,0:T(1,128)}', space=vmem, size = 0x12000, scoped, tag = 'internal scratch']
  %s0 = inlined_call_operand.vmem [shape: bf16[8,256], index: 0, kind: input, shape index: {}]
  %s1 = inlined_call_operand.vmem [shape: bf16[256,128], index: 1, kind: input, shape index: {}]
  %s2 = inlined_call_operand.vmem [shape: f32[8,128], index: 2, kind: output, shape index: {0}]
  %s3 = inlined_call_operand.vmem [shape: f32[1,2,128], index: 3, kind: output, shape index: {1}]
  %4 = xla_tuple %s2, %s3
  %s5 = sld [smem:[#allocation0]]
  $region26: #{generator_forward.15} parent=0
    _
  %s7 = ssub.s32 1, %s5
  %s8 = scalar_select 0, %s7, %s5
  // Predicated region
  $region2: #{generator_forward.15} parent=0 // pred_check
    _
  $region3: #{generator_forward.15} parent=0 // pred_check_branch
    %10 = sbr.rel (0) target = $region5
  $region4: #{generator_forward.15} parent=0 // pred_region
    _
  $region5: #{generator_forward.15} parent=0 // pred_fallthru
    _
  // Predicated region
  $region6: #{generator_forward.15} parent=0 // pred_check
    _
  $region7: #{generator_forward.15} parent=0 // pred_check_branch
    %12 = sbr.rel (0) target = $region9
  $region8: #{generator_forward.15} parent=0 // pred_region
    _
  $region9: #{generator_forward.15} parent=0 // pred_fallthru
    _
  %v14 = vld [vmem:[%s0] sm:$0xff]
  %v15 = vld [vmem:[%s1] sm:$0xf]
  %v16 = vld [vmem:[%s1 + $0x4] sm:$0xf]
  %v17 = vld [vmem:[%s1 + $0x8] sm:$0xf]
  %v18 = vld [vmem:[%s1 + $0xc] sm:$0xf]
  %v19 = vld [vmem:[%s1 + $0x10] sm:$0xf]
  %v20 = vld [vmem:[%s1 + $0x14] sm:$0xf]
  %v21 = vld [vmem:[%s1 + $0x18] sm:$0xf]
  %v22 = vld [vmem:[%s1 + $0x1c] sm:$0xf]
  %v23 = vld [vmem:[%s1 + $0x20] sm:$0xf]
  %v24 = vld [vmem:[%s1 + $0x24] sm:$0xf]
  %v25 = vld [vmem:[%s1 + $0x28] sm:$0xf]
  %v26 = vld [vmem:[%s1 + $0x2c] sm:$0xf]
  %v27 = vld [vmem:[%s1 + $0x30] sm:$0xf]
  %v28 = vld [vmem:[%s1 + $0x34] sm:$0xf]
  %v29 = vld [vmem:[%s1 + $0x38] sm:$0xf]
  %v30 = vld [vmem:[%s1 + $0x3c] sm:$0xf]
  %v31 = vld [vmem:[%s1 + $0x40] sm:$0xf]
  %v32 = vld [vmem:[%s1 + $0x44] sm:$0xf]
  %v33 = vld [vmem:[%s1 + $0x48] sm:$0xf]
  %v34 = vld [vmem:[%s1 + $0x4c] sm:$0xf]
  %v35 = vld [vmem:[%s1 + $0x50] sm:$0xf]
  %v36 = vld [vmem:[%s1 + $0x54] sm:$0xf]
  %v37 = vld [vmem:[%s1 + $0x58] sm:$0xf]
  %v38 = vld [vmem:[%s1 + $0x5c] sm:$0xf]
  %v39 = vld [vmem:[%s1 + $0x60] sm:$0xf]
  %v40 = vld [vmem:[%s1 + $0x64] sm:$0xf]
  %v41 = vld [vmem:[%s1 + $0x68] sm:$0xf]
  %v42 = vld [vmem:[%s1 + $0x6c] sm:$0xf]
  %v43 = vld [vmem:[%s1 + $0x70] sm:$0xf]
  %v44 = vld [vmem:[%s1 + $0x74] sm:$0xf]
  %v45 = vld [vmem:[%s1 + $0x78] sm:$0xf]
  %v46 = vld [vmem:[%s1 + $0x7c] sm:$0xf]
  %v48 = vunpack.c.l.b16 %v14
  %v49 = vunpack.c.h.b16 %v14
  %v50 = vpack.c.b16 %v48, %v48
  %v51 = vpack.c.b16 %v49, %v49
  %v86 = vunpack.c.l.b16 %v15
  %v87 = vunpack.c.l.b16 %v16
  %v88 = vunpack.c.l.b16 %v17
  %v89 = vunpack.c.l.b16 %v18
  %v90 = vunpack.c.l.b16 %v19
  %v91 = vunpack.c.l.b16 %v20
  %v92 = vunpack.c.l.b16 %v21
  %v93 = vunpack.c.l.b16 %v22
  %v94 = vunpack.c.l.b16 %v23
  %v95 = vunpack.c.l.b16 %v24
  %v96 = vunpack.c.l.b16 %v25
  %v97 = vunpack.c.l.b16 %v26
  %v98 = vunpack.c.l.b16 %v27
  %v99 = vunpack.c.l.b16 %v28
  %v100 = vunpack.c.l.b16 %v29
  %v101 = vunpack.c.l.b16 %v30
  %v102 = vunpack.c.l.b16 %v31
  %v103 = vunpack.c.l.b16 %v32
  %v104 = vunpack.c.l.b16 %v33
  %v105 = vunpack.c.l.b16 %v34
  %v106 = vunpack.c.l.b16 %v35
  %v107 = vunpack.c.l.b16 %v36
  %v108 = vunpack.c.l.b16 %v37
  %v109 = vunpack.c.l.b16 %v38
  %v110 = vunpack.c.l.b16 %v39
  %v111 = vunpack.c.l.b16 %v40
  %v112 = vunpack.c.l.b16 %v41
  %v113 = vunpack.c.l.b16 %v42
  %v114 = vunpack.c.l.b16 %v43
  %v115 = vunpack.c.l.b16 %v44
  %v116 = vunpack.c.l.b16 %v45
  %v117 = vunpack.c.l.b16 %v46
  %v118 = vpack.c.b16 %v87, %v86
  %v119 = vpack.c.b16 %v89, %v88
  %v120 = vpack.c.b16 %v91, %v90
  %v121 = vpack.c.b16 %v93, %v92
  %v122 = vpack.c.b16 %v95, %v94
  %v123 = vpack.c.b16 %v97, %v96
  %v124 = vpack.c.b16 %v99, %v98
  %v125 = vpack.c.b16 %v101, %v100
  %v126 = vpack.c.b16 %v103, %v102
  %v127 = vpack.c.b16 %v105, %v104
  %v128 = vpack.c.b16 %v107, %v106
  %v129 = vpack.c.b16 %v109, %v108
  %v130 = vpack.c.b16 %v111, %v110
  %v131 = vpack.c.b16 %v113, %v112
  %v132 = vpack.c.b16 %v115, %v114
  %v133 = vpack.c.b16 %v117, %v116
  %150 = vmatprep.subr.bf16.mxu0 0
  %151 = vmatpush1.bf16.msra.mxu0 %v118
  %152 = vmatprep.subr.bf16.mxu0 0
  %153 = vmatpush1.bf16.msra.mxu0 %v119
  %154 = vmatprep.subr.bf16.mxu0 0
  %155 = vmatpush1.bf16.msra.mxu0 %v120
  %156 = vmatprep.subr.bf16.mxu0 0
  %157 = vmatpush1.bf16.msra.mxu0 %v121
  %158 = vmatprep.subr.bf16.mxu0 0
  %159 = vmatpush1.bf16.msra.mxu0 %v122
  %160 = vmatprep.subr.bf16.mxu0 0
  %161 = vmatpush1.bf16.msra.mxu0 %v123
  %162 = vmatprep.subr.bf16.mxu0 0
  %163 = vmatpush1.bf16.msra.mxu0 %v124
  %164 = vmatprep.subr.bf16.mxu0 0
  %165 = vmatpush1.bf16.msra.mxu0 %v125
  %166 = vmatprep.subr.bf16.mxu0 0
  %167 = vmatpush1.bf16.msra.mxu0 %v126
  %168 = vmatprep.subr.bf16.mxu0 0
  %169 = vmatpush1.bf16.msra.mxu0 %v127
  %170 = vmatprep.subr.bf16.mxu0 0
  %171 = vmatpush1.bf16.msra.mxu0 %v128
  %172 = vmatprep.subr.bf16.mxu0 0
  %173 = vmatpush1.bf16.msra.mxu0 %v129
  %174 = vmatprep.subr.bf16.mxu0 0
  %175 = vmatpush1.bf16.msra.mxu0 %v130
  %176 = vmatprep.subr.bf16.mxu0 0
  %177 = vmatpush1.bf16.msra.mxu0 %v131
  %178 = vmatprep.subr.bf16.mxu0 0
  %179 = vmatpush1.bf16.msra.mxu0 %v132
  %180 = vmatprep.subr.bf16.mxu0 0
  %181 = vmatpush1.bf16.msra.mxu0 %v133
  %182 = vmatprep.mubr.bf16.mxu0 %v51
  %183 = vmatmul.mubr.bf16.gmra.mrb[0].mxu0 %v50
  %v184 = vpop.f32.mrb[0].mxu0
  %v185 = vadd.f32 0.0, %v184
  %v186 = vpop.f32.mrb[0].mxu0
  %v187 = vpop.f32.mrb[0].mxu0
  %v188 = vpop.f32.mrb[0].mxu0
  %189 = vdwg.mxu0
  %190 = vst [vmem:[%s2] sm:$0xff] %v185
  %v191 = vrot.slane %v185, 4
  %v192 = vadd.f32 %v185, %v191
  %v193 = vrot.slane %v192, 2
  %v194 = vadd.f32 %v192, %v193
  %v195 = vrot.slane %v194, 1
  %v196 = vadd.f32 %v194, %v195
  %197 = vst [vmem:[%s3] sm:$0x1] %v196
  %v198 = vmul.f32 %v185, %v185
  %v199 = vrot.slane %v198, 4
  %v200 = vadd.f32 %v198, %v199
  %v201 = vrot.slane %v200, 2
  %v202 = vadd.f32 %v200, %v201
  %v203 = vrot.slane %v202, 1
  %v204 = vadd.f32 %v202, %v203
  %205 = vst [vmem:[%s3 + $0x1] sm:$0x1] %v204
  // Predicated region
  $region10: #{generator_forward.15} parent=0 // pred_check
    _
  $region11: #{generator_forward.15} parent=0 // pred_check_branch
    %207 = sbr.rel (0) target = $region13
  $region12: #{generator_forward.15} parent=0 // pred_region
    _
  $region13: #{generator_forward.15} parent=0 // pred_fallthru
    _
  // Predicated region
  $region14: #{generator_forward.15} parent=0 // pred_check
    _
  $region15: #{generator_forward.15} parent=0 // pred_check_branch
    %209 = sbr.rel (0) target = $region17
  $region16: #{generator_forward.15} parent=0 // pred_region
    _
  $region17: #{generator_forward.15} parent=0 // pred_fallthru
    _
  // Predicated region
  $region18: #{generator_forward.15} parent=0 // pred_check
    _
  $region19: #{generator_forward.15} parent=0 // pred_check_branch
    %211 = sbr.rel (0) target = $region21
  $region20: #{generator_forward.15} parent=0 // pred_region
    _
  $region21: #{generator_forward.15} parent=0 // pred_fallthru
    _
  // Predicated region
  $region22: #{generator_forward.15} parent=0 // pred_check
    _
  $region23: #{generator_forward.15} parent=0 // pred_check_branch
    %213 = sbr.rel (0) target = $region25
  $region24: #{generator_forward.15} parent=0 // pred_region
    _
  $region25: #{generator_forward.15} parent=0 // pred_fallthru
    _

// kernel: generator_forward.16
$region0: #{generator_forward.16}
  #allocation0 [shape = 'u32[]', space=smem, size = 0x4, offset = 0x4, fixed_abs, tag = 'smem constant byte address 0x4 - core index']
  #allocation1 [shape = 'u32[144,128]{1,0:T(1,128)}', space=vmem, size = 0x12000, scoped, tag = 'internal scratch']
  %s0 = inlined_call_operand.vmem [shape: f32[8,128], index: 0, kind: input, shape index: {}]
  %s1 = inlined_call_operand.vmem [shape: f32[1,128], index: 1, kind: input, shape index: {}]
  %s2 = inlined_call_operand.vmem [shape: f32[1,128], index: 2, kind: input, shape index: {}]
  %s3 = inlined_call_operand.vmem [shape: bf16[8,128], index: 3, kind: output, shape index: {}]
  %s4 = sld [smem:[#allocation0]]
  $region22: #{generator_forward.16} parent=0
    _
  %s6 = ssub.s32 1, %s4
  %s7 = scalar_select 0, %s6, %s4
  // Predicated region
  $region2: #{generator_forward.16} parent=0 // pred_check
    _
  $region3: #{generator_forward.16} parent=0 // pred_check_branch
    %9 = sbr.rel (0) target = $region5
  $region4: #{generator_forward.16} parent=0 // pred_region
    _
  $region5: #{generator_forward.16} parent=0 // pred_fallthru
    _
  // Predicated region
  $region6: #{generator_forward.16} parent=0 // pred_check
    _
  $region7: #{generator_forward.16} parent=0 // pred_check_branch
    %11 = sbr.rel (0) target = $region9
  $region8: #{generator_forward.16} parent=0 // pred_region
    _
  $region9: #{generator_forward.16} parent=0 // pred_fallthru
    _
  // Predicated region
  $region10: #{generator_forward.16} parent=0 // pred_check
    _
  $region11: #{generator_forward.16} parent=0 // pred_check_branch
    %13 = sbr.rel (0) target = $region13
  $region12: #{generator_forward.16} parent=0 // pred_region
    _
  $region13: #{generator_forward.16} parent=0 // pred_fallthru
    _
  %v14 = vld [vmem:[%s0] sm:$0xff]
  %v15 = vld [vmem:[%s1] sm:$0x1]
  %v17 = vlaneseq
  %v18 = vshrl.u32 %v17, 7
  %v19 = vsub.s32 0, %v18
  %v20 = vrot.slane %v15, %v19
  %v22 = vmul.f32 %v14, %v20
  %v23 = vld [vmem:[%s2] sm:$0x1]
  %v25 = vlaneseq
  %v26 = vshrl.u32 %v25, 7
  %v27 = vsub.s32 0, %v26
  %v28 = vrot.slane %v23, %v27
  %v30 = vadd.f32 %v22, %v28
  %vm31 = vcmp.ge.f32.partialorder %v30, 0.0
  %v32 = vmul.f32 %v30, 0.2
  %v33 = vsel %vm31, %v30, %v32
  %v34 = vpack.c.bf16 %v33, %v33
  %35 = vst [vmem:[%s3] sm:$0xf] %v34
  // Predicated region
  $region14: #{generator_forward.16} parent=0 // pred_check
    _
  $region15: #{generator_forward.16} parent=0 // pred_check_branch
    %37 = sbr.rel (0) target = $region17
  $region16: #{generator_forward.16} parent=0 // pred_region
    _
  $region17: #{generator_forward.16} parent=0 // pred_fallthru
    _
  // Predicated region
  $region18: #{generator_forward.16} parent=0 // pred_check
    _
  $region19: #{generator_forward.16} parent=0 // pred_check_branch
    %39 = sbr.rel (0) target = $region21
  $region20: #{generator_forward.16} parent=0 // pred_region
    _
  $region21: #{generator_forward.16} parent=0 // pred_fallthru
    _

// kernel: squeeze.4
$region0: #{squeeze.4}
  %s0 = inlined_call_operand.vmem [shape: f32[64], index: 0, kind: input, shape index: {}]
  %s1 = inlined_call_operand.vmem [shape: f32[4,16], index: 1, kind: output, shape index: {}]
  $region1: #{squeeze.4} parent=0
    #allocation0 [shape = 'u8[4096]{0}', space=vmem, size = 0x1000, scoped, tag = 'scoped mem for output reshape']
    #allocation1 [shape = 'u8[4096]{0}', space=vmem, size = 0x1000, scoped, tag = 'scoped mem for input reshape']
    %s3 = sshllo.u32 0, 1
    %v4 = vld [vmem:[%s0] sm:%s3]
    %5 = vst [vmem:[#allocation1] sm:%s3] %v4
    %v6 = vld [vmem:[#allocation1] sm:$0x1]
    %vm7 = vcmask 130048
    %8 = vst.msk [vmem:[#allocation0] sm:$0x1] %vm7, %v6
    %v9 = vld [vmem:[#allocation1] sm:$0x1]
    %10 = vrot.lane.b32.xlu0 %v9, 112
    %v11 = vpop.permute.xlu0 %10
    %vm12 = vcmask 130048
    %s13 = scalar_lea.vmem [#allocation0], 1
    %14 = vst.msk [vmem:[%s13] sm:$0x1] %vm12, %v11
    %v15 = vld [vmem:[#allocation1] sm:$0x1]
    %16 = vrot.lane.b32.xlu0 %v15, 96
    %v17 = vpop.permute.xlu0 %16
    %vm18 = vcmask 130048
    %s19 = scalar_lea.vmem [#allocation0], 2
    %20 = vst.msk [vmem:[%s19] sm:$0x1] %vm18, %v17
    %v21 = vld [vmem:[#allocation1] sm:$0x1]
    %22 = vrot.lane.b32.xlu0 %v21, 80
    %v23 = vpop.permute.xlu0 %22
    %vm24 = vcmask 130048
    %s25 = scalar_lea.vmem [#allocation0], 3
    %26 = vst.msk [vmem:[%s25] sm:$0x1] %vm24, %v23
    %s28 = sshllo.u32 0, 4
    %v30 = vld [vmem:[#allocation0] sm:%s28]
    %s31 = sshllo.u32 0, 4
    %32 = vst [vmem:[%s1] sm:%s31] %v30

// kernel: tile.33
$region0: #{tile.33}
  #allocation0 [shape = 's32[1]{0}', space=sflag, size = 0x4, scoped, tag = 'scoped memory for tile.33']
  %s0 = inlined_call_operand.vmem [shape: f32[16], index: 0, kind: input, shape index: {}]
  %s1 = inlined_call_operand.vmem [shape: f32[4,16], index: 1, kind: output, shape index: {}]
  // Predicated region
  $region2: #{tile.33} parent=0 // pred_check
    _
  $region3: #{tile.33} parent=0 // pred_check_branch
    %3 = sbr.rel (0) target = $region5
  $region4: #{tile.33} parent=0 // pred_region
    _
  $region5: #{tile.33} parent=0 // pred_fallthru
    _
  %v4 = vld [vmem:[%s0] ss:$0 sm:$0xff]
  %5 = vst [vmem:[%s1] sm:$0xf] %v4

// kernel: tile.34
$region0: #{tile.34}
  %s0 = inlined_call_operand.vmem [shape: f32[4,16], index: 0, kind: input, shape index: {}]
  %s1 = inlined_call_operand.vmem [shape: f32[64], index: 1, kind: output, shape index: {}]
  $region1: #{tile.34} parent=0
    #allocation0 [shape = 'u8[4096]{0}', space=vmem, size = 0x1000, scoped, tag = 'scoped mem for output reshape']
    #allocation1 [shape = 'u8[4096]{0}', space=vmem, size = 0x1000, scoped, tag = 'scoped mem for input reshape']
    %s3 = sshllo.u32 0, 4
    %v4 = vld [vmem:[%s0] sm:%s3]
    %5 = vst [vmem:[#allocation1] sm:%s3] %v4
    %v6 = vld [vmem:[#allocation1] sm:$0x1]
    %vm7 = vcmask 130048
    %8 = vst.msk [vmem:[#allocation0] sm:$0x1] %vm7, %v6
    %s9 = scalar_lea.vmem [#allocation1], 3
    %v10 = vld [vmem:[%s9] sm:$0x1]
    %11 = vrot.lane.b32.xlu0 %v10, 48
    %v12 = vpop.permute.xlu0 %11
    %vm13 = vcmask 523648
    %14 = vst.msk [vmem:[#allocation0] sm:$0x1] %vm13, %v12
    %s15 = scalar_lea.vmem [#allocation1], 2
    %v16 = vld [vmem:[%s15] sm:$0x1]
    %17 = vrot.lane.b32.xlu0 %v16, 32
    %v18 = vpop.permute.xlu0 %17
    %vm19 = vcmask 392448
    %20 = vst.msk [vmem:[#allocation0] sm:$0x1] %vm19, %v18
    %s21 = scalar_lea.vmem [#allocation1], 1
    %v22 = vld [vmem:[%s21] sm:$0x1]
    %23 = vrot.lane.b32.xlu0 %v22, 16
    %v24 = vpop.permute.xlu0 %23
    %vm25 = vcmask 261248
    %26 = vst.msk [vmem:[#allocation0] sm:$0x1] %vm25, %v24
    %s28 = sshllo.u32 0, 1
    %v30 = vld [vmem:[#allocation0] sm:%s28]
    %s31 = sshllo.u32 0, 1
    %32 = vst [vmem:[%s1] sm:%s31] %v30

// kernel: generator_forward.17
$region0: #{generator_forward.17}
  #allocation0 [shape = 'u32[]', space=smem, size = 0x4, offset = 0x4, fixed_abs, tag = 'smem constant byte address 0x4 - core index']
  #allocation1 [shape = 'u32[144,128]{1,0:T(1,128)}', space=vmem, size = 0x12000, scoped, tag = 'internal scratch']
  %s0 = inlined_call_operand.vmem [shape: bf16[8,288], index: 0, kind: input, shape index: {}]
  %s1 = inlined_call_operand.vmem [shape: bf16[288,128], index: 1, kind: input, shape index: {}]
  %s2 = inlined_call_operand.vmem [shape: f32[8,128], index: 2, kind: output, shape index: {0}]
  %s3 = inlined_call_operand.vmem [shape: f32[1,2,128], index: 3, kind: output, shape index: {1}]
  %4 = xla_tuple %s2, %s3
  %s5 = sld [smem:[#allocation0]]
  $region26: #{generator_forward.17} parent=0
    _
  %s7 = ssub.s32 1, %s5
  %s8 = scalar_select 0, %s7, %s5
  // Predicated region
  $region2: #{generator_forward.17} parent=0 // pred_check
    _
  $region3: #{generator_forward.17} parent=0 // pred_check_branch
    %10 = sbr.rel (0) target = $region5
  $region4: #{generator_forward.17} parent=0 // pred_region
    _
  $region5: #{generator_forward.17} parent=0 // pred_fallthru
    _
  // Predicated region
  $region6: #{generator_forward.17} parent=0 // pred_check
    _
  $region7: #{generator_forward.17} parent=0 // pred_check_branch
    %12 = sbr.rel (0) target = $region9
  $region8: #{generator_forward.17} parent=0 // pred_region
    _
  $region9: #{generator_forward.17} parent=0 // pred_fallthru
    _
  %v14 = vld [vmem:[%s0] sm:$0xff]
  %v15 = vld [vmem:[%s0 + $0x8] sm:$0xf]
  %v16 = vld [vmem:[%s1] sm:$0xf]
  %v17 = vld [vmem:[%s1 + $0x4] sm:$0xf]
  %v18 = vld [vmem:[%s1 + $0x8] sm:$0xf]
  %v19 = vld [vmem:[%s1 + $0xc] sm:$0xf]
  %v20 = vld [vmem:[%s1 + $0x10] sm:$0xf]
  %v21 = vld [vmem:[%s1 + $0x14] sm:$0xf]
  %v22 = vld [vmem:[%s1 + $0x18] sm:$0xf]
  %v23 = vld [vmem:[%s1 + $0x1c] sm:$0xf]
  %v24 = vld [vmem:[%s1 + $0x20] sm:$0xf]
  %v25 = vld [vmem:[%s1 + $0x24] sm:$0xf]
  %v26 = vld [vmem:[%s1 + $0x28] sm:$0xf]
  %v27 = vld [vmem:[%s1 + $0x2c] sm:$0xf]
  %v28 = vld [vmem:[%s1 + $0x30] sm:$0xf]
  %v29 = vld [vmem:[%s1 + $0x34] sm:$0xf]
  %v30 = vld [vmem:[%s1 + $0x38] sm:$0xf]
  %v31 = vld [vmem:[%s1 + $0x3c] sm:$0xf]
  %v32 = vld [vmem:[%s1 + $0x40] sm:$0xf]
  %v33 = vld [vmem:[%s1 + $0x44] sm:$0xf]
  %v34 = vld [vmem:[%s1 + $0x48] sm:$0xf]
  %v35 = vld [vmem:[%s1 + $0x4c] sm:$0xf]
  %v36 = vld [vmem:[%s1 + $0x50] sm:$0xf]
  %v37 = vld [vmem:[%s1 + $0x54] sm:$0xf]
  %v38 = vld [vmem:[%s1 + $0x58] sm:$0xf]
  %v39 = vld [vmem:[%s1 + $0x5c] sm:$0xf]
  %v40 = vld [vmem:[%s1 + $0x60] sm:$0xf]
  %v41 = vld [vmem:[%s1 + $0x64] sm:$0xf]
  %v42 = vld [vmem:[%s1 + $0x68] sm:$0xf]
  %v43 = vld [vmem:[%s1 + $0x6c] sm:$0xf]
  %v44 = vld [vmem:[%s1 + $0x70] sm:$0xf]
  %v45 = vld [vmem:[%s1 + $0x74] sm:$0xf]
  %v46 = vld [vmem:[%s1 + $0x78] sm:$0xf]
  %v47 = vld [vmem:[%s1 + $0x7c] sm:$0xf]
  %v48 = vld [vmem:[%s1 + $0x80] sm:$0xf]
  %v49 = vld [vmem:[%s1 + $0x84] sm:$0xf]
  %v50 = vld [vmem:[%s1 + $0x88] sm:$0xf]
  %v51 = vld [vmem:[%s1 + $0x8c] sm:$0xf]
  %v54 = vunpack.c.l.b16 %v14
  %v55 = vunpack.c.h.b16 %v14
  %v56 = vunpack.c.l.b16 %v15
  %v57 = vpack.c.b16 %v54, %v54
  %v58 = vpack.c.b16 %v55, %v55
  %v59 = vpack.c.b16 %v56, %v56
  %v98 = vunpack.c.l.b16 %v16
  %v99 = vunpack.c.l.b16 %v17
  %v100 = vunpack.c.l.b16 %v18
  %v101 = vunpack.c.l.b16 %v19
  %v102 = vunpack.c.l.b16 %v20
  %v103 = vunpack.c.l.b16 %v21
  %v104 = vunpack.c.l.b16 %v22
  %v105 = vunpack.c.l.b16 %v23
  %v106 = vunpack.c.l.b16 %v24
  %v107 = vunpack.c.l.b16 %v25
  %v108 = vunpack.c.l.b16 %v26
  %v109 = vunpack.c.l.b16 %v27
  %v110 = vunpack.c.l.b16 %v28
  %v111 = vunpack.c.l.b16 %v29
  %v112 = vunpack.c.l.b16 %v30
  %v113 = vunpack.c.l.b16 %v31
  %v114 = vunpack.c.l.b16 %v32
  %v115 = vunpack.c.l.b16 %v33
  %v116 = vunpack.c.l.b16 %v34
  %v117 = vunpack.c.l.b16 %v35
  %v118 = vunpack.c.l.b16 %v36
  %v119 = vunpack.c.l.b16 %v37
  %v120 = vunpack.c.l.b16 %v38
  %v121 = vunpack.c.l.b16 %v39
  %v122 = vunpack.c.l.b16 %v40
  %v123 = vunpack.c.l.b16 %v41
  %v124 = vunpack.c.l.b16 %v42
  %v125 = vunpack.c.l.b16 %v43
  %v126 = vunpack.c.l.b16 %v44
  %v127 = vunpack.c.l.b16 %v45
  %v128 = vunpack.c.l.b16 %v46
  %v129 = vunpack.c.l.b16 %v47
  %v130 = vunpack.c.l.b16 %v48
  %v131 = vunpack.c.l.b16 %v49
  %v132 = vunpack.c.l.b16 %v50
  %v133 = vunpack.c.l.b16 %v51
  %v134 = vpack.c.b16 %v99, %v98
  %v135 = vpack.c.b16 %v101, %v100
  %v136 = vpack.c.b16 %v103, %v102
  %v137 = vpack.c.b16 %v105, %v104
  %v138 = vpack.c.b16 %v107, %v106
  %v139 = vpack.c.b16 %v109, %v108
  %v140 = vpack.c.b16 %v111, %v110
  %v141 = vpack.c.b16 %v113, %v112
  %v142 = vpack.c.b16 %v115, %v114
  %v143 = vpack.c.b16 %v117, %v116
  %v144 = vpack.c.b16 %v119, %v118
  %v145 = vpack.c.b16 %v121, %v120
  %v146 = vpack.c.b16 %v123, %v122
  %v147 = vpack.c.b16 %v125, %v124
  %v148 = vpack.c.b16 %v127, %v126
  %v149 = vpack.c.b16 %v129, %v128
  %v150 = vpack.c.b16 %v131, %v130
  %v151 = vpack.c.b16 %v133, %v132
  %vm170 = vcmask 261120
  %v172 = vsel %vm170, %v59, 0
  %174 = vmatprep.subr.bf16.mxu0 0
  %175 = vmatpush1.bf16.msra.mxu0 %v134
  %176 = vmatprep.subr.bf16.mxu0 0
  %177 = vmatpush1.bf16.msra.mxu0 %v135
  %178 = vmatprep.subr.bf16.mxu0 0
  %179 = vmatpush1.bf16.msra.mxu0 %v136
  %180 = vmatprep.subr.bf16.mxu0 0
  %181 = vmatpush1.bf16.msra.mxu0 %v137
  %182 = vmatprep.subr.bf16.mxu0 0
  %183 = vmatpush1.bf16.msra.mxu0 %v138
  %184 = vmatprep.subr.bf16.mxu0 0
  %185 = vmatpush1.bf16.msra.mxu0 %v139
  %186 = vmatprep.subr.bf16.mxu0 0
  %187 = vmatpush1.bf16.msra.mxu0 %v140
  %188 = vmatprep.subr.bf16.mxu0 0
  %189 = vmatpush1.bf16.msra.mxu0 %v141
  %190 = vmatprep.subr.bf16.mxu0 0
  %191 = vmatpush1.bf16.msra.mxu0 %v142
  %192 = vmatprep.subr.bf16.mxu0 0
  %193 = vmatpush1.bf16.msra.mxu0 %v143
  %194 = vmatprep.subr.bf16.mxu0 0
  %195 = vmatpush1.bf16.msra.mxu0 %v144
  %196 = vmatprep.subr.bf16.mxu0 0
  %197 = vmatpush1.bf16.msra.mxu0 %v145
  %198 = vmatprep.subr.bf16.mxu0 0
  %199 = vmatpush1.bf16.msra.mxu0 %v146
  %200 = vmatprep.subr.bf16.mxu0 0
  %201 = vmatpush1.bf16.msra.mxu0 %v147
  %202 = vmatprep.subr.bf16.mxu0 0
  %203 = vmatpush1.bf16.msra.mxu0 %v148
  %204 = vmatprep.subr.bf16.mxu0 0
  %205 = vmatpush1.bf16.msra.mxu0 %v149
  %206 = vmatprep.mubr.bf16.mxu0 %v58
  %207 = vmatmul.mubr.bf16.gmra.mrb[0].mxu0 %v57
  %v208 = vpop.f32.mrb[0].mxu0
  %v209 = vadd.f32 0.0, %v208
  %v210 = vpop.f32.mrb[0].mxu0
  %v211 = vpop.f32.mrb[0].mxu0
  %v212 = vpop.f32.mrb[0].mxu0
  %213 = vdwg.mxu0
  %214 = vmatprep.subr.bf16.mxu0 0
  %215 = vmatpush1.bf16.msra.mxu0 %v150
  %216 = vmatprep.subr.bf16.mxu0 0
  %217 = vmatpush1.bf16.msra.mxu0 %v151
  %218 = vmatprep.subr.bf16.mxu0 0
  %219 = vmatpush1.bf16.msra.mxu0 0
  %220 = vmatprep.subr.bf16.mxu0 0
  %221 = vmatpush1.bf16.msra.mxu0 0
  %222 = vmatprep.subr.bf16.mxu0 0
  %223 = vmatpush1.bf16.msra.mxu0 0
  %224 = vmatprep.subr.bf16.mxu0 0
  %225 = vmatpush1.bf16.msra.mxu0 0
  %226 = vmatprep.subr.bf16.mxu0 0
  %227 = vmatpush1.bf16.msra.mxu0 0
  %228 = vmatprep.subr.bf16.mxu0 0
  %229 = vmatpush1.bf16.msra.mxu0 0
  %230 = vmatprep.subr.bf16.mxu0 0
  %231 = vmatpush1.bf16.msra.mxu0 0
  %232 = vmatprep.subr.bf16.mxu0 0
  %233 = vmatpush1.bf16.msra.mxu0 0
  %234 = vmatprep.subr.bf16.mxu0 0
  %235 = vmatpush1.bf16.msra.mxu0 0
  %236 = vmatprep.subr.bf16.mxu0 0
  %237 = vmatpush1.bf16.msra.mxu0 0
  %238 = vmatprep.subr.bf16.mxu0 0
  %239 = vmatpush1.bf16.msra.mxu0 0
  %240 = vmatprep.subr.bf16.mxu0 0
  %241 = vmatpush1.bf16.msra.mxu0 0
  %242 = vmatprep.subr.bf16.mxu0 0
  %243 = vmatpush1.bf16.msra.mxu0 0
  %244 = vmatprep.subr.bf16.mxu0 0
  %245 = vmatpush1.bf16.msra.mxu0 0
  %246 = vmatprep.mubr.bf16.mxu0 0
  %247 = vmatmul.mubr.bf16.gmra.mrb[0].mxu0 %v172
  %v248 = vpop.f32.mrb[0].mxu0
  %v249 = vadd.f32 %v209, %v248
  %v250 = vpop.f32.mrb[0].mxu0
  %v251 = vpop.f32.mrb[0].mxu0
  %v252 = vpop.f32.mrb[0].mxu0
  %253 = vdwg.mxu0
  %254 = vst [vmem:[%s2] sm:$0xff] %v249
  %v255 = vrot.slane %v249, 4
  %v256 = vadd.f32 %v249, %v255
  %v257 = vrot.slane %v256, 2
  %v258 = vadd.f32 %v256, %v257
  %v259 = vrot.slane %v258, 1
  %v260 = vadd.f32 %v258, %v259
  %261 = vst [vmem:[%s3] sm:$0x1] %v260
  %v262 = vmul.f32 %v249, %v249
  %v263 = vrot.slane %v262, 4
  %v264 = vadd.f32 %v262, %v263
  %v265 = vrot.slane %v264, 2
  %v266 = vadd.f32 %v264, %v265
  %v267 = vrot.slane %v266, 1
  %v268 = vadd.f32 %v266, %v267
  %269 = vst [vmem:[%s3 + $0x1] sm:$0x1] %v268
  // Predicated region
  $region10: #{generator_forward.17} parent=0 // pred_check
    _
  $region11: #{generator_forward.17} parent=0 // pred_check_branch
    %271 = sbr.rel (0) target = $region13
  $region12: #{generator_forward.17} parent=0 // pred_region
    _
  $region13: #{generator_forward.17} parent=0 // pred_fallthru
    _
  // Predicated region
  $region14: #{generator_forward.17} parent=0 // pred_check
    _
  $region15: #{generator_forward.17} parent=0 // pred_check_branch
    %273 = sbr.rel (0) target = $region17
  $region16: #{generator_forward.17} parent=0 // pred_region
    _
  $region17: #{generator_forward.17} parent=0 // pred_fallthru
    _
  // Predicated region
  $region18: #{generator_forward.17} parent=0 // pred_check
    _
  $region19: #{generator_forward.17} parent=0 // pred_check_branch
    %275 = sbr.rel (0) target = $region21
  $region20: #{generator_forward.17} parent=0 // pred_region
    _
  $region21: #{generator_forward.17} parent=0 // pred_fallthru
    _
  // Predicated region
  $region22: #{generator_forward.17} parent=0 // pred_check
    _
  $region23: #{generator_forward.17} parent=0 // pred_check_branch
    %277 = sbr.rel (0) target = $region25
  $region24: #{generator_forward.17} parent=0 // pred_region
    _
  $region25: #{generator_forward.17} parent=0 // pred_fallthru
    _

// kernel: generator_forward.18
$region0: #{generator_forward.18}
  #allocation0 [shape = 'u32[]', space=smem, size = 0x4, offset = 0x4, fixed_abs, tag = 'smem constant byte address 0x4 - core index']
  #allocation1 [shape = 'u32[144,128]{1,0:T(1,128)}', space=vmem, size = 0x12000, scoped, tag = 'internal scratch']
  %s0 = inlined_call_operand.vmem [shape: f32[8,128], index: 0, kind: input, shape index: {}]
  %s1 = inlined_call_operand.vmem [shape: f32[1,128], index: 1, kind: input, shape index: {}]
  %s2 = inlined_call_operand.vmem [shape: f32[1,128], index: 2, kind: input, shape index: {}]
  %s3 = inlined_call_operand.vmem [shape: bf16[8,128], index: 3, kind: output, shape index: {}]
  %s4 = sld [smem:[#allocation0]]
  $region22: #{generator_forward.18} parent=0
    _
  %s6 = ssub.s32 1, %s4
  %s7 = scalar_select 0, %s6, %s4
  // Predicated region
  $region2: #{generator_forward.18} parent=0 // pred_check
    _
  $region3: #{generator_forward.18} parent=0 // pred_check_branch
    %9 = sbr.rel (0) target = $region5
  $region4: #{generator_forward.18} parent=0 // pred_region
    _
  $region5: #{generator_forward.18} parent=0 // pred_fallthru
    _
  // Predicated region
  $region6: #{generator_forward.18} parent=0 // pred_check
    _
  $region7: #{generator_forward.18} parent=0 // pred_check_branch
    %11 = sbr.rel (0) target = $region9
  $region8: #{generator_forward.18} parent=0 // pred_region
    _
  $region9: #{generator_forward.18} parent=0 // pred_fallthru
    _
  // Predicated region
  $region10: #{generator_forward.18} parent=0 // pred_check
    _
  $region11: #{generator_forward.18} parent=0 // pred_check_branch
    %13 = sbr.rel (0) target = $region13
  $region12: #{generator_forward.18} parent=0 // pred_region
    _
  $region13: #{generator_forward.18} parent=0 // pred_fallthru
    _
  %v14 = vld [vmem:[%s0] sm:$0xff]
  %v15 = vld [vmem:[%s1] sm:$0x1]
  %v17 = vlaneseq
  %v18 = vshrl.u32 %v17, 7
  %v19 = vsub.s32 0, %v18
  %v20 = vrot.slane %v15, %v19
  %v22 = vmul.f32 %v14, %v20
  %v23 = vld [vmem:[%s2] sm:$0x1]
  %v25 = vlaneseq
  %v26 = vshrl.u32 %v25, 7
  %v27 = vsub.s32 0, %v26
  %v28 = vrot.slane %v23, %v27
  %v30 = vadd.f32 %v22, %v28
  %v31 = vmax.f32 %v30, 0.0
  %v32 = vpack.c.bf16 %v31, %v31
  %33 = vst [vmem:[%s3] sm:$0xf] %v32
  // Predicated region
  $region14: #{generator_forward.18} parent=0 // pred_check
    _
  $region15: #{generator_forward.18} parent=0 // pred_check_branch
    %35 = sbr.rel (0) target = $region17
  $region16: #{generator_forward.18} parent=0 // pred_region
    _
  $region17: #{generator_forward.18} parent=0 // pred_fallthru
    _
  // Predicated region
  $region18: #{generator_forward.18} parent=0 // pred_check
    _
  $region19: #{generator_forward.18} parent=0 // pred_check_branch
    %37 = sbr.rel (0) target = $region21
  $region20: #{generator_forward.18} parent=0 // pred_region
    _
  $region21: #{generator_forward.18} parent=0 // pred_fallthru
    _

// kernel: squeeze.6
$region0: #{squeeze.6}
  %s0 = inlined_call_operand.vmem [shape: f32[32], index: 0, kind: input, shape index: {}]
  %s1 = inlined_call_operand.vmem [shape: f32[4,8], index: 1, kind: output, shape index: {}]
  $region1: #{squeeze.6} parent=0
    #allocation0 [shape = 'u8[4096]{0}', space=vmem, size = 0x1000, scoped, tag = 'scoped mem for output reshape']
    #allocation1 [shape = 'u8[4096]{0}', space=vmem, size = 0x1000, scoped, tag = 'scoped mem for input reshape']
    %s3 = sshllo.u32 0, 1
    %v4 = vld [vmem:[%s0] sm:%s3]
    %5 = vst [vmem:[#allocation1] sm:%s3] %v4
    %v6 = vld [vmem:[#allocation1] sm:$0x1]
    %vm7 = vcmask 64512
    %8 = vst.msk [vmem:[#allocation0] sm:$0x1] %vm7, %v6
    %v9 = vld [vmem:[#allocation1] sm:$0x1]
    %10 = vrot.lane.b32.xlu0 %v9, 120
    %v11 = vpop.permute.xlu0 %10
    %vm12 = vcmask 64512
    %s13 = scalar_lea.vmem [#allocation0], 1
    %14 = vst.msk [vmem:[%s13] sm:$0x1] %vm12, %v11
    %v15 = vld [vmem:[#allocation1] sm:$0x1]
    %16 = vrot.lane.b32.xlu0 %v15, 112
    %v17 = vpop.permute.xlu0 %16
    %vm18 = vcmask 64512
    %s19 = scalar_lea.vmem [#allocation0], 2
    %20 = vst.msk [vmem:[%s19] sm:$0x1] %vm18, %v17
    %v21 = vld [vmem:[#allocation1] sm:$0x1]
    %22 = vrot.lane.b32.xlu0 %v21, 104
    %v23 = vpop.permute.xlu0 %22
    %vm24 = vcmask 64512
    %s25 = scalar_lea.vmem [#allocation0], 3
    %26 = vst.msk [vmem:[%s25] sm:$0x1] %vm24, %v23
    %s28 = sshllo.u32 0, 4
    %v30 = vld [vmem:[#allocation0] sm:%s28]
    %s31 = sshllo.u32 0, 4
    %32 = vst [vmem:[%s1] sm:%s31] %v30

// kernel: tile.43
$region0: #{tile.43}
  #allocation0 [shape = 's32[1]{0}', space=sflag, size = 0x4, scoped, tag = 'scoped memory for tile.43']
  %s0 = inlined_call_operand.vmem [shape: f32[8], index: 0, kind: input, shape index: {}]
  %s1 = inlined_call_operand.vmem [shape: f32[4,8], index: 1, kind: output, shape index: {}]
  // Predicated region
  $region2: #{tile.43} parent=0 // pred_check
    _
  $region3: #{tile.43} parent=0 // pred_check_branch
    %3 = sbr.rel (0) target = $region5
  $region4: #{tile.43} parent=0 // pred_region
    _
  $region5: #{tile.43} parent=0 // pred_fallthru
    _
  %v4 = vld [vmem:[%s0] ss:$0 sm:$0xff]
  %5 = vst [vmem:[%s1] sm:$0xf] %v4

// kernel: tile.44
$region0: #{tile.44}
  %s0 = inlined_call_operand.vmem [shape: f32[4,8], index: 0, kind: input, shape index: {}]
  %s1 = inlined_call_operand.vmem [shape: f32[32], index: 1, kind: output, shape index: {}]
  $region1: #{tile.44} parent=0
    #allocation0 [shape = 'u8[4096]{0}', space=vmem, size = 0x1000, scoped, tag = 'scoped mem for output reshape']
    #allocation1 [shape = 'u8[4096]{0}', space=vmem, size = 0x1000, scoped, tag = 'scoped mem for input reshape']
    %s3 = sshllo.u32 0, 4
    %v4 = vld [vmem:[%s0] sm:%s3]
    %5 = vst [vmem:[#allocation1] sm:%s3] %v4
    %v6 = vld [vmem:[#allocation1] sm:$0x1]
    %vm7 = vcmask 64512
    %8 = vst.msk [vmem:[#allocation0] sm:$0x1] %vm7, %v6
    %s9 = scalar_lea.vmem [#allocation1], 3
    %v10 = vld [vmem:[%s9] sm:$0x1]
    %11 = vrot.lane.b32.xlu0 %v10, 24
    %v12 = vpop.permute.xlu0 %11
    %vm13 = vcmask 261312
    %14 = vst.msk [vmem:[#allocation0] sm:$0x1] %vm13, %v12
    %s15 = scalar_lea.vmem [#allocation1], 2
    %v16 = vld [vmem:[%s15] sm:$0x1]
    %17 = vrot.lane.b32.xlu0 %v16, 16
    %v18 = vpop.permute.xlu0 %17
    %vm19 = vcmask 195712
    %20 = vst.msk [vmem:[#allocation0] sm:$0x1] %vm19, %v18
    %s21 = scalar_lea.vmem [#allocation1], 1
    %v22 = vld [vmem:[%s21] sm:$0x1]
    %23 = vrot.lane.b32.xlu0 %v22, 8
    %v24 = vpop.permute.xlu0 %23
    %vm25 = vcmask 130112
    %26 = vst.msk [vmem:[#allocation0] sm:$0x1] %vm25, %v24
    %s28 = sshllo.u32 0, 1
    %v30 = vld [vmem:[#allocation0] sm:%s28]
    %s31 = sshllo.u32 0, 1
    %32 = vst [vmem:[%s1] sm:%s31] %v30

// kernel: generator_forward.19
$region0: #{generator_forward.19}
  #allocation0 [shape = 'u32[]', space=smem, size = 0x4, offset = 0x4, fixed_abs, tag = 'smem constant byte address 0x4 - core index']
  #allocation1 [shape = 'u32[144,128]{1,0:T(1,128)}', space=vmem, size = 0x12000, scoped, tag = 'internal scratch']
  %s0 = inlined_call_operand.vmem [shape: bf16[32,144], index: 0, kind: input, shape index: {}]
  %s1 = inlined_call_operand.vmem [shape: bf16[144,128], index: 1, kind: input, shape index: {}]
  %s2 = inlined_call_operand.vmem [shape: f32[32,128], index: 2, kind: output, shape index: {0}]
  %s3 = inlined_call_operand.vmem [shape: f32[2,2,128], index: 3, kind: output, shape index: {1}]
  %4 = xla_tuple %s2, %s3
  %s5 = sld [smem:[#allocation0]]
  $region49: #{generator_forward.19} parent=0
    _
  %s7 = ssub.s32 1, %s5
  %s8 = scalar_select 0, %s7, %s5
  loop: start=0, step=1, limit=4
  $region2: #{generator_forward.19} parent=0 // loop_pre_header
    _
  $region3: #{generator_forward.19} parent=0 // loop_header
    %s10 = sphi 0, %s14
    %p11 = scmp.ge.s32.totalorder %s10, 4
    %s20 = sphi 0, %s22
    %s23 = sphi 0, %s20
    %s24 = sphi 0, %s23
    %s40 = sphi 0, %s24
    %s44 = sphi 0, %s44
    %s46 = sphi 0, %s44
    %s47 = sphi 0, %s46
    %s61 = sphi 0, %s47
    %s67 = sphi 0, %s69
    %s70 = sphi 0, %s67
    %s71 = sphi 0, %s70
    %s87 = sphi 0, %s71
    %s93 = sphi 0, %s95
    %s96 = sphi 0, %s93
    %s97 = sphi 0, %s96
    %s113 = sphi 0, %s97
  $region4: #{generator_forward.19} parent=0 // loop_header_branch
    %13 = sbr.rel (%p11) target = $region8
  $region5: #{generator_forward.19} parent=0 // loop_body
    %s15 = ssub.s32 %s10, 1
    %s16 = ssub.s32 %s10, 2
    %s17 = sadd.s32 %s10, 1
    %s18 = ssub.s32 %s10, %s17
    %p19 = scmp.eq.s32.totalorder %s18, 0
    %s21 = sadd.s32 %s20, 1
    %s22 = scalar_select %p19, %s20, %s21
    %p25 = pneg %p19
    %p26 = scmp.eq.s32.totalorder %s10, 1
    %p27 = por %p25, %p26
    %p28 = scmp.ne.s32.totalorder %s20, %s23
    %p29 = scmp.eq.s32.totalorder %s10, 0
    %p30 = por %p28, %p29
    %p31 = scmp.ne.s32.totalorder %s20, %s23
    %p32 = scmp.eq.s32.totalorder %s15, 1
    %p33 = por %p31, %p32
    %p34 = scmp.ne.s32.totalorder %s23, %s24
    %p35 = scmp.eq.s32.totalorder %s15, 0
    %p36 = por %p34, %p35
    %p37 = scmp.ne.s32.totalorder %s23, %s24
    %p38 = scmp.eq.s32.totalorder %s16, 1
    %p39 = por %p37, %p38
    %p41 = scmp.ne.s32.totalorder %s24, %s40
    %p42 = scmp.eq.s32.totalorder %s16, 0
    %p43 = por %p41, %p42
    %s45 = sadd.s32 %s44, 1
    %p48 = scmp.eq.s32.totalorder %s10, 1
    %p49 = scmp.ne.s32.totalorder %s44, %s46
    %p50 = scmp.eq.s32.totalorder %s10, 0
    %p51 = por %p49, %p50
    %p52 = scmp.ne.s32.totalorder %s44, %s46
    %p53 = scmp.eq.s32.totalorder %s15, 1
    %p54 = por %p52, %p53
    %p55 = scmp.ne.s32.totalorder %s46, %s47
    %p56 = scmp.eq.s32.totalorder %s15, 0
    %p57 = por %p55, %p56
    %p58 = scmp.ne.s32.totalorder %s46, %s47
    %p59 = scmp.eq.s32.totalorder %s16, 1
    %p60 = por %p58, %p59
    %p62 = scmp.ne.s32.totalorder %s47, %s61
    %p63 = scmp.eq.s32.totalorder %s16, 0
    %p64 = por %p62, %p63
    %s65 = ssub.s32 %s10, %s17
    %p66 = scmp.eq.s32.totalorder %s65, 0
    %s68 = sadd.s32 %s67, 1
    %s69 = scalar_select %p66, %s67, %s68
    %p72 = pneg %p66
    %p73 = scmp.eq.s32.totalorder %s10, 1
    %p74 = por %p72, %p73
    %p75 = scmp.ne.s32.totalorder %s67, %s70
    %p76 = scmp.eq.s32.totalorder %s10, 0
    %p77 = por %p75, %p76
    %p78 = scmp.ne.s32.totalorder %s67, %s70
    %p79 = scmp.eq.s32.totalorder %s15, 1
    %p80 = por %p78, %p79
    %p81 = scmp.ne.s32.totalorder %s70, %s71
    %p82 = scmp.eq.s32.totalorder %s15, 0
    %p83 = por %p81, %p82
    %p84 = scmp.ne.s32.totalorder %s70, %s71
    %p85 = scmp.eq.s32.totalorder %s16, 1
    %p86 = por %p84, %p85
    %p88 = scmp.ne.s32.totalorder %s71, %s87
    %p89 = scmp.eq.s32.totalorder %s16, 0
    %p90 = por %p88, %p89
    %s91 = ssub.s32 %s10, %s17
    %p92 = scmp.eq.s32.totalorder %s91, 0
    %s94 = sadd.s32 %s93, 1
    %s95 = scalar_select %p92, %s93, %s94
    %p98 = pneg %p92
    %p99 = scmp.eq.s32.totalorder %s10, 1
    %p100 = por %p98, %p99
    %p101 = scmp.ne.s32.totalorder %s93, %s96
    %p102 = scmp.eq.s32.totalorder %s10, 0
    %p103 = por %p101, %p102
    %p104 = scmp.ne.s32.totalorder %s93, %s96
    %p105 = scmp.eq.s32.totalorder %s15, 1
    %p106 = por %p104, %p105
    %p107 = scmp.ne.s32.totalorder %s96, %s97
    %p108 = scmp.eq.s32.totalorder %s15, 0
    %p109 = por %p107, %p108
    %p110 = scmp.ne.s32.totalorder %s96, %s97
    %p111 = scmp.eq.s32.totalorder %s16, 1
    %p112 = por %p110, %p111
    %p114 = scmp.ne.s32.totalorder %s97, %s113
    %p115 = scmp.eq.s32.totalorder %s16, 0
    %p116 = por %p114, %p115
    %p117 = scmp.le.s32.totalorder 1, %s10
    %p118 = scmp.lt.s32.totalorder %s10, 3
    %p119 = pnand %p117, %p118
    %p120 = pneg %p119
    // Predicated region
    $region9: #{generator_forward.19} parent=5 // pred_check
      _
    $region10: #{generator_forward.19} parent=5 // pred_check_branch
      %122 = sbr.rel (%p119) target = $region12
    $region11: #{generator_forward.19} parent=5 // pred_region
      %s123 = ssub.s32 %s10, 1
      // Predicated region
      $region13: #{generator_forward.19} parent=11 // pred_check
        %p124 = pneg %p57
      $region14: #{generator_forward.19} parent=11 // pred_check_branch
        %126 = sbr.rel (%p124) target = $region16
      $region15: #{generator_forward.19} parent=11 // pred_region
        _
      $region16: #{generator_forward.19} parent=11 // pred_fallthru
        _
    $region12: #{generator_forward.19} parent=5 // pred_fallthru
      _
    %p127 = scmp.lt.s32.totalorder %s10, 2
    // Predicated region
    $region17: #{generator_forward.19} parent=5 // pred_check
      %p128 = pneg %p127
    $region18: #{generator_forward.19} parent=5 // pred_check_branch
      %130 = sbr.rel (%p128) target = $region20
    $region19: #{generator_forward.19} parent=5 // pred_region
      // Predicated region
      $region21: #{generator_forward.19} parent=19 // pred_check
        %p131 = pneg %p30
      $region22: #{generator_forward.19} parent=19 // pred_check_branch
        %133 = sbr.rel (%p131) target = $region24
      $region23: #{generator_forward.19} parent=19 // pred_region
        %s134 = smul.u32 2, %s10
        %p135 = scmp.lt.s32.totalorder %s134, 3
        %s136 = scalar_select %p135, %s134, 3
        %s137 = smul.addr %s136, 2
        %s138 = smul.addr %s137, 4
        %s139 = scalar_lea.vmem %s0, %s138
        %s140 = smul.u32 2, %s10
      $region24: #{generator_forward.19} parent=19 // pred_fallthru
        _
    $region20: #{generator_forward.19} parent=5 // pred_fallthru
      _
    %p141 = scmp.le.s32.totalorder 1, %s10
    %p142 = scmp.lt.s32.totalorder %s10, 3
    %p143 = pnand %p141, %p142
    %p144 = pneg %p143
    // Predicated region
    $region25: #{generator_forward.19} parent=5 // pred_check
      _
    $region26: #{generator_forward.19} parent=5 // pred_check_branch
      %146 = sbr.rel (%p143) target = $region28
    $region27: #{generator_forward.19} parent=5 // pred_region
      %s147 = ssub.s32 %s10, 1
      %s148 = smul.u32 2, %s15
      %p149 = scmp.lt.s32.totalorder %s148, 3
      %s150 = scalar_select %p149, %s148, 3
      %s151 = smul.addr %s150, 2
      %s152 = smul.addr %s151, 4
      %s153 = scalar_lea.vmem %s0, %s152
      %p154 = pneg %p36
      %p155 = pneg %p33
      %p156 = pneg %p57
      %p157 = pneg %p54
      %p158 = pneg %p83
      %p159 = pneg %p80
      %s160 = smul.u32 2, %s15
      %p161 = scmp.lt.s32.totalorder %s160, 3
      %s162 = scalar_select %p161, %s160, 3
      %s163 = smul.addr %s162, 8
      %s164 = scalar_lea.vmem %s2, %s163
      %p165 = pneg %p109
      %p166 = pneg %p106
      %p167 = scmp.lt.s32.totalorder %s15, 1
      %s168 = scalar_select %p167, %s15, 1
      %s169 = smul.addr %s168, 2
      %s170 = scalar_lea.vmem %s3, %s169
      %s171 = smul.u32 2, %s15
      %p172 = scmp.lt.s32.totalorder %s171, 3
      %s173 = scalar_select %p172, %s171, 3
      %s174 = smul.addr %s173, 2
      %s175 = smul.addr %s174, 4
      %s176 = scalar_lea.vmem %s0, %s175
      %s177 = smul.u32 2, %s15
      %s178 = smul.u32 2, %s15
      %p179 = scmp.lt.s32.totalorder %s178, 3
      %s180 = scalar_select %p179, %s178, 3
      %s181 = smul.addr %s180, 8
      %s182 = scalar_lea.vmem %s2, %s181
      %s183 = smul.u32 2, %s15
      %p184 = scmp.lt.s32.totalorder %s15, 1
      %s185 = scalar_select %p184, %s15, 1
      %s186 = smul.addr %s185, 2
      %s187 = scalar_lea.vmem %s3, %s186
      %v189 = vld [vmem:[%s176] sm:$0xff]
      %v190 = vld [vmem:[%s176 + $0x8] sm:$0xff]
      %v191 = vld [vmem:[%s1] sm:$0xf]
      %v192 = vld [vmem:[%s1 + $0x4] sm:$0xf]
      %v193 = vld [vmem:[%s1 + $0x8] sm:$0xf]
      %v194 = vld [vmem:[%s1 + $0xc] sm:$0xf]
      %v195 = vld [vmem:[%s1 + $0x10] sm:$0xf]
      %v196 = vld [vmem:[%s1 + $0x14] sm:$0xf]
      %v197 = vld [vmem:[%s1 + $0x18] sm:$0xf]
      %v198 = vld [vmem:[%s1 + $0x1c] sm:$0xf]
      %v199 = vld [vmem:[%s1 + $0x20] sm:$0xf]
      %v200 = vld [vmem:[%s1 + $0x24] sm:$0xf]
      %v201 = vld [vmem:[%s1 + $0x28] sm:$0xf]
      %v202 = vld [vmem:[%s1 + $0x2c] sm:$0xf]
      %v203 = vld [vmem:[%s1 + $0x30] sm:$0xf]
      %v204 = vld [vmem:[%s1 + $0x34] sm:$0xf]
      %v205 = vld [vmem:[%s1 + $0x38] sm:$0xf]
      %v206 = vld [vmem:[%s1 + $0x3c] sm:$0xf]
      %v207 = vld [vmem:[%s1 + $0x40] sm:$0xf]
      %v208 = vld [vmem:[%s1 + $0x44] sm:$0xf]
      %v211 = vunpack.c.l.b16 %v189
      %v212 = vunpack.c.h.b16 %v189
      %v213 = vunpack.c.l.b16 %v190
      %v214 = vunpack.c.h.b16 %v190
      %v215 = vpack.c.b16 %v213, %v211
      %v216 = vpack.c.b16 %v214, %v212
      %v236 = vunpack.c.l.b16 %v191
      %v237 = vunpack.c.l.b16 %v192
      %v238 = vunpack.c.l.b16 %v193
      %v239 = vunpack.c.l.b16 %v194
      %v240 = vunpack.c.l.b16 %v195
      %v241 = vunpack.c.l.b16 %v196
      %v242 = vunpack.c.l.b16 %v197
      %v243 = vunpack.c.l.b16 %v198
      %v244 = vunpack.c.l.b16 %v199
      %v245 = vunpack.c.l.b16 %v200
      %v246 = vunpack.c.l.b16 %v201
      %v247 = vunpack.c.l.b16 %v202
      %v248 = vunpack.c.l.b16 %v203
      %v249 = vunpack.c.l.b16 %v204
      %v250 = vunpack.c.l.b16 %v205
      %v251 = vunpack.c.l.b16 %v206
      %v252 = vunpack.c.l.b16 %v207
      %v253 = vunpack.c.l.b16 %v208
      %v254 = vpack.c.b16 %v237, %v236
      %v255 = vpack.c.b16 %v239, %v238
      %v256 = vpack.c.b16 %v241, %v240
      %v257 = vpack.c.b16 %v243, %v242
      %v258 = vpack.c.b16 %v245, %v244
      %v259 = vpack.c.b16 %v247, %v246
      %v260 = vpack.c.b16 %v249, %v248
      %v261 = vpack.c.b16 %v251, %v250
      %v262 = vpack.c.b16 %v253, %v252
      %vm272 = vcmask 130048
      %v274 = vsel %vm272, %v216, 0
      %276 = vmatprep.subr.bf16.mxu0 0
      %277 = vmatpush1.bf16.msra.mxu0 %v254
      %278 = vmatprep.subr.bf16.mxu0 0
      %279 = vmatpush1.bf16.msra.mxu0 %v255
      %280 = vmatprep.subr.bf16.mxu0 0
      %281 = vmatpush1.bf16.msra.mxu0 %v256
      %282 = vmatprep.subr.bf16.mxu0 0
      %283 = vmatpush1.bf16.msra.mxu0 %v257
      %284 = vmatprep.subr.bf16.mxu0 0
      %285 = vmatpush1.bf16.msra.mxu0 %v258
      %286 = vmatprep.subr.bf16.mxu0 0
      %287 = vmatpush1.bf16.msra.mxu0 %v259
      %288 = vmatprep.subr.bf16.mxu0 0
      %289 = vmatpush1.bf16.msra.mxu0 %v260
      %290 = vmatprep.subr.bf16.mxu0 0
      %291 = vmatpush1.bf16.msra.mxu0 %v261
      %292 = vmatprep.subr.bf16.mxu0 0
      %293 = vmatpush1.bf16.msra.mxu0 %v262
      %294 = vmatprep.subr.bf16.mxu0 0
      %295 = vmatpush1.bf16.msra.mxu0 0
      %296 = vmatprep.subr.bf16.mxu0 0
      %297 = vmatpush1.bf16.msra.mxu0 0
      %298 = vmatprep.subr.bf16.mxu0 0
      %299 = vmatpush1.bf16.msra.mxu0 0
      %300 = vmatprep.subr.bf16.mxu0 0
      %301 = vmatpush1.bf16.msra.mxu0 0
      %302 = vmatprep.subr.bf16.mxu0 0
      %303 = vmatpush1.bf16.msra.mxu0 0
      %304 = vmatprep.subr.bf16.mxu0 0
      %305 = vmatpush1.bf16.msra.mxu0 0
      %306 = vmatprep.subr.bf16.mxu0 0
      %307 = vmatpush1.bf16.msra.mxu0 0
      %308 = vmatprep.mubr.bf16.mxu0 %v274
      %309 = vmatmul.mubr.bf16.gmra.mrb[0].mxu0 %v215
      %v310 = vpop.f32.mrb[0].mxu0
      %v311 = vadd.f32 0.0, %v310
      %v312 = vpop.f32.mrb[0].mxu0
      %v313 = vpop.f32.mrb[0].mxu0
      %v314 = vadd.f32 0.0, %v313
      %v315 = vpop.f32.mrb[0].mxu0
      %316 = vdwg.mxu0
      %317 = vst [vmem:[%s182] sm:$0xff] %v311
      %318 = vst [vmem:[%s182 + $0x8] sm:$0xff] %v314
      %v319 = vadd.f32 %v311, %v314
      %v320 = vrot.slane %v319, 4
      %v321 = vadd.f32 %v319, %v320
      %v322 = vrot.slane %v321, 2
      %v323 = vadd.f32 %v321, %v322
      %v324 = vrot.slane %v323, 1
      %v325 = vadd.f32 %v323, %v324
      %326 = vst [vmem:[%s187] sm:$0x1] %v325
      %v327 = vmul.f32 %v311, %v311
      %v328 = vmul.f32 %v314, %v314
      %v329 = vadd.f32 %v327, %v328
      %v330 = vrot.slane %v329, 4
      %v331 = vadd.f32 %v329, %v330
      %v332 = vrot.slane %v331, 2
      %v333 = vadd.f32 %v331, %v332
      %v334 = vrot.slane %v333, 1
      %v335 = vadd.f32 %v333, %v334
      %336 = vst [vmem:[%s187 + $0x1] sm:$0x1] %v335
      %s337 = smul.u32 2, %s15
      %p338 = scmp.lt.s32.totalorder %s337, 3
      %s339 = scalar_select %p338, %s337, 3
      %s340 = smul.addr %s339, 8
      %s341 = scalar_lea.vmem %s2, %s340
      %p342 = scmp.lt.s32.totalorder %s15, 1
      %s343 = scalar_select %p342, %s15, 1
      %s344 = smul.addr %s343, 2
      %s345 = scalar_lea.vmem %s3, %s344
      // Predicated region
      $region29: #{generator_forward.19} parent=27 // pred_check
        %p346 = pneg %p80
      $region30: #{generator_forward.19} parent=27 // pred_check_branch
        %348 = sbr.rel (%p346) target = $region32
      $region31: #{generator_forward.19} parent=27 // pred_region
        %s349 = smul.u32 2, %s15
      $region32: #{generator_forward.19} parent=27 // pred_fallthru
        _
      // Predicated region
      $region33: #{generator_forward.19} parent=27 // pred_check
        %p350 = pneg %p106
      $region34: #{generator_forward.19} parent=27 // pred_check_branch
        %352 = sbr.rel (%p350) target = $region36
      $region35: #{generator_forward.19} parent=27 // pred_region
        _
      $region36: #{generator_forward.19} parent=27 // pred_fallthru
        _
    $region28: #{generator_forward.19} parent=5 // pred_fallthru
      _
    %p353 = scmp.le.s32.totalorder 2, %s10
    // Predicated region
    $region37: #{generator_forward.19} parent=5 // pred_check
      %p354 = pneg %p353
    $region38: #{generator_forward.19} parent=5 // pred_check_branch
      %356 = sbr.rel (%p354) target = $region40
    $region39: #{generator_forward.19} parent=5 // pred_region
      %s357 = ssub.s32 %s10, 2
      // Predicated region
      $region41: #{generator_forward.19} parent=39 // pred_check
        %p358 = pneg %p86
      $region42: #{generator_forward.19} parent=39 // pred_check_branch
        %360 = sbr.rel (%p358) target = $region44
      $region43: #{generator_forward.19} parent=39 // pred_region
        %s361 = smul.u32 2, %s16
        %p362 = scmp.lt.s32.totalorder %s361, 3
        %s363 = scalar_select %p362, %s361, 3
        %s364 = smul.addr %s363, 8
        %s365 = scalar_lea.vmem %s2, %s364
      $region44: #{generator_forward.19} parent=39 // pred_fallthru
        _
      // Predicated region
      $region45: #{generator_forward.19} parent=39 // pred_check
        %p366 = pneg %p112
      $region46: #{generator_forward.19} parent=39 // pred_check_branch
        %368 = sbr.rel (%p366) target = $region48
      $region47: #{generator_forward.19} parent=39 // pred_region
        %p369 = scmp.lt.s32.totalorder %s16, 1
        %s370 = scalar_select %p369, %s16, 1
        %s371 = smul.addr %s370, 2
        %s372 = scalar_lea.vmem %s3, %s371
      $region48: #{generator_forward.19} parent=39 // pred_fallthru
        _
    $region40: #{generator_forward.19} parent=5 // pred_fallthru
      _
  $region6: #{generator_forward.19} parent=0 // loop_footer
    %s14 = sadd.s32 1, %s10
  $region7: #{generator_forward.19} parent=0 // loop_footer_branch
    %9 = sbr.rel target = $region3
  $region8: #{generator_forward.19} parent=0 // loop_exit
    _

// kernel: generator_forward.20
$region0: #{generator_forward.20}
  #allocation0 [shape = 'u32[]', space=smem, size = 0x4, offset = 0x4, fixed_abs, tag = 'smem constant byte address 0x4 - core index']
  #allocation1 [shape = 'u32[144,128]{1,0:T(1,128)}', space=vmem, size = 0x12000, scoped, tag = 'internal scratch']
  %s0 = inlined_call_operand.vmem [shape: f32[32,128], index: 0, kind: input, shape index: {}]
  %s1 = inlined_call_operand.vmem [shape: f32[1,128], index: 1, kind: input, shape index: {}]
  %s2 = inlined_call_operand.vmem [shape: f32[1,128], index: 2, kind: input, shape index: {}]
  %s3 = inlined_call_operand.vmem [shape: bf16[32,128], index: 3, kind: output, shape index: {}]
  %s4 = sld [smem:[#allocation0]]
  $region45: #{generator_forward.20} parent=0
    _
  %s6 = ssub.s32 1, %s4
  %s7 = scalar_select 0, %s6, %s4
  loop: start=0, step=1, limit=4
  $region2: #{generator_forward.20} parent=0 // loop_pre_header
    _
  $region3: #{generator_forward.20} parent=0 // loop_header
    %s9 = sphi 0, %s13
    %p10 = scmp.ge.s32.totalorder %s9, 4
    %s19 = sphi 0, %s21
    %s22 = sphi 0, %s19
    %s23 = sphi 0, %s22
    %s39 = sphi 0, %s23
    %s43 = sphi 0, %s43
    %s45 = sphi 0, %s43
    %s46 = sphi 0, %s45
    %s60 = sphi 0, %s46
    %s64 = sphi 0, %s64
    %s66 = sphi 0, %s64
    %s67 = sphi 0, %s66
    %s81 = sphi 0, %s67
    %s87 = sphi 0, %s89
    %s90 = sphi 0, %s87
    %s91 = sphi 0, %s90
    %s107 = sphi 0, %s91
  $region4: #{generator_forward.20} parent=0 // loop_header_branch
    %12 = sbr.rel (%p10) target = $region8
  $region5: #{generator_forward.20} parent=0 // loop_body
    %s14 = ssub.s32 %s9, 1
    %s15 = ssub.s32 %s9, 2
    %s16 = sadd.s32 %s9, 1
    %s17 = ssub.s32 %s9, %s16
    %p18 = scmp.eq.s32.totalorder %s17, 0
    %s20 = sadd.s32 %s19, 1
    %s21 = scalar_select %p18, %s19, %s20
    %p24 = pneg %p18
    %p25 = scmp.eq.s32.totalorder %s9, 1
    %p26 = por %p24, %p25
    %p27 = scmp.ne.s32.totalorder %s19, %s22
    %p28 = scmp.eq.s32.totalorder %s9, 0
    %p29 = por %p27, %p28
    %p30 = scmp.ne.s32.totalorder %s19, %s22
    %p31 = scmp.eq.s32.totalorder %s14, 1
    %p32 = por %p30, %p31
    %p33 = scmp.ne.s32.totalorder %s22, %s23
    %p34 = scmp.eq.s32.totalorder %s14, 0
    %p35 = por %p33, %p34
    %p36 = scmp.ne.s32.totalorder %s22, %s23
    %p37 = scmp.eq.s32.totalorder %s15, 1
    %p38 = por %p36, %p37
    %p40 = scmp.ne.s32.totalorder %s23, %s39
    %p41 = scmp.eq.s32.totalorder %s15, 0
    %p42 = por %p40, %p41
    %s44 = sadd.s32 %s43, 1
    %p47 = scmp.eq.s32.totalorder %s9, 1
    %p48 = scmp.ne.s32.totalorder %s43, %s45
    %p49 = scmp.eq.s32.totalorder %s9, 0
    %p50 = por %p48, %p49
    %p51 = scmp.ne.s32.totalorder %s43, %s45
    %p52 = scmp.eq.s32.totalorder %s14, 1
    %p53 = por %p51, %p52
    %p54 = scmp.ne.s32.totalorder %s45, %s46
    %p55 = scmp.eq.s32.totalorder %s14, 0
    %p56 = por %p54, %p55
    %p57 = scmp.ne.s32.totalorder %s45, %s46
    %p58 = scmp.eq.s32.totalorder %s15, 1
    %p59 = por %p57, %p58
    %p61 = scmp.ne.s32.totalorder %s46, %s60
    %p62 = scmp.eq.s32.totalorder %s15, 0
    %p63 = por %p61, %p62
    %s65 = sadd.s32 %s64, 1
    %p68 = scmp.eq.s32.totalorder %s9, 1
    %p69 = scmp.ne.s32.totalorder %s64, %s66
    %p70 = scmp.eq.s32.totalorder %s9, 0
    %p71 = por %p69, %p70
    %p72 = scmp.ne.s32.totalorder %s64, %s66
    %p73 = scmp.eq.s32.totalorder %s14, 1
    %p74 = por %p72, %p73
    %p75 = scmp.ne.s32.totalorder %s66, %s67
    %p76 = scmp.eq.s32.totalorder %s14, 0
    %p77 = por %p75, %p76
    %p78 = scmp.ne.s32.totalorder %s66, %s67
    %p79 = scmp.eq.s32.totalorder %s15, 1
    %p80 = por %p78, %p79
    %p82 = scmp.ne.s32.totalorder %s67, %s81
    %p83 = scmp.eq.s32.totalorder %s15, 0
    %p84 = por %p82, %p83
    %s85 = ssub.s32 %s9, %s16
    %p86 = scmp.eq.s32.totalorder %s85, 0
    %s88 = sadd.s32 %s87, 1
    %s89 = scalar_select %p86, %s87, %s88
    %p92 = pneg %p86
    %p93 = scmp.eq.s32.totalorder %s9, 1
    %p94 = por %p92, %p93
    %p95 = scmp.ne.s32.totalorder %s87, %s90
    %p96 = scmp.eq.s32.totalorder %s9, 0
    %p97 = por %p95, %p96
    %p98 = scmp.ne.s32.totalorder %s87, %s90
    %p99 = scmp.eq.s32.totalorder %s14, 1
    %p100 = por %p98, %p99
    %p101 = scmp.ne.s32.totalorder %s90, %s91
    %p102 = scmp.eq.s32.totalorder %s14, 0
    %p103 = por %p101, %p102
    %p104 = scmp.ne.s32.totalorder %s90, %s91
    %p105 = scmp.eq.s32.totalorder %s15, 1
    %p106 = por %p104, %p105
    %p108 = scmp.ne.s32.totalorder %s91, %s107
    %p109 = scmp.eq.s32.totalorder %s15, 0
    %p110 = por %p108, %p109
    %p111 = scmp.le.s32.totalorder 1, %s9
    %p112 = scmp.lt.s32.totalorder %s9, 3
    %p113 = pnand %p111, %p112
    %p114 = pneg %p113
    // Predicated region
    $region9: #{generator_forward.20} parent=5 // pred_check
      _
    $region10: #{generator_forward.20} parent=5 // pred_check_branch
      %116 = sbr.rel (%p113) target = $region12
    $region11: #{generator_forward.20} parent=5 // pred_region
      %s117 = ssub.s32 %s9, 1
      // Predicated region
      $region13: #{generator_forward.20} parent=11 // pred_check
        %p118 = pneg %p56
      $region14: #{generator_forward.20} parent=11 // pred_check_branch
        %120 = sbr.rel (%p118) target = $region16
      $region15: #{generator_forward.20} parent=11 // pred_region
        _
      $region16: #{generator_forward.20} parent=11 // pred_fallthru
        _
      // Predicated region
      $region17: #{generator_forward.20} parent=11 // pred_check
        %p121 = pneg %p77
      $region18: #{generator_forward.20} parent=11 // pred_check_branch
        %123 = sbr.rel (%p121) target = $region20
      $region19: #{generator_forward.20} parent=11 // pred_region
        _
      $region20: #{generator_forward.20} parent=11 // pred_fallthru
        _
    $region12: #{generator_forward.20} parent=5 // pred_fallthru
      _
    %p124 = scmp.lt.s32.totalorder %s9, 2
    // Predicated region
    $region21: #{generator_forward.20} parent=5 // pred_check
      %p125 = pneg %p124
    $region22: #{generator_forward.20} parent=5 // pred_check_branch
      %127 = sbr.rel (%p125) target = $region24
    $region23: #{generator_forward.20} parent=5 // pred_region
      // Predicated region
      $region25: #{generator_forward.20} parent=23 // pred_check
        %p128 = pneg %p29
      $region26: #{generator_forward.20} parent=23 // pred_check_branch
        %130 = sbr.rel (%p128) target = $region28
      $region27: #{generator_forward.20} parent=23 // pred_region
        %s131 = smul.u32 2, %s9
        %p132 = scmp.lt.s32.totalorder %s131, 3
        %s133 = scalar_select %p132, %s131, 3
        %s134 = smul.addr %s133, 8
        %s135 = scalar_lea.vmem %s0, %s134
        %s136 = smul.u32 2, %s9
      $region28: #{generator_forward.20} parent=23 // pred_fallthru
        _
    $region24: #{generator_forward.20} parent=5 // pred_fallthru
      _
    %p137 = scmp.le.s32.totalorder 1, %s9
    %p138 = scmp.lt.s32.totalorder %s9, 3
    %p139 = pnand %p137, %p138
    %p140 = pneg %p139
    // Predicated region
    $region29: #{generator_forward.20} parent=5 // pred_check
      _
    $region30: #{generator_forward.20} parent=5 // pred_check_branch
      %142 = sbr.rel (%p139) target = $region32
    $region31: #{generator_forward.20} parent=5 // pred_region
      %s143 = ssub.s32 %s9, 1
      %s144 = smul.u32 2, %s14
      %p145 = scmp.lt.s32.totalorder %s144, 3
      %s146 = scalar_select %p145, %s144, 3
      %s147 = smul.addr %s146, 8
      %s148 = scalar_lea.vmem %s0, %s147
      %p149 = pneg %p35
      %p150 = pneg %p32
      %p151 = pneg %p56
      %p152 = pneg %p53
      %p153 = pneg %p77
      %p154 = pneg %p74
      %p155 = pneg %p103
      %p156 = pneg %p100
      %s157 = smul.u32 2, %s14
      %p158 = scmp.lt.s32.totalorder %s157, 3
      %s159 = scalar_select %p158, %s157, 3
      %s160 = smul.addr %s159, 4
      %s161 = scalar_lea.vmem %s3, %s160
      %s162 = smul.u32 2, %s14
      %p163 = scmp.lt.s32.totalorder %s162, 3
      %s164 = scalar_select %p163, %s162, 3
      %s165 = smul.addr %s164, 8
      %s166 = scalar_lea.vmem %s0, %s165
      %s167 = smul.u32 2, %s14
      %s168 = smul.u32 2, %s14
      %p169 = scmp.lt.s32.totalorder %s168, 3
      %s170 = scalar_select %p169, %s168, 3
      %s171 = smul.addr %s170, 4
      %s172 = scalar_lea.vmem %s3, %s171
      %s173 = smul.u32 2, %s14
      %v174 = vld [vmem:[%s166] sm:$0xff]
      %v175 = vld [vmem:[%s166 + $0x8] sm:$0xff]
      %v176 = vld [vmem:[%s1] sm:$0x1]
      %v178 = vlaneseq
      %v179 = vshrl.u32 %v178, 7
      %v180 = vsub.s32 0, %v179
      %v181 = vrot.slane %v176, %v180
      %v183 = vmul.f32 %v174, %v181
      %v184 = vmul.f32 %v175, %v181
      %v185 = vld [vmem:[%s2] sm:$0x1]
      %v187 = vlaneseq
      %v188 = vshrl.u32 %v187, 7
      %v189 = vsub.s32 0, %v188
      %v190 = vrot.slane %v185, %v189
      %v192 = vadd.f32 %v183, %v190
      %v193 = vadd.f32 %v184, %v190
      %v194 = vmax.f32 %v192, 0.0
      %v195 = vmax.f32 %v193, 0.0
      %v196 = vpack.c.bf16 %v195, %v194
      %v198 = vunpack.c.l.b16 %v196
      %v199 = vunpack.c.h.b16 %v196
      %v200 = vpack.c.b16 %v198, %v198
      %v201 = vpack.c.b16 %v199, %v199
      %204 = vst [vmem:[%s172] sm:$0xf] %v200
      %205 = vst [vmem:[%s172 + $0x4] sm:$0xf] %v201
      %s206 = smul.u32 2, %s14
      %p207 = scmp.lt.s32.totalorder %s206, 3
      %s208 = scalar_select %p207, %s206, 3
      %s209 = smul.addr %s208, 4
      %s210 = scalar_lea.vmem %s3, %s209
      // Predicated region
      $region33: #{generator_forward.20} parent=31 // pred_check
        %p211 = pneg %p100
      $region34: #{generator_forward.20} parent=31 // pred_check_branch
        %213 = sbr.rel (%p211) target = $region36
      $region35: #{generator_forward.20} parent=31 // pred_region
        %s214 = smul.u32 2, %s14
      $region36: #{generator_forward.20} parent=31 // pred_fallthru
        _
    $region32: #{generator_forward.20} parent=5 // pred_fallthru
      _
    %p215 = scmp.le.s32.totalorder 2, %s9
    // Predicated region
    $region37: #{generator_forward.20} parent=5 // pred_check
      %p216 = pneg %p215
    $region38: #{generator_forward.20} parent=5 // pred_check_branch
      %218 = sbr.rel (%p216) target = $region40
    $region39: #{generator_forward.20} parent=5 // pred_region
      %s219 = ssub.s32 %s9, 2
      // Predicated region
      $region41: #{generator_forward.20} parent=39 // pred_check
        %p220 = pneg %p106
      $region42: #{generator_forward.20} parent=39 // pred_check_branch
        %222 = sbr.rel (%p220) target = $region44
      $region43: #{generator_forward.20} parent=39 // pred_region
        %s223 = smul.u32 2, %s15
        %p224 = scmp.lt.s32.totalorder %s223, 3
        %s225 = scalar_select %p224, %s223, 3
        %s226 = smul.addr %s225, 4
        %s227 = scalar_lea.vmem %s3, %s226
      $region44: #{generator_forward.20} parent=39 // pred_fallthru
        _
    $region40: #{generator_forward.20} parent=5 // pred_fallthru
      _
  $region6: #{generator_forward.20} parent=0 // loop_footer
    %s13 = sadd.s32 1, %s9
  $region7: #{generator_forward.20} parent=0 // loop_footer_branch
    %8 = sbr.rel target = $region3
  $region8: #{generator_forward.20} parent=0 // loop_exit
    _

// kernel: generator_forward.21
$region0: #{generator_forward.21}
  #allocation0 [shape = 'u32[]', space=smem, size = 0x4, offset = 0x4, fixed_abs, tag = 'smem constant byte address 0x4 - core index']
  #allocation1 [shape = 'u32[144,128]{1,0:T(1,128)}', space=vmem, size = 0x12000, scoped, tag = 'internal scratch']
  %s0 = inlined_call_operand.vmem [shape: bf16[128,72], index: 0, kind: input, shape index: {}]
  %s1 = inlined_call_operand.vmem [shape: bf16[72,128], index: 1, kind: input, shape index: {}]
  %s2 = inlined_call_operand.vmem [shape: f32[1,128], index: 2, kind: input, shape index: {}]
  %s3 = inlined_call_operand.vmem [shape: f32[1,128], index: 3, kind: input, shape index: {}]
  %s4 = inlined_call_operand.vmem [shape: f32[128,128], index: 4, kind: output, shape index: {}]
  %s5 = sld [smem:[#allocation0]]
  $region49: #{generator_forward.21} parent=0
    _
  %s7 = ssub.s32 1, %s5
  %s8 = scalar_select 0, %s7, %s5
  loop: start=0, step=1, limit=4
  $region2: #{generator_forward.21} parent=0 // loop_pre_header
    _
  $region3: #{generator_forward.21} parent=0 // loop_header
    %s10 = sphi 0, %s14
    %p11 = scmp.ge.s32.totalorder %s10, 4
    %s20 = sphi 0, %s22
    %s23 = sphi 0, %s20
    %s24 = sphi 0, %s23
    %s40 = sphi 0, %s24
    %s44 = sphi 0, %s44
    %s46 = sphi 0, %s44
    %s47 = sphi 0, %s46
    %s61 = sphi 0, %s47
    %s65 = sphi 0, %s65
    %s67 = sphi 0, %s65
    %s68 = sphi 0, %s67
    %s82 = sphi 0, %s68
    %s86 = sphi 0, %s86
    %s88 = sphi 0, %s86
    %s89 = sphi 0, %s88
    %s103 = sphi 0, %s89
    %s109 = sphi 0, %s111
    %s112 = sphi 0, %s109
    %s113 = sphi 0, %s112
    %s129 = sphi 0, %s113
  $region4: #{generator_forward.21} parent=0 // loop_header_branch
    %13 = sbr.rel (%p11) target = $region8
  $region5: #{generator_forward.21} parent=0 // loop_body
    %s15 = ssub.s32 %s10, 1
    %s16 = ssub.s32 %s10, 2
    %s17 = sadd.s32 %s10, 1
    %s18 = ssub.s32 %s10, %s17
    %p19 = scmp.eq.s32.totalorder %s18, 0
    %s21 = sadd.s32 %s20, 1
    %s22 = scalar_select %p19, %s20, %s21
    %p25 = pneg %p19
    %p26 = scmp.eq.s32.totalorder %s10, 1
    %p27 = por %p25, %p26
    %p28 = scmp.ne.s32.totalorder %s20, %s23
    %p29 = scmp.eq.s32.totalorder %s10, 0
    %p30 = por %p28, %p29
    %p31 = scmp.ne.s32.totalorder %s20, %s23
    %p32 = scmp.eq.s32.totalorder %s15, 1
    %p33 = por %p31, %p32
    %p34 = scmp.ne.s32.totalorder %s23, %s24
    %p35 = scmp.eq.s32.totalorder %s15, 0
    %p36 = por %p34, %p35
    %p37 = scmp.ne.s32.totalorder %s23, %s24
    %p38 = scmp.eq.s32.totalorder %s16, 1
    %p39 = por %p37, %p38
    %p41 = scmp.ne.s32.totalorder %s24, %s40
    %p42 = scmp.eq.s32.totalorder %s16, 0
    %p43 = por %p41, %p42
    %s45 = sadd.s32 %s44, 1
    %p48 = scmp.eq.s32.totalorder %s10, 1
    %p49 = scmp.ne.s32.totalorder %s44, %s46
    %p50 = scmp.eq.s32.totalorder %s10, 0
    %p51 = por %p49, %p50
    %p52 = scmp.ne.s32.totalorder %s44, %s46
    %p53 = scmp.eq.s32.totalorder %s15, 1
    %p54 = por %p52, %p53
    %p55 = scmp.ne.s32.totalorder %s46, %s47
    %p56 = scmp.eq.s32.totalorder %s15, 0
    %p57 = por %p55, %p56
    %p58 = scmp.ne.s32.totalorder %s46, %s47
    %p59 = scmp.eq.s32.totalorder %s16, 1
    %p60 = por %p58, %p59
    %p62 = scmp.ne.s32.totalorder %s47, %s61
    %p63 = scmp.eq.s32.totalorder %s16, 0
    %p64 = por %p62, %p63
    %s66 = sadd.s32 %s65, 1
    %p69 = scmp.eq.s32.totalorder %s10, 1
    %p70 = scmp.ne.s32.totalorder %s65, %s67
    %p71 = scmp.eq.s32.totalorder %s10, 0
    %p72 = por %p70, %p71
    %p73 = scmp.ne.s32.totalorder %s65, %s67
    %p74 = scmp.eq.s32.totalorder %s15, 1
    %p75 = por %p73, %p74
    %p76 = scmp.ne.s32.totalorder %s67, %s68
    %p77 = scmp.eq.s32.totalorder %s15, 0
    %p78 = por %p76, %p77
    %p79 = scmp.ne.s32.totalorder %s67, %s68
    %p80 = scmp.eq.s32.totalorder %s16, 1
    %p81 = por %p79, %p80
    %p83 = scmp.ne.s32.totalorder %s68, %s82
    %p84 = scmp.eq.s32.totalorder %s16, 0
    %p85 = por %p83, %p84
    %s87 = sadd.s32 %s86, 1
    %p90 = scmp.eq.s32.totalorder %s10, 1
    %p91 = scmp.ne.s32.totalorder %s86, %s88
    %p92 = scmp.eq.s32.totalorder %s10, 0
    %p93 = por %p91, %p92
    %p94 = scmp.ne.s32.totalorder %s86, %s88
    %p95 = scmp.eq.s32.totalorder %s15, 1
    %p96 = por %p94, %p95
    %p97 = scmp.ne.s32.totalorder %s88, %s89
    %p98 = scmp.eq.s32.totalorder %s15, 0
    %p99 = por %p97, %p98
    %p100 = scmp.ne.s32.totalorder %s88, %s89
    %p101 = scmp.eq.s32.totalorder %s16, 1
    %p102 = por %p100, %p101
    %p104 = scmp.ne.s32.totalorder %s89, %s103
    %p105 = scmp.eq.s32.totalorder %s16, 0
    %p106 = por %p104, %p105
    %s107 = ssub.s32 %s10, %s17
    %p108 = scmp.eq.s32.totalorder %s107, 0
    %s110 = sadd.s32 %s109, 1
    %s111 = scalar_select %p108, %s109, %s110
    %p114 = pneg %p108
    %p115 = scmp.eq.s32.totalorder %s10, 1
    %p116 = por %p114, %p115
    %p117 = scmp.ne.s32.totalorder %s109, %s112
    %p118 = scmp.eq.s32.totalorder %s10, 0
    %p119 = por %p117, %p118
    %p120 = scmp.ne.s32.totalorder %s109, %s112
    %p121 = scmp.eq.s32.totalorder %s15, 1
    %p122 = por %p120, %p121
    %p123 = scmp.ne.s32.totalorder %s112, %s113
    %p124 = scmp.eq.s32.totalorder %s15, 0
    %p125 = por %p123, %p124
    %p126 = scmp.ne.s32.totalorder %s112, %s113
    %p127 = scmp.eq.s32.totalorder %s16, 1
    %p128 = por %p126, %p127
    %p130 = scmp.ne.s32.totalorder %s113, %s129
    %p131 = scmp.eq.s32.totalorder %s16, 0
    %p132 = por %p130, %p131
    %p133 = scmp.le.s32.totalorder 1, %s10
    %p134 = scmp.lt.s32.totalorder %s10, 3
    %p135 = pnand %p133, %p134
    %p136 = pneg %p135
    // Predicated region
    $region9: #{generator_forward.21} parent=5 // pred_check
      _
    $region10: #{generator_forward.21} parent=5 // pred_check_branch
      %138 = sbr.rel (%p135) target = $region12
    $region11: #{generator_forward.21} parent=5 // pred_region
      %s139 = ssub.s32 %s10, 1
      // Predicated region
      $region13: #{generator_forward.21} parent=11 // pred_check
        %p140 = pneg %p57
      $region14: #{generator_forward.21} parent=11 // pred_check_branch
        %142 = sbr.rel (%p140) target = $region16
      $region15: #{generator_forward.21} parent=11 // pred_region
        _
      $region16: #{generator_forward.21} parent=11 // pred_fallthru
        _
      // Predicated region
      $region17: #{generator_forward.21} parent=11 // pred_check
        %p143 = pneg %p78
      $region18: #{generator_forward.21} parent=11 // pred_check_branch
        %145 = sbr.rel (%p143) target = $region20
      $region19: #{generator_forward.21} parent=11 // pred_region
        _
      $region20: #{generator_forward.21} parent=11 // pred_fallthru
        _
      // Predicated region
      $region21: #{generator_forward.21} parent=11 // pred_check
        %p146 = pneg %p99
      $region22: #{generator_forward.21} parent=11 // pred_check_branch
        %148 = sbr.rel (%p146) target = $region24
      $region23: #{generator_forward.21} parent=11 // pred_region
        _
      $region24: #{generator_forward.21} parent=11 // pred_fallthru
        _
    $region12: #{generator_forward.21} parent=5 // pred_fallthru
      _
    %p149 = scmp.lt.s32.totalorder %s10, 2
    // Predicated region
    $region25: #{generator_forward.21} parent=5 // pred_check
      %p150 = pneg %p149
    $region26: #{generator_forward.21} parent=5 // pred_check_branch
      %152 = sbr.rel (%p150) target = $region28
    $region27: #{generator_forward.21} parent=5 // pred_region
      // Predicated region
      $region29: #{generator_forward.21} parent=27 // pred_check
        %p153 = pneg %p30
      $region30: #{generator_forward.21} parent=27 // pred_check_branch
        %155 = sbr.rel (%p153) target = $region32
      $region31: #{generator_forward.21} parent=27 // pred_region
        %s156 = smul.u32 8, %s10
        %p157 = scmp.lt.s32.totalorder %s156, 15
        %s158 = scalar_select %p157, %s156, 15
        %s159 = smul.addr %s158, 4
        %s160 = scalar_lea.vmem %s0, %s159
        %s161 = smul.u32 8, %s10
      $region32: #{generator_forward.21} parent=27 // pred_fallthru
        _
    $region28: #{generator_forward.21} parent=5 // pred_fallthru
      _
    %p162 = scmp.le.s32.totalorder 1, %s10
    %p163 = scmp.lt.s32.totalorder %s10, 3
    %p164 = pnand %p162, %p163
    %p165 = pneg %p164
    // Predicated region
    $region33: #{generator_forward.21} parent=5 // pred_check
      _
    $region34: #{generator_forward.21} parent=5 // pred_check_branch
      %167 = sbr.rel (%p164) target = $region36
    $region35: #{generator_forward.21} parent=5 // pred_region
      %s168 = ssub.s32 %s10, 1
      %s169 = smul.u32 8, %s15
      %p170 = scmp.lt.s32.totalorder %s169, 15
      %s171 = scalar_select %p170, %s169, 15
      %s172 = smul.addr %s171, 4
      %s173 = scalar_lea.vmem %s0, %s172
      %p174 = pneg %p36
      %p175 = pneg %p33
      %p176 = pneg %p57
      %p177 = pneg %p54
      %p178 = pneg %p78
      %p179 = pneg %p75
      %p180 = pneg %p99
      %p181 = pneg %p96
      %p182 = pneg %p125
      %p183 = pneg %p122
      %s184 = smul.u32 8, %s15
      %p185 = scmp.lt.s32.totalorder %s184, 15
      %s186 = scalar_select %p185, %s184, 15
      %s187 = smul.addr %s186, 8
      %s188 = scalar_lea.vmem %s4, %s187
      %s189 = smul.u32 8, %s15
      %p190 = scmp.lt.s32.totalorder %s189, 15
      %s191 = scalar_select %p190, %s189, 15
      %s192 = smul.addr %s191, 4
      %s193 = scalar_lea.vmem %s0, %s192
      %s194 = smul.u32 8, %s15
      %s195 = smul.u32 8, %s15
      %p196 = scmp.lt.s32.totalorder %s195, 15
      %s197 = scalar_select %p196, %s195, 15
      %s198 = smul.addr %s197, 8
      %s199 = scalar_lea.vmem %s4, %s198
      %s200 = smul.u32 8, %s15
      %v202 = vld [vmem:[%s193] sm:$0xf]
      %v203 = vld [vmem:[%s193 + $0x4] sm:$0xf]
      %v204 = vld [vmem:[%s193 + $0x8] sm:$0xf]
      %v205 = vld [vmem:[%s193 + $0xc] sm:$0xf]
      %v206 = vld [vmem:[%s193 + $0x10] sm:$0xf]
      %v207 = vld [vmem:[%s193 + $0x14] sm:$0xf]
      %v208 = vld [vmem:[%s193 + $0x18] sm:$0xf]
      %v209 = vld [vmem:[%s193 + $0x1c] sm:$0xf]
      %v210 = vld [vmem:[%s1] sm:$0xf]
      %v211 = vld [vmem:[%s1 + $0x4] sm:$0xf]
      %v212 = vld [vmem:[%s1 + $0x8] sm:$0xf]
      %v213 = vld [vmem:[%s1 + $0xc] sm:$0xf]
      %v214 = vld [vmem:[%s1 + $0x10] sm:$0xf]
      %v215 = vld [vmem:[%s1 + $0x14] sm:$0xf]
      %v216 = vld [vmem:[%s1 + $0x18] sm:$0xf]
      %v217 = vld [vmem:[%s1 + $0x1c] sm:$0xf]
      %v218 = vld [vmem:[%s1 + $0x20] sm:$0xf]
      %v227 = vunpack.c.l.b16 %v202
      %v228 = vunpack.c.l.b16 %v203
      %v229 = vunpack.c.l.b16 %v204
      %v230 = vunpack.c.l.b16 %v205
      %v231 = vunpack.c.l.b16 %v206
      %v232 = vunpack.c.l.b16 %v207
      %v233 = vunpack.c.l.b16 %v208
      %v234 = vunpack.c.l.b16 %v209
      %v235 = vpack.c.b16 %v228, %v227
      %v236 = vpack.c.b16 %v230, %v229
      %v237 = vpack.c.b16 %v232, %v231
      %v238 = vpack.c.b16 %v234, %v233
      %v248 = vunpack.c.l.b16 %v210
      %v249 = vunpack.c.l.b16 %v211
      %v250 = vunpack.c.l.b16 %v212
      %v251 = vunpack.c.l.b16 %v213
      %v252 = vunpack.c.l.b16 %v214
      %v253 = vunpack.c.l.b16 %v215
      %v254 = vunpack.c.l.b16 %v216
      %v255 = vunpack.c.l.b16 %v217
      %v256 = vunpack.c.l.b16 %v218
      %v257 = vpack.c.b16 %v249, %v248
      %v258 = vpack.c.b16 %v251, %v250
      %v259 = vpack.c.b16 %v253, %v252
      %v260 = vpack.c.b16 %v255, %v254
      %v261 = vpack.c.b16 %v256, %v256
      %vm266 = vcmask 588800
      %v268 = vsel %vm266, %v235, 0
      %v271 = vsel %vm266, %v236, 0
      %v274 = vsel %vm266, %v237, 0
      %v277 = vsel %vm266, %v238, 0
      %vm279 = vcmask 1043456
      %v281 = vsel %vm279, %v261, 0
      %283 = vmatprep.subr.bf16.mxu0 0
      %284 = vmatpush1.bf16.msra.mxu0 %v257
      %285 = vmatprep.subr.bf16.mxu0 0
      %286 = vmatpush1.bf16.msra.mxu0 %v258
      %287 = vmatprep.subr.bf16.mxu0 0
      %288 = vmatpush1.bf16.msra.mxu0 %v259
      %289 = vmatprep.subr.bf16.mxu0 0
      %290 = vmatpush1.bf16.msra.mxu0 %v260
      %291 = vmatprep.subr.bf16.mxu0 0
      %292 = vmatpush1.bf16.msra.mxu0 %v281
      %293 = vmatprep.subr.bf16.mxu0 0
      %294 = vmatpush1.bf16.msra.mxu0 0
      %295 = vmatprep.subr.bf16.mxu0 0
      %296 = vmatpush1.bf16.msra.mxu0 0
      %297 = vmatprep.subr.bf16.mxu0 0
      %298 = vmatpush1.bf16.msra.mxu0 0
      %299 = vmatprep.subr.bf16.mxu0 0
      %300 = vmatpush1.bf16.msra.mxu0 0
      %301 = vmatprep.subr.bf16.mxu0 0
      %302 = vmatpush1.bf16.msra.mxu0 0
      %303 = vmatprep.subr.bf16.mxu0 0
      %304 = vmatpush1.bf16.msra.mxu0 0
      %305 = vmatprep.subr.bf16.mxu0 0
      %306 = vmatpush1.bf16.msra.mxu0 0
      %307 = vmatprep.subr.bf16.mxu0 0
      %308 = vmatpush1.bf16.msra.mxu0 0
      %309 = vmatprep.subr.bf16.mxu0 0
      %310 = vmatpush1.bf16.msra.mxu0 0
      %311 = vmatprep.subr.bf16.mxu0 0
      %312 = vmatpush1.bf16.msra.mxu0 0
      %313 = vmatprep.subr.bf16.mxu0 0
      %314 = vmatpush1.bf16.msra.mxu0 0
      %315 = vmatprep.mubr.bf16.mxu0 0
      %316 = vmatmul.mubr.bf16.gmra.mrb[0].mxu0 %v268
      %v317 = vpop.f32.mrb[0].mxu0
      %v318 = vadd.f32 0.0, %v317
      %v319 = vpop.f32.mrb[0].mxu0
      %v320 = vpop.f32.mrb[0].mxu0
      %v321 = vadd.f32 0.0, %v320
      %v322 = vpop.f32.mrb[0].mxu0
      %323 = vmatprep.mubr.bf16.mxu0 0
      %324 = vmatmul.mubr.bf16.gmra.mrb[0].mxu0 %v271
      %v325 = vpop.f32.mrb[0].mxu0
      %v326 = vadd.f32 0.0, %v325
      %v327 = vpop.f32.mrb[0].mxu0
      %v328 = vpop.f32.mrb[0].mxu0
      %v329 = vadd.f32 0.0, %v328
      %v330 = vpop.f32.mrb[0].mxu0
      %331 = vmatprep.mubr.bf16.mxu0 0
      %332 = vmatmul.mubr.bf16.gmra.mrb[0].mxu0 %v274
      %v333 = vpop.f32.mrb[0].mxu0
      %v334 = vadd.f32 0.0, %v333
      %v335 = vpop.f32.mrb[0].mxu0
      %v336 = vpop.f32.mrb[0].mxu0
      %v337 = vadd.f32 0.0, %v336
      %v338 = vpop.f32.mrb[0].mxu0
      %339 = vmatprep.mubr.bf16.mxu0 0
      %340 = vmatmul.mubr.bf16.gmra.mrb[0].mxu0 %v277
      %v341 = vpop.f32.mrb[0].mxu0
      %v342 = vadd.f32 0.0, %v341
      %v343 = vpop.f32.mrb[0].mxu0
      %v344 = vpop.f32.mrb[0].mxu0
      %v345 = vadd.f32 0.0, %v344
      %v346 = vpop.f32.mrb[0].mxu0
      %347 = vdwg.mxu0
      %v348 = vld [vmem:[%s2] sm:$0x1]
      %v350 = vlaneseq
      %v351 = vshrl.u32 %v350, 7
      %v352 = vsub.s32 0, %v351
      %v353 = vrot.slane %v348, %v352
      %v355 = vmul.f32 %v318, %v353
      %v356 = vmul.f32 %v321, %v353
      %v357 = vmul.f32 %v326, %v353
      %v358 = vmul.f32 %v329, %v353
      %v359 = vmul.f32 %v334, %v353
      %v360 = vmul.f32 %v337, %v353
      %v361 = vmul.f32 %v342, %v353
      %v362 = vmul.f32 %v345, %v353
      %v363 = vld [vmem:[%s3] sm:$0x1]
      %v365 = vlaneseq
      %v366 = vshrl.u32 %v365, 7
      %v367 = vsub.s32 0, %v366
      %v368 = vrot.slane %v363, %v367
      %v370 = vadd.f32 %v355, %v368
      %v371 = vadd.f32 %v356, %v368
      %v372 = vadd.f32 %v357, %v368
      %v373 = vadd.f32 %v358, %v368
      %v374 = vadd.f32 %v359, %v368
      %v375 = vadd.f32 %v360, %v368
      %v376 = vadd.f32 %v361, %v368
      %v377 = vadd.f32 %v362, %v368
      %v378 = vtanh.pop %v370
      %v379 = vtanh.pop %v371
      %v380 = vtanh.pop %v372
      %v381 = vtanh.pop %v373
      %v382 = vtanh.pop %v374
      %v383 = vtanh.pop %v375
      %v384 = vtanh.pop %v376
      %v385 = vtanh.pop %v377
      %386 = vst [vmem:[%s199] sm:$0xff] %v378
      %387 = vst [vmem:[%s199 + $0x8] sm:$0xff] %v379
      %388 = vst [vmem:[%s199 + $0x10] sm:$0xff] %v380
      %389 = vst [vmem:[%s199 + $0x18] sm:$0xff] %v381
      %390 = vst [vmem:[%s199 + $0x20] sm:$0xff] %v382
      %391 = vst [vmem:[%s199 + $0x28] sm:$0xff] %v383
      %392 = vst [vmem:[%s199 + $0x30] sm:$0xff] %v384
      %393 = vst [vmem:[%s199 + $0x38] sm:$0xff] %v385
      %s394 = smul.u32 8, %s15
      %p395 = scmp.lt.s32.totalorder %s394, 15
      %s396 = scalar_select %p395, %s394, 15
      %s397 = smul.addr %s396, 8
      %s398 = scalar_lea.vmem %s4, %s397
      // Predicated region
      $region37: #{generator_forward.21} parent=35 // pred_check
        %p399 = pneg %p122
      $region38: #{generator_forward.21} parent=35 // pred_check_branch
        %401 = sbr.rel (%p399) target = $region40
      $region39: #{generator_forward.21} parent=35 // pred_region
        %s402 = smul.u32 8, %s15
      $region40: #{generator_forward.21} parent=35 // pred_fallthru
        _
    $region36: #{generator_forward.21} parent=5 // pred_fallthru
      _
    %p403 = scmp.le.s32.totalorder 2, %s10
    // Predicated region
    $region41: #{generator_forward.21} parent=5 // pred_check
      %p404 = pneg %p403
    $region42: #{generator_forward.21} parent=5 // pred_check_branch
      %406 = sbr.rel (%p404) target = $region44
    $region43: #{generator_forward.21} parent=5 // pred_region
      %s407 = ssub.s32 %s10, 2
      // Predicated region
      $region45: #{generator_forward.21} parent=43 // pred_check
        %p408 = pneg %p128
      $region46: #{generator_forward.21} parent=43 // pred_check_branch
        %410 = sbr.rel (%p408) target = $region48
      $region47: #{generator_forward.21} parent=43 // pred_region
        %s411 = smul.u32 8, %s16
        %p412 = scmp.lt.s32.totalorder %s411, 15
        %s413 = scalar_select %p412, %s411, 15
        %s414 = smul.addr %s413, 8
        %s415 = scalar_lea.vmem %s4, %s414
      $region48: #{generator_forward.21} parent=43 // pred_fallthru
        _
    $region44: #{generator_forward.21} parent=5 // pred_fallthru
      _
  $region6: #{generator_forward.21} parent=0 // loop_footer
    %s14 = sadd.s32 1, %s10
  $region7: #{generator_forward.21} parent=0 // loop_footer_branch
    %9 = sbr.rel target = $region3
  $region8: #{generator_forward.21} parent=0 // loop_exit
    _

</llo_original>
